<compile_context>
chip_gen: v7x
topology: tpu7x:2x2x1
jax: 0.10.0
libtpu: 0.0.40
codegen_flags: <defaults>
</compile_context>

<pallas_src>
import functools

import jax
import jax.numpy as jnp
from jax import lax
from jax.experimental import pallas as pl
from jax.experimental.pallas import tpu as pltpu

_VMEM = functools.partial(pl.BlockSpec, memory_space=pltpu.MemorySpace.VMEM)


# -----------------------------------------------------------------------------
# Fused kernel: 2-layer BiLSTM (mask-gated, pack/pad semantics) + LayerNorm +
# hidden2tag + linear-chain CRF negative log-likelihood per sequence.
#
# Row-arrays are time-major flattened: row index = t * BP + b (BP = padded batch).
#   x_ref:    (T*BP, E)     embedded tokens
#   mi_ref:   (T*BP, 2)     lane 0: valid mask, lane 1: is-last-valid-step
#   oh_ref:   (T*BP, K)     gold-tag one-hots
#   wih{1,2}: (D_in, 8H)    input-proj weights, interleaved gate layout
#                           [i_f i_b | f_f f_b | o_f o_b | g_f g_b]
#   whh{1,2}: (2H, 8H)      recurrent weights, rows [h_f | h_b] -> same layout
#   bias_ref: (2, 8H)       row 0: layer-1 bias (b_ih+b_hh), row 1: layer-2
#   wtag_ref: (2H, K)       diag(gamma) @ hidden2tag.T
#   crf_ref:  (K+3, K)      rows 0:K trans, K start, K+1 end, K+2 emit bias
#   out_ref:  (BP, 1)       NLL per sequence = logZ - gold_score
#   h1/h2:    (T*BP, 2H)    VMEM scratch: per-layer [fwd | bwd] outputs
# -----------------------------------------------------------------------------
def _bilstm_crf_kernel(x_ref, mi_ref, oh_ref,
                       wih1_ref, whh1_ref, wih2_ref, whh2_ref,
                       bias_ref, wtag_ref, crf_ref,
                       out_ref, h1_ref, h2_ref):
    TB, _ = x_ref.shape
    BP = out_ref.shape[0]
    T = TB // BP
    H2 = whh1_ref.shape[0]          # 2H (per-direction H, state width 2H)
    H = H2 // 2
    GW = 4 * H2                     # 8H gate lanes
    K = wtag_ref.shape[1]

    maskv = mi_ref[:, 0:1]          # (T*BP, 1) valid mask
    il = mi_ref[:, 1:2]             # (T*BP, 1) is-last-valid-step

    # lane masks (generated in-kernel, no extra operands):
    lane_g = lax.broadcasted_iota(jnp.int32, (1, GW), 1)
    gate_is_fwd = (lane_g % H2) < H         # fwd lanes of each 2H gate block
    lane_s = lax.broadcasted_iota(jnp.int32, (1, H2), 1)
    state_is_fwd = lane_s < H               # fwd half of the [h_f | h_b] state

    def run_layer(gx, whh, out_scr):
        # gx: (T*BP, 8H) hoisted input projection (+bias), interleaved layout.
        h = jnp.zeros((BP, H2), jnp.float32)
        c = jnp.zeros((BP, H2), jnp.float32)
        for s in range(T):                  # fully unrolled (T static, small)
            tf = s
            tb = T - 1 - s                  # in-kernel time reversal for bwd dir
            m_f = maskv[tf * BP:(tf + 1) * BP]
            m_b = maskv[tb * BP:(tb + 1) * BP]
            m2 = jnp.where(state_is_fwd, m_f, m_b)          # (BP, 2H)
            gx_t = jnp.where(gate_is_fwd,
                             gx[tf * BP:(tf + 1) * BP],
                             gx[tb * BP:(tb + 1) * BP])      # (BP, 8H)
            g = gx_t + jnp.dot(h, whh, preferred_element_type=jnp.float32)
            sg = jax.nn.sigmoid(g[:, :3 * H2])               # [i | f | o]
            gg = jnp.tanh(g[:, 3 * H2:])                     # g
            c_new = sg[:, H2:2 * H2] * c + sg[:, :H2] * gg
            h_new = sg[:, 2 * H2:3 * H2] * jnp.tanh(c_new)
            out = m2 * h_new                                 # zero at padded steps
            h = out + (1.0 - m2) * h                         # hold state thru pad
            c = m2 * c_new + (1.0 - m2) * c
            out_scr[tf * BP:(tf + 1) * BP, 0:H] = out[:, 0:H]
            out_scr[tb * BP:(tb + 1) * BP, H:H2] = out[:, H:H2]

    # ---- 2-layer bidirectional LSTM (input projections hoisted) ----
    gx1 = (jnp.dot(x_ref[...], wih1_ref[...], preferred_element_type=jnp.float32)
           + bias_ref[0:1, :])
    run_layer(gx1, whh1_ref[...], h1_ref)
    gx2 = (jnp.dot(h1_ref[...], wih2_ref[...], preferred_element_type=jnp.float32)
           + bias_ref[1:2, :])
    run_layer(gx2, whh2_ref[...], h2_ref)
    h2 = h2_ref[...]                                         # (T*BP, 2H)

    # ---- LayerNorm (gamma/beta folded into wtag / emit bias) + hidden2tag ----
    mean = jnp.mean(h2, axis=-1, keepdims=True)
    var = jnp.mean(jnp.square(h2 - mean), axis=-1, keepdims=True)
    y = (h2 - mean) * lax.rsqrt(var + 1e-5)

    trans = crf_ref[0:K, :]
    start = crf_ref[K:K + 1, :]
    end = crf_ref[K + 1:K + 2, :]
    emit_bias = crf_ref[K + 2:K + 3, :]
    emit = (jnp.dot(y, wtag_ref[...], preferred_element_type=jnp.float32)
            + emit_bias)                                     # (T*BP, K)

    # ---- CRF negative log-likelihood ----
    oh = oh_ref[...]
    tmax = jnp.max(trans, axis=0, keepdims=True)             # column-max shift
    exp_trans = jnp.exp(trans - tmax)                        # (K, K)

    # gold-path score terms vectorized over all timesteps (one matmul).
    em_r = jnp.sum(oh * emit, axis=-1, keepdims=True)        # (T*BP, 1)
    end_r = jnp.sum(oh * end, axis=-1, keepdims=True)        # (T*BP, 1)
    tr_r = jnp.sum(jnp.dot(oh[:TB - BP], trans, preferred_element_type=jnp.float32)
                   * oh[BP:], axis=-1, keepdims=True)        # ((T-1)*BP, 1)

    gold = (jnp.sum(start * oh[:BP], axis=-1, keepdims=True)
            + em_r[:BP] + il[:BP] * end_r[:BP])              # (BP, 1)
    alpha = start + emit[:BP]                                # (BP, K)

    for t in range(1, T):               # fully unrolled alpha recursion
        lo = t * BP
        m_t = maskv[lo:lo + BP]
        gold = (gold + m_t * (tr_r[lo - BP:lo] + em_r[lo:lo + BP])
                + il[lo:lo + BP] * end_r[lo:lo + BP])
        e_t = emit[lo:lo + BP]
        m_a = jnp.max(alpha, axis=-1, keepdims=True)
        ea = jnp.exp(alpha - m_a)                            # (BP, K)
        acc = jnp.dot(ea, exp_trans, preferred_element_type=jnp.float32)
        new_alpha = m_a + tmax + jnp.log(acc) + e_t
        alpha = m_t * new_alpha + (1.0 - m_t) * alpha

    final = alpha + end
    m_fin = jnp.max(final, axis=-1, keepdims=True)
    log_z = m_fin + jnp.log(jnp.sum(jnp.exp(final - m_fin), axis=-1, keepdims=True))
    out_ref[...] = log_z - gold


# -----------------------------------------------------------------------------
# Weight preparation (XLA, runs once under jit): permute torch gate order
# (i,f,g,o) -> (i,f,o,g), transpose, interleave fwd/bwd per gate, fold biases.
# -----------------------------------------------------------------------------
def _prep_direction(dp, H):
    idx = jnp.concatenate([jnp.arange(H), jnp.arange(H) + H,
                           jnp.arange(H) + 3 * H, jnp.arange(H) + 2 * H])
    w_ih = jnp.take(dp['w_ih'], idx, axis=0).T          # (in, 4H), gates (i,f,o,g)
    w_hh = jnp.take(dp['w_hh'], idx, axis=0).T          # (H, 4H)
    b = jnp.take(dp['b_ih'] + dp['b_hh'], idx)          # (4H,)
    return w_ih, w_hh, b


def _interleave_cols(a, b, H):
    # a, b: (..., 4H) in gate order (i,f,o,g) -> (..., 8H) with layout
    # [i_f i_b | f_f f_b | o_f o_b | g_f g_b]
    blocks = []
    for g in range(4):
        blocks.append(a[..., g * H:(g + 1) * H])
        blocks.append(b[..., g * H:(g + 1) * H])
    return jnp.concatenate(blocks, axis=-1)


def _prep_layer(lp, H):
    wif, whf, bf = _prep_direction(lp['fwd'], H)
    wib, whb, bb = _prep_direction(lp['bwd'], H)
    w_ih = _interleave_cols(wif, wib, H)                              # (in, 8H)
    zf = jnp.zeros_like(whf)
    zb = jnp.zeros_like(whb)
    w_hh = jnp.concatenate([_interleave_cols(whf, zb, H),             # rows = h_f
                            _interleave_cols(zf, whb, H)], axis=0)    # rows = h_b
    b = _interleave_cols(bf[None, :], bb[None, :], H)                 # (1, 8H)
    return w_ih, w_hh, b


# -----------------------------------------------------------------------------
# Parameter init (deterministic, shapes follow the torch module's __init__).
# -----------------------------------------------------------------------------
def init_params(key, vocab_size, embedding_dim, hidden_dim, tagset_size):
    H = hidden_dim // 2
    keys = iter(jax.random.split(key, 32))

    def nrm(shape, scale=0.1):
        return (scale * jax.random.normal(next(keys), shape)).astype(jnp.float32)

    params = {
        'embedding': nrm((vocab_size, embedding_dim), 1.0),
        'hidden2tag': nrm((tagset_size, hidden_dim)),        # Linear, bias=False
        'ln_gamma': jnp.ones((hidden_dim,), jnp.float32),
        'ln_beta': jnp.zeros((hidden_dim,), jnp.float32),
        'crf_trans': nrm((tagset_size, tagset_size)),
        'crf_start': nrm((tagset_size,)),
        'crf_end': nrm((tagset_size,)),
        'lstm': [],
    }
    for layer in range(2):
        in_dim = embedding_dim if layer == 0 else hidden_dim
        layer_p = {}
        for d in ('fwd', 'bwd'):
            layer_p[d] = {
                'w_ih': nrm((4 * H, in_dim)),
                'w_hh': nrm((4 * H, H)),
                'b_ih': nrm((4 * H,)),
                'b_hh': nrm((4 * H,)),
            }
        params['lstm'].append(layer_p)
    return params


# -----------------------------------------------------------------------------
# Forward pass (training branch): returns the CRF loss (mean NLL over batch).
# -----------------------------------------------------------------------------
def bilstm_crf_forward(params, sentence, tags, seq_len):
    B, T = sentence.shape
    K = params['crf_trans'].shape[0]
    E = params['embedding'].shape[1]
    hidden_dim = params['ln_gamma'].shape[0]
    H = hidden_dim // 2

    # Pad batch to the f32 sublane count so every per-step row slice in the
    # kernel is a sublane-aligned whole vreg; padded rows are masked (len 0).
    BP = ((B + 7) // 8) * 8
    pad = BP - B
    sentence_p = jnp.pad(sentence, ((0, pad), (0, 0)))
    tags_p = jnp.pad(tags, ((0, pad), (0, 0)))
    seq_len_p = jnp.pad(seq_len, (0, pad))

    mask_bt = (jnp.arange(T)[None, :] < seq_len_p[:, None]).astype(jnp.float32)
    mask_next = jnp.concatenate([mask_bt[:, 1:], jnp.zeros((BP, 1), jnp.float32)],
                                axis=1)
    is_last_bt = mask_bt * (1.0 - mask_next)

    # Embedding lookup on transposed tokens -> time-major activations directly.
    x_tbe = jnp.take(params['embedding'], sentence_p.T, axis=0)      # (T, BP, E)
    # TODO(synk): nn.Dropout(p=0.5, inplace=True) treated as identity (inference semantics).
    x_flat = x_tbe.reshape(T * BP, E)
    maskil = jnp.stack([mask_bt.T.reshape(T * BP),
                        is_last_bt.T.reshape(T * BP)], axis=1)       # (T*BP, 2)
    oh_flat = jax.nn.one_hot(tags_p.T, K, dtype=jnp.float32).reshape(T * BP, K)

    wih1, whh1, b1 = _prep_layer(params['lstm'][0], H)
    wih2, whh2, b2 = _prep_layer(params['lstm'][1], H)
    bias_pack = jnp.concatenate([b1, b2], axis=0)                    # (2, 8H)

    wtag = params['hidden2tag'].T                                    # (2H, K)
    wtag_g = params['ln_gamma'][:, None] * wtag                      # gamma fold
    emit_bias = (params['ln_beta'] @ wtag)[None, :]                  # beta fold
    crf_pack = jnp.concatenate([params['crf_trans'],
                                params['crf_start'][None, :],
                                params['crf_end'][None, :],
                                emit_bias], axis=0)                  # (K+3, K)

    nll = pl.pallas_call(
        _bilstm_crf_kernel,
        out_shape=jax.ShapeDtypeStruct((BP, 1), jnp.float32),
        in_specs=[_VMEM() for _ in range(10)],
        out_specs=_VMEM(),
        scratch_shapes=[pltpu.VMEM((T * BP, 2 * H), jnp.float32),
                        pltpu.VMEM((T * BP, 2 * H), jnp.float32)],
    )(x_flat, maskil, oh_flat, wih1, whh1, wih2, whh2,
      bias_pack, wtag_g, crf_pack)

    # TODO(synk): eval branch (CRF.viterbi_decode) not implemented; train path only.
    return jnp.mean(nll[:B, 0])                 # drop padded batch rows


if __name__ == "__main__":
    vocab_size, embedding_dim, hidden_dim, tagset_size = 50, 32, 32, 5
    B, T = 2, 8

    key = jax.random.PRNGKey(0)
    pkey, skey, tkey = jax.random.split(key, 3)
    params = init_params(pkey, vocab_size, embedding_dim, hidden_dim, tagset_size)

    sentence = jax.random.randint(skey, (B, T), 0, vocab_size, dtype=jnp.int32)
    seq_len = jnp.array([T, 5], dtype=jnp.int32)              # padded batch
    tags = jax.random.randint(tkey, (B, T), 0, tagset_size, dtype=jnp.int32)
    tags = tags * (jnp.arange(T)[None, :] < seq_len[:, None]).astype(jnp.int32)

    loss = jax.jit(bilstm_crf_forward)(params, sentence, tags, seq_len)
    jax.block_until_ready(loss)
    print("KERNEL_OK")
</pallas_src>

<mosaic_0001>
module attributes {stable_mosaic.version = 11 : i64} {
  func.func @_bilstm_crf_kernel(%arg0: memref<64x32xf32, #tpu.memory_space<vmem>>, %arg1: memref<64x2xf32, #tpu.memory_space<vmem>>, %arg2: memref<64x5xf32, #tpu.memory_space<vmem>>, %arg3: memref<32x128xf32, #tpu.memory_space<vmem>>, %arg4: memref<32x128xf32, #tpu.memory_space<vmem>>, %arg5: memref<32x128xf32, #tpu.memory_space<vmem>>, %arg6: memref<32x128xf32, #tpu.memory_space<vmem>>, %arg7: memref<2x128xf32, #tpu.memory_space<vmem>>, %arg8: memref<32x5xf32, #tpu.memory_space<vmem>>, %arg9: memref<8x5xf32, #tpu.memory_space<vmem>>, %arg10: memref<8x1xf32, #tpu.memory_space<vmem>>, %arg11: memref<64x32xf32, #tpu.memory_space<vmem>>, %arg12: memref<64x32xf32, #tpu.memory_space<vmem>>) attributes {dimension_semantics = [], scalar_prefetch = 0 : i64, scratch_operands = 2 : i64, tpu.core_type = #tpu.core_type<tc>} {
    %c0 = arith.constant 0 : index
    %c0_0 = arith.constant 0 : index
    %0 = vector.load %arg1[%c0, %c0_0] : memref<64x2xf32, #tpu.memory_space<vmem>>, vector<64x1xf32>
    %c0_1 = arith.constant 0 : index
    %c1 = arith.constant 1 : index
    %1 = vector.load %arg1[%c0_1, %c1] : memref<64x2xf32, #tpu.memory_space<vmem>>, vector<64x1xf32>
    %2 = tpu.iota {dimensions = array<i32: 1>} : vector<1x128xi32>
    %c32_i32 = arith.constant 32 : i32
    %c0_i32 = arith.constant 0 : i32
    %3 = arith.cmpi eq, %c32_i32, %c0_i32 : i32
    %c1_i32 = arith.constant 1 : i32
    %4 = arith.select %3, %c1_i32, %c32_i32 : i32
    %5 = vector.broadcast %4 : i32 to vector<1x128xi32>
    %6 = arith.remsi %2, %5 : vector<1x128xi32>
    %c0_i32_2 = arith.constant 0 : i32
    %7 = vector.broadcast %c0_i32_2 : i32 to vector<1x128xi32>
    %8 = arith.cmpi ne, %6, %7 : vector<1x128xi32>
    %c0_i32_3 = arith.constant 0 : i32
    %9 = vector.broadcast %c0_i32_3 : i32 to vector<1x128xi32>
    %10 = arith.cmpi slt, %6, %9 : vector<1x128xi32>
    %c0_i32_4 = arith.constant 0 : i32
    %11 = arith.cmpi slt, %4, %c0_i32_4 : i32
    %12 = vector.broadcast %11 : i1 to vector<1x128xi1>
    %13 = vector.broadcast %12 : vector<1x128xi1> to vector<1x128xi1>
    %14 = arith.xori %10, %13 : vector<1x128xi1>
    %15 = arith.andi %14, %8 : vector<1x128xi1>
    %16 = vector.broadcast %4 : i32 to vector<1x128xi32>
    %17 = arith.addi %6, %16 : vector<1x128xi32>
    %18 = arith.select %15, %17, %6 : vector<1x128xi1>, vector<1x128xi32>
    %c16_i32 = arith.constant 16 : i32
    %19 = vector.broadcast %c16_i32 : i32 to vector<1x128xi32>
    %20 = arith.cmpi slt, %18, %19 : vector<1x128xi32>
    %21 = tpu.iota {dimensions = array<i32: 1>} : vector<1x32xi32>
    %c16_i32_5 = arith.constant 16 : i32
    %22 = vector.broadcast %c16_i32_5 : i32 to vector<1x32xi32>
    %23 = arith.cmpi slt, %21, %22 : vector<1x32xi32>
    %c0_6 = arith.constant 0 : index
    %c0_7 = arith.constant 0 : index
    %24 = vector.load %arg0[%c0_6, %c0_7] : memref<64x32xf32, #tpu.memory_space<vmem>>, vector<64x32xf32>
    %c0_8 = arith.constant 0 : index
    %c0_9 = arith.constant 0 : index
    %25 = vector.load %arg3[%c0_8, %c0_9] : memref<32x128xf32, #tpu.memory_space<vmem>>, vector<32x128xf32>
    %cst = arith.constant dense<0.000000e+00> : vector<64x128xf32>
    %26 = tpu.matmul %24, %25, %cst {dimension_numbers = #tpu.dot_dimension_numbers<[1], [0], [0], [1], [0, 0, 1, 1], [], []>} : vector<64x32xf32>, vector<32x128xf32>, vector<64x128xf32> -> vector<64x128xf32>
    %c0_10 = arith.constant 0 : index
    %c0_11 = arith.constant 0 : index
    %27 = vector.load %arg7[%c0_10, %c0_11] : memref<2x128xf32, #tpu.memory_space<vmem>>, vector<1x128xf32>
    %28 = vector.broadcast %27 : vector<1x128xf32> to vector<64x128xf32>
    %29 = arith.addf %26, %28 : vector<64x128xf32>
    %c0_12 = arith.constant 0 : index
    %c0_13 = arith.constant 0 : index
    %30 = vector.load %arg4[%c0_12, %c0_13] : memref<32x128xf32, #tpu.memory_space<vmem>>, vector<32x128xf32>
    %cst_14 = arith.constant 0.000000e+00 : f32
    %31 = vector.broadcast %cst_14 : f32 to vector<8x32xf32>
    %cst_15 = arith.constant 0.000000e+00 : f32
    %32 = vector.broadcast %cst_15 : f32 to vector<8x32xf32>
    %33 = vector.extract_strided_slice %0 {offsets = [0, 0], sizes = [8, 1], strides = [1, 1]} : vector<64x1xf32> to vector<8x1xf32>
    %34 = vector.extract_strided_slice %0 {offsets = [56, 0], sizes = [8, 1], strides = [1, 1]} : vector<64x1xf32> to vector<8x1xf32>
    %35 = vector.shape_cast %23 : vector<1x32xi1> to vector<1x32xi1>
    %36 = vector.broadcast %35 : vector<1x32xi1> to vector<8x32xi1>
    %37 = vector.shape_cast %33 : vector<8x1xf32> to vector<8x1xf32>
    %38 = vector.broadcast %37 : vector<8x1xf32> to vector<8x32xf32>
    %39 = vector.shape_cast %34 : vector<8x1xf32> to vector<8x1xf32>
    %40 = vector.broadcast %39 : vector<8x1xf32> to vector<8x32xf32>
    %41 = arith.select %36, %38, %40 : vector<8x32xi1>, vector<8x32xf32>
    %42 = vector.extract_strided_slice %29 {offsets = [0, 0], sizes = [8, 128], strides = [1, 1]} : vector<64x128xf32> to vector<8x128xf32>
    %43 = vector.extract_strided_slice %29 {offsets = [56, 0], sizes = [8, 128], strides = [1, 1]} : vector<64x128xf32> to vector<8x128xf32>
    %44 = vector.shape_cast %20 : vector<1x128xi1> to vector<1x128xi1>
    %45 = vector.broadcast %44 : vector<1x128xi1> to vector<8x128xi1>
    %46 = arith.select %45, %42, %43 : vector<8x128xi1>, vector<8x128xf32>
    %cst_16 = arith.constant dense<0.000000e+00> : vector<8x128xf32>
    %47 = tpu.matmul %31, %30, %cst_16 {dimension_numbers = #tpu.dot_dimension_numbers<[1], [0], [0], [1], [0, 0, 1, 1], [], []>} : vector<8x32xf32>, vector<32x128xf32>, vector<8x128xf32> -> vector<8x128xf32>
    %48 = arith.addf %46, %47 : vector<8x128xf32>
    %49 = vector.extract_strided_slice %48 {offsets = [0, 0], sizes = [8, 96], strides = [1, 1]} : vector<8x128xf32> to vector<8x96xf32>
    %50 = arith.negf %49 : vector<8x96xf32>
    %51 = math.exp %50 : vector<8x96xf32>
    %cst_17 = arith.constant 1.000000e+00 : f32
    %52 = vector.broadcast %cst_17 : f32 to vector<8x96xf32>
    %53 = arith.addf %52, %51 : vector<8x96xf32>
    %54 = arith.divf %52, %53 : vector<8x96xf32>
    %55 = vector.extract_strided_slice %48 {offsets = [0, 96], sizes = [8, 32], strides = [1, 1]} : vector<8x128xf32> to vector<8x32xf32>
    %56 = math.tanh %55 : vector<8x32xf32>
    %57 = vector.extract_strided_slice %54 {offsets = [0, 32], sizes = [8, 32], strides = [1, 1]} : vector<8x96xf32> to vector<8x32xf32>
    %58 = arith.mulf %57, %32 : vector<8x32xf32>
    %59 = vector.extract_strided_slice %54 {offsets = [0, 0], sizes = [8, 32], strides = [1, 1]} : vector<8x96xf32> to vector<8x32xf32>
    %60 = arith.mulf %59, %56 : vector<8x32xf32>
    %61 = arith.addf %58, %60 : vector<8x32xf32>
    %62 = vector.extract_strided_slice %54 {offsets = [0, 64], sizes = [8, 32], strides = [1, 1]} : vector<8x96xf32> to vector<8x32xf32>
    %63 = math.tanh %61 : vector<8x32xf32>
    %64 = arith.mulf %62, %63 : vector<8x32xf32>
    %65 = arith.mulf %41, %64 : vector<8x32xf32>
    %cst_18 = arith.constant 1.000000e+00 : f32
    %66 = vector.broadcast %cst_18 : f32 to vector<8x32xf32>
    %67 = arith.subf %66, %41 : vector<8x32xf32>
    %68 = arith.mulf %67, %31 : vector<8x32xf32>
    %69 = arith.addf %65, %68 : vector<8x32xf32>
    %70 = arith.mulf %41, %61 : vector<8x32xf32>
    %cst_19 = arith.constant 1.000000e+00 : f32
    %71 = vector.broadcast %cst_19 : f32 to vector<8x32xf32>
    %72 = arith.subf %71, %41 : vector<8x32xf32>
    %73 = arith.mulf %72, %32 : vector<8x32xf32>
    %74 = arith.addf %70, %73 : vector<8x32xf32>
    %75 = vector.extract_strided_slice %65 {offsets = [0, 0], sizes = [8, 16], strides = [1, 1]} : vector<8x32xf32> to vector<8x16xf32>
    %c0_20 = arith.constant 0 : index
    %c0_21 = arith.constant 0 : index
    %76 = vector.load %arg11[%c0_20, %c0_21] : memref<64x32xf32, #tpu.memory_space<vmem>>, vector<8x16xf32>
    tpu.vector_store %arg11[%c0_20, %c0_21], %75 {strides = array<i32>} : memref<64x32xf32, #tpu.memory_space<vmem>>, vector<8x16xf32>,
    %77 = vector.extract_strided_slice %65 {offsets = [0, 16], sizes = [8, 16], strides = [1, 1]} : vector<8x32xf32> to vector<8x16xf32>
    %c56 = arith.constant 56 : index
    %c16 = arith.constant 16 : index
    %78 = vector.load %arg11[%c56, %c16] : memref<64x32xf32, #tpu.memory_space<vmem>>, vector<8x16xf32>
    tpu.vector_store %arg11[%c56, %c16], %77 {strides = array<i32>} : memref<64x32xf32, #tpu.memory_space<vmem>>, vector<8x16xf32>,
    %79 = vector.extract_strided_slice %0 {offsets = [8, 0], sizes = [8, 1], strides = [1, 1]} : vector<64x1xf32> to vector<8x1xf32>
    %80 = vector.extract_strided_slice %0 {offsets = [48, 0], sizes = [8, 1], strides = [1, 1]} : vector<64x1xf32> to vector<8x1xf32>
    %81 = vector.shape_cast %23 : vector<1x32xi1> to vector<1x32xi1>
    %82 = vector.broadcast %81 : vector<1x32xi1> to vector<8x32xi1>
    %83 = vector.shape_cast %79 : vector<8x1xf32> to vector<8x1xf32>
    %84 = vector.broadcast %83 : vector<8x1xf32> to vector<8x32xf32>
    %85 = vector.shape_cast %80 : vector<8x1xf32> to vector<8x1xf32>
    %86 = vector.broadcast %85 : vector<8x1xf32> to vector<8x32xf32>
    %87 = arith.select %82, %84, %86 : vector<8x32xi1>, vector<8x32xf32>
    %88 = vector.extract_strided_slice %29 {offsets = [8, 0], sizes = [8, 128], strides = [1, 1]} : vector<64x128xf32> to vector<8x128xf32>
    %89 = vector.extract_strided_slice %29 {offsets = [48, 0], sizes = [8, 128], strides = [1, 1]} : vector<64x128xf32> to vector<8x128xf32>
    %90 = vector.shape_cast %20 : vector<1x128xi1> to vector<1x128xi1>
    %91 = vector.broadcast %90 : vector<1x128xi1> to vector<8x128xi1>
    %92 = arith.select %91, %88, %89 : vector<8x128xi1>, vector<8x128xf32>
    %cst_22 = arith.constant dense<0.000000e+00> : vector<8x128xf32>
    %93 = tpu.matmul %69, %30, %cst_22 {dimension_numbers = #tpu.dot_dimension_numbers<[1], [0], [0], [1], [0, 0, 1, 1], [], []>} : vector<8x32xf32>, vector<32x128xf32>, vector<8x128xf32> -> vector<8x128xf32>
    %94 = arith.addf %92, %93 : vector<8x128xf32>
    %95 = vector.extract_strided_slice %94 {offsets = [0, 0], sizes = [8, 96], strides = [1, 1]} : vector<8x128xf32> to vector<8x96xf32>
    %96 = arith.negf %95 : vector<8x96xf32>
    %97 = math.exp %96 : vector<8x96xf32>
    %cst_23 = arith.constant 1.000000e+00 : f32
    %98 = vector.broadcast %cst_23 : f32 to vector<8x96xf32>
    %99 = arith.addf %98, %97 : vector<8x96xf32>
    %100 = arith.divf %98, %99 : vector<8x96xf32>
    %101 = vector.extract_strided_slice %94 {offsets = [0, 96], sizes = [8, 32], strides = [1, 1]} : vector<8x128xf32> to vector<8x32xf32>
    %102 = math.tanh %101 : vector<8x32xf32>
    %103 = vector.extract_strided_slice %100 {offsets = [0, 32], sizes = [8, 32], strides = [1, 1]} : vector<8x96xf32> to vector<8x32xf32>
    %104 = arith.mulf %103, %74 : vector<8x32xf32>
    %105 = vector.extract_strided_slice %100 {offsets = [0, 0], sizes = [8, 32], strides = [1, 1]} : vector<8x96xf32> to vector<8x32xf32>
    %106 = arith.mulf %105, %102 : vector<8x32xf32>
    %107 = arith.addf %104, %106 : vector<8x32xf32>
    %108 = vector.extract_strided_slice %100 {offsets = [0, 64], sizes = [8, 32], strides = [1, 1]} : vector<8x96xf32> to vector<8x32xf32>
    %109 = math.tanh %107 : vector<8x32xf32>
    %110 = arith.mulf %108, %109 : vector<8x32xf32>
    %111 = arith.mulf %87, %110 : vector<8x32xf32>
    %cst_24 = arith.constant 1.000000e+00 : f32
    %112 = vector.broadcast %cst_24 : f32 to vector<8x32xf32>
    %113 = arith.subf %112, %87 : vector<8x32xf32>
    %114 = arith.mulf %113, %69 : vector<8x32xf32>
    %115 = arith.addf %111, %114 : vector<8x32xf32>
    %116 = arith.mulf %87, %107 : vector<8x32xf32>
    %cst_25 = arith.constant 1.000000e+00 : f32
    %117 = vector.broadcast %cst_25 : f32 to vector<8x32xf32>
    %118 = arith.subf %117, %87 : vector<8x32xf32>
    %119 = arith.mulf %118, %74 : vector<8x32xf32>
    %120 = arith.addf %116, %119 : vector<8x32xf32>
    %121 = vector.extract_strided_slice %111 {offsets = [0, 0], sizes = [8, 16], strides = [1, 1]} : vector<8x32xf32> to vector<8x16xf32>
    %c8 = arith.constant 8 : index
    %c0_26 = arith.constant 0 : index
    %122 = vector.load %arg11[%c8, %c0_26] : memref<64x32xf32, #tpu.memory_space<vmem>>, vector<8x16xf32>
    tpu.vector_store %arg11[%c8, %c0_26], %121 {strides = array<i32>} : memref<64x32xf32, #tpu.memory_space<vmem>>, vector<8x16xf32>,
    %123 = vector.extract_strided_slice %111 {offsets = [0, 16], sizes = [8, 16], strides = [1, 1]} : vector<8x32xf32> to vector<8x16xf32>
    %c48 = arith.constant 48 : index
    %c16_27 = arith.constant 16 : index
    %124 = vector.load %arg11[%c48, %c16_27] : memref<64x32xf32, #tpu.memory_space<vmem>>, vector<8x16xf32>
    tpu.vector_store %arg11[%c48, %c16_27], %123 {strides = array<i32>} : memref<64x32xf32, #tpu.memory_space<vmem>>, vector<8x16xf32>,
    %125 = vector.extract_strided_slice %0 {offsets = [16, 0], sizes = [8, 1], strides = [1, 1]} : vector<64x1xf32> to vector<8x1xf32>
    %126 = vector.extract_strided_slice %0 {offsets = [40, 0], sizes = [8, 1], strides = [1, 1]} : vector<64x1xf32> to vector<8x1xf32>
    %127 = vector.shape_cast %23 : vector<1x32xi1> to vector<1x32xi1>
    %128 = vector.broadcast %127 : vector<1x32xi1> to vector<8x32xi1>
    %129 = vector.shape_cast %125 : vector<8x1xf32> to vector<8x1xf32>
    %130 = vector.broadcast %129 : vector<8x1xf32> to vector<8x32xf32>
    %131 = vector.shape_cast %126 : vector<8x1xf32> to vector<8x1xf32>
    %132 = vector.broadcast %131 : vector<8x1xf32> to vector<8x32xf32>
    %133 = arith.select %128, %130, %132 : vector<8x32xi1>, vector<8x32xf32>
    %134 = vector.extract_strided_slice %29 {offsets = [16, 0], sizes = [8, 128], strides = [1, 1]} : vector<64x128xf32> to vector<8x128xf32>
    %135 = vector.extract_strided_slice %29 {offsets = [40, 0], sizes = [8, 128], strides = [1, 1]} : vector<64x128xf32> to vector<8x128xf32>
    %136 = vector.shape_cast %20 : vector<1x128xi1> to vector<1x128xi1>
    %137 = vector.broadcast %136 : vector<1x128xi1> to vector<8x128xi1>
    %138 = arith.select %137, %134, %135 : vector<8x128xi1>, vector<8x128xf32>
    %cst_28 = arith.constant dense<0.000000e+00> : vector<8x128xf32>
    %139 = tpu.matmul %115, %30, %cst_28 {dimension_numbers = #tpu.dot_dimension_numbers<[1], [0], [0], [1], [0, 0, 1, 1], [], []>} : vector<8x32xf32>, vector<32x128xf32>, vector<8x128xf32> -> vector<8x128xf32>
    %140 = arith.addf %138, %139 : vector<8x128xf32>
    %141 = vector.extract_strided_slice %140 {offsets = [0, 0], sizes = [8, 96], strides = [1, 1]} : vector<8x128xf32> to vector<8x96xf32>
    %142 = arith.negf %141 : vector<8x96xf32>
    %143 = math.exp %142 : vector<8x96xf32>
    %cst_29 = arith.constant 1.000000e+00 : f32
    %144 = vector.broadcast %cst_29 : f32 to vector<8x96xf32>
    %145 = arith.addf %144, %143 : vector<8x96xf32>
    %146 = arith.divf %144, %145 : vector<8x96xf32>
    %147 = vector.extract_strided_slice %140 {offsets = [0, 96], sizes = [8, 32], strides = [1, 1]} : vector<8x128xf32> to vector<8x32xf32>
    %148 = math.tanh %147 : vector<8x32xf32>
    %149 = vector.extract_strided_slice %146 {offsets = [0, 32], sizes = [8, 32], strides = [1, 1]} : vector<8x96xf32> to vector<8x32xf32>
    %150 = arith.mulf %149, %120 : vector<8x32xf32>
    %151 = vector.extract_strided_slice %146 {offsets = [0, 0], sizes = [8, 32], strides = [1, 1]} : vector<8x96xf32> to vector<8x32xf32>
    %152 = arith.mulf %151, %148 : vector<8x32xf32>
    %153 = arith.addf %150, %152 : vector<8x32xf32>
    %154 = vector.extract_strided_slice %146 {offsets = [0, 64], sizes = [8, 32], strides = [1, 1]} : vector<8x96xf32> to vector<8x32xf32>
    %155 = math.tanh %153 : vector<8x32xf32>
    %156 = arith.mulf %154, %155 : vector<8x32xf32>
    %157 = arith.mulf %133, %156 : vector<8x32xf32>
    %cst_30 = arith.constant 1.000000e+00 : f32
    %158 = vector.broadcast %cst_30 : f32 to vector<8x32xf32>
    %159 = arith.subf %158, %133 : vector<8x32xf32>
    %160 = arith.mulf %159, %115 : vector<8x32xf32>
    %161 = arith.addf %157, %160 : vector<8x32xf32>
    %162 = arith.mulf %133, %153 : vector<8x32xf32>
    %cst_31 = arith.constant 1.000000e+00 : f32
    %163 = vector.broadcast %cst_31 : f32 to vector<8x32xf32>
    %164 = arith.subf %163, %133 : vector<8x32xf32>
    %165 = arith.mulf %164, %120 : vector<8x32xf32>
    %166 = arith.addf %162, %165 : vector<8x32xf32>
    %167 = vector.extract_strided_slice %157 {offsets = [0, 0], sizes = [8, 16], strides = [1, 1]} : vector<8x32xf32> to vector<8x16xf32>
    %c16_32 = arith.constant 16 : index
    %c0_33 = arith.constant 0 : index
    %168 = vector.load %arg11[%c16_32, %c0_33] : memref<64x32xf32, #tpu.memory_space<vmem>>, vector<8x16xf32>
    tpu.vector_store %arg11[%c16_32, %c0_33], %167 {strides = array<i32>} : memref<64x32xf32, #tpu.memory_space<vmem>>, vector<8x16xf32>,
    %169 = vector.extract_strided_slice %157 {offsets = [0, 16], sizes = [8, 16], strides = [1, 1]} : vector<8x32xf32> to vector<8x16xf32>
    %c40 = arith.constant 40 : index
    %c16_34 = arith.constant 16 : index
    %170 = vector.load %arg11[%c40, %c16_34] : memref<64x32xf32, #tpu.memory_space<vmem>>, vector<8x16xf32>
    tpu.vector_store %arg11[%c40, %c16_34], %169 {strides = array<i32>} : memref<64x32xf32, #tpu.memory_space<vmem>>, vector<8x16xf32>,
    %171 = vector.extract_strided_slice %0 {offsets = [24, 0], sizes = [8, 1], strides = [1, 1]} : vector<64x1xf32> to vector<8x1xf32>
    %172 = vector.extract_strided_slice %0 {offsets = [32, 0], sizes = [8, 1], strides = [1, 1]} : vector<64x1xf32> to vector<8x1xf32>
    %173 = vector.shape_cast %23 : vector<1x32xi1> to vector<1x32xi1>
    %174 = vector.broadcast %173 : vector<1x32xi1> to vector<8x32xi1>
    %175 = vector.shape_cast %171 : vector<8x1xf32> to vector<8x1xf32>
    %176 = vector.broadcast %175 : vector<8x1xf32> to vector<8x32xf32>
    %177 = vector.shape_cast %172 : vector<8x1xf32> to vector<8x1xf32>
    %178 = vector.broadcast %177 : vector<8x1xf32> to vector<8x32xf32>
    %179 = arith.select %174, %176, %178 : vector<8x32xi1>, vector<8x32xf32>
    %180 = vector.extract_strided_slice %29 {offsets = [24, 0], sizes = [8, 128], strides = [1, 1]} : vector<64x128xf32> to vector<8x128xf32>
    %181 = vector.extract_strided_slice %29 {offsets = [32, 0], sizes = [8, 128], strides = [1, 1]} : vector<64x128xf32> to vector<8x128xf32>
    %182 = vector.shape_cast %20 : vector<1x128xi1> to vector<1x128xi1>
    %183 = vector.broadcast %182 : vector<1x128xi1> to vector<8x128xi1>
    %184 = arith.select %183, %180, %181 : vector<8x128xi1>, vector<8x128xf32>
    %cst_35 = arith.constant dense<0.000000e+00> : vector<8x128xf32>
    %185 = tpu.matmul %161, %30, %cst_35 {dimension_numbers = #tpu.dot_dimension_numbers<[1], [0], [0], [1], [0, 0, 1, 1], [], []>} : vector<8x32xf32>, vector<32x128xf32>, vector<8x128xf32> -> vector<8x128xf32>
    %186 = arith.addf %184, %185 : vector<8x128xf32>
    %187 = vector.extract_strided_slice %186 {offsets = [0, 0], sizes = [8, 96], strides = [1, 1]} : vector<8x128xf32> to vector<8x96xf32>
    %188 = arith.negf %187 : vector<8x96xf32>
    %189 = math.exp %188 : vector<8x96xf32>
    %cst_36 = arith.constant 1.000000e+00 : f32
    %190 = vector.broadcast %cst_36 : f32 to vector<8x96xf32>
    %191 = arith.addf %190, %189 : vector<8x96xf32>
    %192 = arith.divf %190, %191 : vector<8x96xf32>
    %193 = vector.extract_strided_slice %186 {offsets = [0, 96], sizes = [8, 32], strides = [1, 1]} : vector<8x128xf32> to vector<8x32xf32>
    %194 = math.tanh %193 : vector<8x32xf32>
    %195 = vector.extract_strided_slice %192 {offsets = [0, 32], sizes = [8, 32], strides = [1, 1]} : vector<8x96xf32> to vector<8x32xf32>
    %196 = arith.mulf %195, %166 : vector<8x32xf32>
    %197 = vector.extract_strided_slice %192 {offsets = [0, 0], sizes = [8, 32], strides = [1, 1]} : vector<8x96xf32> to vector<8x32xf32>
    %198 = arith.mulf %197, %194 : vector<8x32xf32>
    %199 = arith.addf %196, %198 : vector<8x32xf32>
    %200 = vector.extract_strided_slice %192 {offsets = [0, 64], sizes = [8, 32], strides = [1, 1]} : vector<8x96xf32> to vector<8x32xf32>
    %201 = math.tanh %199 : vector<8x32xf32>
    %202 = arith.mulf %200, %201 : vector<8x32xf32>
    %203 = arith.mulf %179, %202 : vector<8x32xf32>
    %cst_37 = arith.constant 1.000000e+00 : f32
    %204 = vector.broadcast %cst_37 : f32 to vector<8x32xf32>
    %205 = arith.subf %204, %179 : vector<8x32xf32>
    %206 = arith.mulf %205, %161 : vector<8x32xf32>
    %207 = arith.addf %203, %206 : vector<8x32xf32>
    %208 = arith.mulf %179, %199 : vector<8x32xf32>
    %cst_38 = arith.constant 1.000000e+00 : f32
    %209 = vector.broadcast %cst_38 : f32 to vector<8x32xf32>
    %210 = arith.subf %209, %179 : vector<8x32xf32>
    %211 = arith.mulf %210, %166 : vector<8x32xf32>
    %212 = arith.addf %208, %211 : vector<8x32xf32>
    %213 = vector.extract_strided_slice %203 {offsets = [0, 0], sizes = [8, 16], strides = [1, 1]} : vector<8x32xf32> to vector<8x16xf32>
    %c24 = arith.constant 24 : index
    %c0_39 = arith.constant 0 : index
    %214 = vector.load %arg11[%c24, %c0_39] : memref<64x32xf32, #tpu.memory_space<vmem>>, vector<8x16xf32>
    tpu.vector_store %arg11[%c24, %c0_39], %213 {strides = array<i32>} : memref<64x32xf32, #tpu.memory_space<vmem>>, vector<8x16xf32>,
    %215 = vector.extract_strided_slice %203 {offsets = [0, 16], sizes = [8, 16], strides = [1, 1]} : vector<8x32xf32> to vector<8x16xf32>
    %c32 = arith.constant 32 : index
    %c16_40 = arith.constant 16 : index
    %216 = vector.load %arg11[%c32, %c16_40] : memref<64x32xf32, #tpu.memory_space<vmem>>, vector<8x16xf32>
    tpu.vector_store %arg11[%c32, %c16_40], %215 {strides = array<i32>} : memref<64x32xf32, #tpu.memory_space<vmem>>, vector<8x16xf32>,
    %217 = vector.extract_strided_slice %0 {offsets = [32, 0], sizes = [8, 1], strides = [1, 1]} : vector<64x1xf32> to vector<8x1xf32>
    %218 = vector.extract_strided_slice %0 {offsets = [24, 0], sizes = [8, 1], strides = [1, 1]} : vector<64x1xf32> to vector<8x1xf32>
    %219 = vector.shape_cast %23 : vector<1x32xi1> to vector<1x32xi1>
    %220 = vector.broadcast %219 : vector<1x32xi1> to vector<8x32xi1>
    %221 = vector.shape_cast %217 : vector<8x1xf32> to vector<8x1xf32>
    %222 = vector.broadcast %221 : vector<8x1xf32> to vector<8x32xf32>
    %223 = vector.shape_cast %218 : vector<8x1xf32> to vector<8x1xf32>
    %224 = vector.broadcast %223 : vector<8x1xf32> to vector<8x32xf32>
    %225 = arith.select %220, %222, %224 : vector<8x32xi1>, vector<8x32xf32>
    %226 = vector.extract_strided_slice %29 {offsets = [32, 0], sizes = [8, 128], strides = [1, 1]} : vector<64x128xf32> to vector<8x128xf32>
    %227 = vector.extract_strided_slice %29 {offsets = [24, 0], sizes = [8, 128], strides = [1, 1]} : vector<64x128xf32> to vector<8x128xf32>
    %228 = vector.shape_cast %20 : vector<1x128xi1> to vector<1x128xi1>
    %229 = vector.broadcast %228 : vector<1x128xi1> to vector<8x128xi1>
    %230 = arith.select %229, %226, %227 : vector<8x128xi1>, vector<8x128xf32>
    %cst_41 = arith.constant dense<0.000000e+00> : vector<8x128xf32>
    %231 = tpu.matmul %207, %30, %cst_41 {dimension_numbers = #tpu.dot_dimension_numbers<[1], [0], [0], [1], [0, 0, 1, 1], [], []>} : vector<8x32xf32>, vector<32x128xf32>, vector<8x128xf32> -> vector<8x128xf32>
    %232 = arith.addf %230, %231 : vector<8x128xf32>
    %233 = vector.extract_strided_slice %232 {offsets = [0, 0], sizes = [8, 96], strides = [1, 1]} : vector<8x128xf32> to vector<8x96xf32>
    %234 = arith.negf %233 : vector<8x96xf32>
    %235 = math.exp %234 : vector<8x96xf32>
    %cst_42 = arith.constant 1.000000e+00 : f32
    %236 = vector.broadcast %cst_42 : f32 to vector<8x96xf32>
    %237 = arith.addf %236, %235 : vector<8x96xf32>
    %238 = arith.divf %236, %237 : vector<8x96xf32>
    %239 = vector.extract_strided_slice %232 {offsets = [0, 96], sizes = [8, 32], strides = [1, 1]} : vector<8x128xf32> to vector<8x32xf32>
    %240 = math.tanh %239 : vector<8x32xf32>
    %241 = vector.extract_strided_slice %238 {offsets = [0, 32], sizes = [8, 32], strides = [1, 1]} : vector<8x96xf32> to vector<8x32xf32>
    %242 = arith.mulf %241, %212 : vector<8x32xf32>
    %243 = vector.extract_strided_slice %238 {offsets = [0, 0], sizes = [8, 32], strides = [1, 1]} : vector<8x96xf32> to vector<8x32xf32>
    %244 = arith.mulf %243, %240 : vector<8x32xf32>
    %245 = arith.addf %242, %244 : vector<8x32xf32>
    %246 = vector.extract_strided_slice %238 {offsets = [0, 64], sizes = [8, 32], strides = [1, 1]} : vector<8x96xf32> to vector<8x32xf32>
    %247 = math.tanh %245 : vector<8x32xf32>
    %248 = arith.mulf %246, %247 : vector<8x32xf32>
    %249 = arith.mulf %225, %248 : vector<8x32xf32>
    %cst_43 = arith.constant 1.000000e+00 : f32
    %250 = vector.broadcast %cst_43 : f32 to vector<8x32xf32>
    %251 = arith.subf %250, %225 : vector<8x32xf32>
    %252 = arith.mulf %251, %207 : vector<8x32xf32>
    %253 = arith.addf %249, %252 : vector<8x32xf32>
    %254 = arith.mulf %225, %245 : vector<8x32xf32>
    %cst_44 = arith.constant 1.000000e+00 : f32
    %255 = vector.broadcast %cst_44 : f32 to vector<8x32xf32>
    %256 = arith.subf %255, %225 : vector<8x32xf32>
    %257 = arith.mulf %256, %212 : vector<8x32xf32>
    %258 = arith.addf %254, %257 : vector<8x32xf32>
    %259 = vector.extract_strided_slice %249 {offsets = [0, 0], sizes = [8, 16], strides = [1, 1]} : vector<8x32xf32> to vector<8x16xf32>
    %c32_45 = arith.constant 32 : index
    %c0_46 = arith.constant 0 : index
    %260 = vector.load %arg11[%c32_45, %c0_46] : memref<64x32xf32, #tpu.memory_space<vmem>>, vector<8x16xf32>
    tpu.vector_store %arg11[%c32_45, %c0_46], %259 {strides = array<i32>} : memref<64x32xf32, #tpu.memory_space<vmem>>, vector<8x16xf32>,
    %261 = vector.extract_strided_slice %249 {offsets = [0, 16], sizes = [8, 16], strides = [1, 1]} : vector<8x32xf32> to vector<8x16xf32>
    %c24_47 = arith.constant 24 : index
    %c16_48 = arith.constant 16 : index
    %262 = vector.load %arg11[%c24_47, %c16_48] : memref<64x32xf32, #tpu.memory_space<vmem>>, vector<8x16xf32>
    tpu.vector_store %arg11[%c24_47, %c16_48], %261 {strides = array<i32>} : memref<64x32xf32, #tpu.memory_space<vmem>>, vector<8x16xf32>,
    %263 = vector.extract_strided_slice %0 {offsets = [40, 0], sizes = [8, 1], strides = [1, 1]} : vector<64x1xf32> to vector<8x1xf32>
    %264 = vector.extract_strided_slice %0 {offsets = [16, 0], sizes = [8, 1], strides = [1, 1]} : vector<64x1xf32> to vector<8x1xf32>
    %265 = vector.shape_cast %23 : vector<1x32xi1> to vector<1x32xi1>
    %266 = vector.broadcast %265 : vector<1x32xi1> to vector<8x32xi1>
    %267 = vector.shape_cast %263 : vector<8x1xf32> to vector<8x1xf32>
    %268 = vector.broadcast %267 : vector<8x1xf32> to vector<8x32xf32>
    %269 = vector.shape_cast %264 : vector<8x1xf32> to vector<8x1xf32>
    %270 = vector.broadcast %269 : vector<8x1xf32> to vector<8x32xf32>
    %271 = arith.select %266, %268, %270 : vector<8x32xi1>, vector<8x32xf32>
    %272 = vector.extract_strided_slice %29 {offsets = [40, 0], sizes = [8, 128], strides = [1, 1]} : vector<64x128xf32> to vector<8x128xf32>
    %273 = vector.extract_strided_slice %29 {offsets = [16, 0], sizes = [8, 128], strides = [1, 1]} : vector<64x128xf32> to vector<8x128xf32>
    %274 = vector.shape_cast %20 : vector<1x128xi1> to vector<1x128xi1>
    %275 = vector.broadcast %274 : vector<1x128xi1> to vector<8x128xi1>
    %276 = arith.select %275, %272, %273 : vector<8x128xi1>, vector<8x128xf32>
    %cst_49 = arith.constant dense<0.000000e+00> : vector<8x128xf32>
    %277 = tpu.matmul %253, %30, %cst_49 {dimension_numbers = #tpu.dot_dimension_numbers<[1], [0], [0], [1], [0, 0, 1, 1], [], []>} : vector<8x32xf32>, vector<32x128xf32>, vector<8x128xf32> -> vector<8x128xf32>
    %278 = arith.addf %276, %277 : vector<8x128xf32>
    %279 = vector.extract_strided_slice %278 {offsets = [0, 0], sizes = [8, 96], strides = [1, 1]} : vector<8x128xf32> to vector<8x96xf32>
    %280 = arith.negf %279 : vector<8x96xf32>
    %281 = math.exp %280 : vector<8x96xf32>
    %cst_50 = arith.constant 1.000000e+00 : f32
    %282 = vector.broadcast %cst_50 : f32 to vector<8x96xf32>
    %283 = arith.addf %282, %281 : vector<8x96xf32>
    %284 = arith.divf %282, %283 : vector<8x96xf32>
    %285 = vector.extract_strided_slice %278 {offsets = [0, 96], sizes = [8, 32], strides = [1, 1]} : vector<8x128xf32> to vector<8x32xf32>
    %286 = math.tanh %285 : vector<8x32xf32>
    %287 = vector.extract_strided_slice %284 {offsets = [0, 32], sizes = [8, 32], strides = [1, 1]} : vector<8x96xf32> to vector<8x32xf32>
    %288 = arith.mulf %287, %258 : vector<8x32xf32>
    %289 = vector.extract_strided_slice %284 {offsets = [0, 0], sizes = [8, 32], strides = [1, 1]} : vector<8x96xf32> to vector<8x32xf32>
    %290 = arith.mulf %289, %286 : vector<8x32xf32>
    %291 = arith.addf %288, %290 : vector<8x32xf32>
    %292 = vector.extract_strided_slice %284 {offsets = [0, 64], sizes = [8, 32], strides = [1, 1]} : vector<8x96xf32> to vector<8x32xf32>
    %293 = math.tanh %291 : vector<8x32xf32>
    %294 = arith.mulf %292, %293 : vector<8x32xf32>
    %295 = arith.mulf %271, %294 : vector<8x32xf32>
    %cst_51 = arith.constant 1.000000e+00 : f32
    %296 = vector.broadcast %cst_51 : f32 to vector<8x32xf32>
    %297 = arith.subf %296, %271 : vector<8x32xf32>
    %298 = arith.mulf %297, %253 : vector<8x32xf32>
    %299 = arith.addf %295, %298 : vector<8x32xf32>
    %300 = arith.mulf %271, %291 : vector<8x32xf32>
    %cst_52 = arith.constant 1.000000e+00 : f32
    %301 = vector.broadcast %cst_52 : f32 to vector<8x32xf32>
    %302 = arith.subf %301, %271 : vector<8x32xf32>
    %303 = arith.mulf %302, %258 : vector<8x32xf32>
    %304 = arith.addf %300, %303 : vector<8x32xf32>
    %305 = vector.extract_strided_slice %295 {offsets = [0, 0], sizes = [8, 16], strides = [1, 1]} : vector<8x32xf32> to vector<8x16xf32>
    %c40_53 = arith.constant 40 : index
    %c0_54 = arith.constant 0 : index
    %306 = vector.load %arg11[%c40_53, %c0_54] : memref<64x32xf32, #tpu.memory_space<vmem>>, vector<8x16xf32>
    tpu.vector_store %arg11[%c40_53, %c0_54], %305 {strides = array<i32>} : memref<64x32xf32, #tpu.memory_space<vmem>>, vector<8x16xf32>,
    %307 = vector.extract_strided_slice %295 {offsets = [0, 16], sizes = [8, 16], strides = [1, 1]} : vector<8x32xf32> to vector<8x16xf32>
    %c16_55 = arith.constant 16 : index
    %c16_56 = arith.constant 16 : index
    %308 = vector.load %arg11[%c16_55, %c16_56] : memref<64x32xf32, #tpu.memory_space<vmem>>, vector<8x16xf32>
    tpu.vector_store %arg11[%c16_55, %c16_56], %307 {strides = array<i32>} : memref<64x32xf32, #tpu.memory_space<vmem>>, vector<8x16xf32>,
    %309 = vector.extract_strided_slice %0 {offsets = [48, 0], sizes = [8, 1], strides = [1, 1]} : vector<64x1xf32> to vector<8x1xf32>
    %310 = vector.extract_strided_slice %0 {offsets = [8, 0], sizes = [8, 1], strides = [1, 1]} : vector<64x1xf32> to vector<8x1xf32>
    %311 = vector.shape_cast %23 : vector<1x32xi1> to vector<1x32xi1>
    %312 = vector.broadcast %311 : vector<1x32xi1> to vector<8x32xi1>
    %313 = vector.shape_cast %309 : vector<8x1xf32> to vector<8x1xf32>
    %314 = vector.broadcast %313 : vector<8x1xf32> to vector<8x32xf32>
    %315 = vector.shape_cast %310 : vector<8x1xf32> to vector<8x1xf32>
    %316 = vector.broadcast %315 : vector<8x1xf32> to vector<8x32xf32>
    %317 = arith.select %312, %314, %316 : vector<8x32xi1>, vector<8x32xf32>
    %318 = vector.extract_strided_slice %29 {offsets = [48, 0], sizes = [8, 128], strides = [1, 1]} : vector<64x128xf32> to vector<8x128xf32>
    %319 = vector.extract_strided_slice %29 {offsets = [8, 0], sizes = [8, 128], strides = [1, 1]} : vector<64x128xf32> to vector<8x128xf32>
    %320 = vector.shape_cast %20 : vector<1x128xi1> to vector<1x128xi1>
    %321 = vector.broadcast %320 : vector<1x128xi1> to vector<8x128xi1>
    %322 = arith.select %321, %318, %319 : vector<8x128xi1>, vector<8x128xf32>
    %cst_57 = arith.constant dense<0.000000e+00> : vector<8x128xf32>
    %323 = tpu.matmul %299, %30, %cst_57 {dimension_numbers = #tpu.dot_dimension_numbers<[1], [0], [0], [1], [0, 0, 1, 1], [], []>} : vector<8x32xf32>, vector<32x128xf32>, vector<8x128xf32> -> vector<8x128xf32>
    %324 = arith.addf %322, %323 : vector<8x128xf32>
    %325 = vector.extract_strided_slice %324 {offsets = [0, 0], sizes = [8, 96], strides = [1, 1]} : vector<8x128xf32> to vector<8x96xf32>
    %326 = arith.negf %325 : vector<8x96xf32>
    %327 = math.exp %326 : vector<8x96xf32>
    %cst_58 = arith.constant 1.000000e+00 : f32
    %328 = vector.broadcast %cst_58 : f32 to vector<8x96xf32>
    %329 = arith.addf %328, %327 : vector<8x96xf32>
    %330 = arith.divf %328, %329 : vector<8x96xf32>
    %331 = vector.extract_strided_slice %324 {offsets = [0, 96], sizes = [8, 32], strides = [1, 1]} : vector<8x128xf32> to vector<8x32xf32>
    %332 = math.tanh %331 : vector<8x32xf32>
    %333 = vector.extract_strided_slice %330 {offsets = [0, 32], sizes = [8, 32], strides = [1, 1]} : vector<8x96xf32> to vector<8x32xf32>
    %334 = arith.mulf %333, %304 : vector<8x32xf32>
    %335 = vector.extract_strided_slice %330 {offsets = [0, 0], sizes = [8, 32], strides = [1, 1]} : vector<8x96xf32> to vector<8x32xf32>
    %336 = arith.mulf %335, %332 : vector<8x32xf32>
    %337 = arith.addf %334, %336 : vector<8x32xf32>
    %338 = vector.extract_strided_slice %330 {offsets = [0, 64], sizes = [8, 32], strides = [1, 1]} : vector<8x96xf32> to vector<8x32xf32>
    %339 = math.tanh %337 : vector<8x32xf32>
    %340 = arith.mulf %338, %339 : vector<8x32xf32>
    %341 = arith.mulf %317, %340 : vector<8x32xf32>
    %cst_59 = arith.constant 1.000000e+00 : f32
    %342 = vector.broadcast %cst_59 : f32 to vector<8x32xf32>
    %343 = arith.subf %342, %317 : vector<8x32xf32>
    %344 = arith.mulf %343, %299 : vector<8x32xf32>
    %345 = arith.addf %341, %344 : vector<8x32xf32>
    %346 = arith.mulf %317, %337 : vector<8x32xf32>
    %cst_60 = arith.constant 1.000000e+00 : f32
    %347 = vector.broadcast %cst_60 : f32 to vector<8x32xf32>
    %348 = arith.subf %347, %317 : vector<8x32xf32>
    %349 = arith.mulf %348, %304 : vector<8x32xf32>
    %350 = arith.addf %346, %349 : vector<8x32xf32>
    %351 = vector.extract_strided_slice %341 {offsets = [0, 0], sizes = [8, 16], strides = [1, 1]} : vector<8x32xf32> to vector<8x16xf32>
    %c48_61 = arith.constant 48 : index
    %c0_62 = arith.constant 0 : index
    %352 = vector.load %arg11[%c48_61, %c0_62] : memref<64x32xf32, #tpu.memory_space<vmem>>, vector<8x16xf32>
    tpu.vector_store %arg11[%c48_61, %c0_62], %351 {strides = array<i32>} : memref<64x32xf32, #tpu.memory_space<vmem>>, vector<8x16xf32>,
    %353 = vector.extract_strided_slice %341 {offsets = [0, 16], sizes = [8, 16], strides = [1, 1]} : vector<8x32xf32> to vector<8x16xf32>
    %c8_63 = arith.constant 8 : index
    %c16_64 = arith.constant 16 : index
    %354 = vector.load %arg11[%c8_63, %c16_64] : memref<64x32xf32, #tpu.memory_space<vmem>>, vector<8x16xf32>
    tpu.vector_store %arg11[%c8_63, %c16_64], %353 {strides = array<i32>} : memref<64x32xf32, #tpu.memory_space<vmem>>, vector<8x16xf32>,
    %355 = vector.extract_strided_slice %0 {offsets = [56, 0], sizes = [8, 1], strides = [1, 1]} : vector<64x1xf32> to vector<8x1xf32>
    %356 = vector.extract_strided_slice %0 {offsets = [0, 0], sizes = [8, 1], strides = [1, 1]} : vector<64x1xf32> to vector<8x1xf32>
    %357 = vector.shape_cast %23 : vector<1x32xi1> to vector<1x32xi1>
    %358 = vector.broadcast %357 : vector<1x32xi1> to vector<8x32xi1>
    %359 = vector.shape_cast %355 : vector<8x1xf32> to vector<8x1xf32>
    %360 = vector.broadcast %359 : vector<8x1xf32> to vector<8x32xf32>
    %361 = vector.shape_cast %356 : vector<8x1xf32> to vector<8x1xf32>
    %362 = vector.broadcast %361 : vector<8x1xf32> to vector<8x32xf32>
    %363 = arith.select %358, %360, %362 : vector<8x32xi1>, vector<8x32xf32>
    %364 = vector.extract_strided_slice %29 {offsets = [56, 0], sizes = [8, 128], strides = [1, 1]} : vector<64x128xf32> to vector<8x128xf32>
    %365 = vector.extract_strided_slice %29 {offsets = [0, 0], sizes = [8, 128], strides = [1, 1]} : vector<64x128xf32> to vector<8x128xf32>
    %366 = vector.shape_cast %20 : vector<1x128xi1> to vector<1x128xi1>
    %367 = vector.broadcast %366 : vector<1x128xi1> to vector<8x128xi1>
    %368 = arith.select %367, %364, %365 : vector<8x128xi1>, vector<8x128xf32>
    %cst_65 = arith.constant dense<0.000000e+00> : vector<8x128xf32>
    %369 = tpu.matmul %345, %30, %cst_65 {dimension_numbers = #tpu.dot_dimension_numbers<[1], [0], [0], [1], [0, 0, 1, 1], [], []>} : vector<8x32xf32>, vector<32x128xf32>, vector<8x128xf32> -> vector<8x128xf32>
    %370 = arith.addf %368, %369 : vector<8x128xf32>
    %371 = vector.extract_strided_slice %370 {offsets = [0, 0], sizes = [8, 96], strides = [1, 1]} : vector<8x128xf32> to vector<8x96xf32>
    %372 = arith.negf %371 : vector<8x96xf32>
    %373 = math.exp %372 : vector<8x96xf32>
    %cst_66 = arith.constant 1.000000e+00 : f32
    %374 = vector.broadcast %cst_66 : f32 to vector<8x96xf32>
    %375 = arith.addf %374, %373 : vector<8x96xf32>
    %376 = arith.divf %374, %375 : vector<8x96xf32>
    %377 = vector.extract_strided_slice %370 {offsets = [0, 96], sizes = [8, 32], strides = [1, 1]} : vector<8x128xf32> to vector<8x32xf32>
    %378 = math.tanh %377 : vector<8x32xf32>
    %379 = vector.extract_strided_slice %376 {offsets = [0, 32], sizes = [8, 32], strides = [1, 1]} : vector<8x96xf32> to vector<8x32xf32>
    %380 = arith.mulf %379, %350 : vector<8x32xf32>
    %381 = vector.extract_strided_slice %376 {offsets = [0, 0], sizes = [8, 32], strides = [1, 1]} : vector<8x96xf32> to vector<8x32xf32>
    %382 = arith.mulf %381, %378 : vector<8x32xf32>
    %383 = arith.addf %380, %382 : vector<8x32xf32>
    %384 = vector.extract_strided_slice %376 {offsets = [0, 64], sizes = [8, 32], strides = [1, 1]} : vector<8x96xf32> to vector<8x32xf32>
    %385 = math.tanh %383 : vector<8x32xf32>
    %386 = arith.mulf %384, %385 : vector<8x32xf32>
    %387 = arith.mulf %363, %386 : vector<8x32xf32>
    %388 = vector.extract_strided_slice %387 {offsets = [0, 0], sizes = [8, 16], strides = [1, 1]} : vector<8x32xf32> to vector<8x16xf32>
    %c56_67 = arith.constant 56 : index
    %c0_68 = arith.constant 0 : index
    %389 = vector.load %arg11[%c56_67, %c0_68] : memref<64x32xf32, #tpu.memory_space<vmem>>, vector<8x16xf32>
    tpu.vector_store %arg11[%c56_67, %c0_68], %388 {strides = array<i32>} : memref<64x32xf32, #tpu.memory_space<vmem>>, vector<8x16xf32>,
    %390 = vector.extract_strided_slice %387 {offsets = [0, 16], sizes = [8, 16], strides = [1, 1]} : vector<8x32xf32> to vector<8x16xf32>
    %c0_69 = arith.constant 0 : index
    %c16_70 = arith.constant 16 : index
    %391 = vector.load %arg11[%c0_69, %c16_70] : memref<64x32xf32, #tpu.memory_space<vmem>>, vector<8x16xf32>
    tpu.vector_store %arg11[%c0_69, %c16_70], %390 {strides = array<i32>} : memref<64x32xf32, #tpu.memory_space<vmem>>, vector<8x16xf32>,
    %c0_71 = arith.constant 0 : index
    %c0_72 = arith.constant 0 : index
    %392 = vector.load %arg11[%c0_71, %c0_72] : memref<64x32xf32, #tpu.memory_space<vmem>>, vector<64x32xf32>
    %c0_73 = arith.constant 0 : index
    %c0_74 = arith.constant 0 : index
    %393 = vector.load %arg5[%c0_73, %c0_74] : memref<32x128xf32, #tpu.memory_space<vmem>>, vector<32x128xf32>
    %cst_75 = arith.constant dense<0.000000e+00> : vector<64x128xf32>
    %394 = tpu.matmul %392, %393, %cst_75 {dimension_numbers = #tpu.dot_dimension_numbers<[1], [0], [0], [1], [0, 0, 1, 1], [], []>} : vector<64x32xf32>, vector<32x128xf32>, vector<64x128xf32> -> vector<64x128xf32>
    %c1_76 = arith.constant 1 : index
    %c0_77 = arith.constant 0 : index
    %395 = vector.load %arg7[%c1_76, %c0_77] : memref<2x128xf32, #tpu.memory_space<vmem>>, vector<1x128xf32>
    %396 = vector.broadcast %395 : vector<1x128xf32> to vector<64x128xf32>
    %397 = arith.addf %394, %396 : vector<64x128xf32>
    %c0_78 = arith.constant 0 : index
    %c0_79 = arith.constant 0 : index
    %398 = vector.load %arg6[%c0_78, %c0_79] : memref<32x128xf32, #tpu.memory_space<vmem>>, vector<32x128xf32>
    %cst_80 = arith.constant 0.000000e+00 : f32
    %399 = vector.broadcast %cst_80 : f32 to vector<8x32xf32>
    %cst_81 = arith.constant 0.000000e+00 : f32
    %400 = vector.broadcast %cst_81 : f32 to vector<8x32xf32>
    %401 = vector.extract_strided_slice %0 {offsets = [0, 0], sizes = [8, 1], strides = [1, 1]} : vector<64x1xf32> to vector<8x1xf32>
    %402 = vector.extract_strided_slice %0 {offsets = [56, 0], sizes = [8, 1], strides = [1, 1]} : vector<64x1xf32> to vector<8x1xf32>
    %403 = vector.shape_cast %23 : vector<1x32xi1> to vector<1x32xi1>
    %404 = vector.broadcast %403 : vector<1x32xi1> to vector<8x32xi1>
    %405 = vector.shape_cast %401 : vector<8x1xf32> to vector<8x1xf32>
    %406 = vector.broadcast %405 : vector<8x1xf32> to vector<8x32xf32>
    %407 = vector.shape_cast %402 : vector<8x1xf32> to vector<8x1xf32>
    %408 = vector.broadcast %407 : vector<8x1xf32> to vector<8x32xf32>
    %409 = arith.select %404, %406, %408 : vector<8x32xi1>, vector<8x32xf32>
    %410 = vector.extract_strided_slice %397 {offsets = [0, 0], sizes = [8, 128], strides = [1, 1]} : vector<64x128xf32> to vector<8x128xf32>
    %411 = vector.extract_strided_slice %397 {offsets = [56, 0], sizes = [8, 128], strides = [1, 1]} : vector<64x128xf32> to vector<8x128xf32>
    %412 = vector.shape_cast %20 : vector<1x128xi1> to vector<1x128xi1>
    %413 = vector.broadcast %412 : vector<1x128xi1> to vector<8x128xi1>
    %414 = arith.select %413, %410, %411 : vector<8x128xi1>, vector<8x128xf32>
    %cst_82 = arith.constant dense<0.000000e+00> : vector<8x128xf32>
    %415 = tpu.matmul %399, %398, %cst_82 {dimension_numbers = #tpu.dot_dimension_numbers<[1], [0], [0], [1], [0, 0, 1, 1], [], []>} : vector<8x32xf32>, vector<32x128xf32>, vector<8x128xf32> -> vector<8x128xf32>
    %416 = arith.addf %414, %415 : vector<8x128xf32>
    %417 = vector.extract_strided_slice %416 {offsets = [0, 0], sizes = [8, 96], strides = [1, 1]} : vector<8x128xf32> to vector<8x96xf32>
    %418 = arith.negf %417 : vector<8x96xf32>
    %419 = math.exp %418 : vector<8x96xf32>
    %cst_83 = arith.constant 1.000000e+00 : f32
    %420 = vector.broadcast %cst_83 : f32 to vector<8x96xf32>
    %421 = arith.addf %420, %419 : vector<8x96xf32>
    %422 = arith.divf %420, %421 : vector<8x96xf32>
    %423 = vector.extract_strided_slice %416 {offsets = [0, 96], sizes = [8, 32], strides = [1, 1]} : vector<8x128xf32> to vector<8x32xf32>
    %424 = math.tanh %423 : vector<8x32xf32>
    %425 = vector.extract_strided_slice %422 {offsets = [0, 32], sizes = [8, 32], strides = [1, 1]} : vector<8x96xf32> to vector<8x32xf32>
    %426 = arith.mulf %425, %400 : vector<8x32xf32>
    %427 = vector.extract_strided_slice %422 {offsets = [0, 0], sizes = [8, 32], strides = [1, 1]} : vector<8x96xf32> to vector<8x32xf32>
    %428 = arith.mulf %427, %424 : vector<8x32xf32>
    %429 = arith.addf %426, %428 : vector<8x32xf32>
    %430 = vector.extract_strided_slice %422 {offsets = [0, 64], sizes = [8, 32], strides = [1, 1]} : vector<8x96xf32> to vector<8x32xf32>
    %431 = math.tanh %429 : vector<8x32xf32>
    %432 = arith.mulf %430, %431 : vector<8x32xf32>
    %433 = arith.mulf %409, %432 : vector<8x32xf32>
    %cst_84 = arith.constant 1.000000e+00 : f32
    %434 = vector.broadcast %cst_84 : f32 to vector<8x32xf32>
    %435 = arith.subf %434, %409 : vector<8x32xf32>
    %436 = arith.mulf %435, %399 : vector<8x32xf32>
    %437 = arith.addf %433, %436 : vector<8x32xf32>
    %438 = arith.mulf %409, %429 : vector<8x32xf32>
    %cst_85 = arith.constant 1.000000e+00 : f32
    %439 = vector.broadcast %cst_85 : f32 to vector<8x32xf32>
    %440 = arith.subf %439, %409 : vector<8x32xf32>
    %441 = arith.mulf %440, %400 : vector<8x32xf32>
    %442 = arith.addf %438, %441 : vector<8x32xf32>
    %443 = vector.extract_strided_slice %433 {offsets = [0, 0], sizes = [8, 16], strides = [1, 1]} : vector<8x32xf32> to vector<8x16xf32>
    %c0_86 = arith.constant 0 : index
    %c0_87 = arith.constant 0 : index
    %444 = vector.load %arg12[%c0_86, %c0_87] : memref<64x32xf32, #tpu.memory_space<vmem>>, vector<8x16xf32>
    tpu.vector_store %arg12[%c0_86, %c0_87], %443 {strides = array<i32>} : memref<64x32xf32, #tpu.memory_space<vmem>>, vector<8x16xf32>,
    %445 = vector.extract_strided_slice %433 {offsets = [0, 16], sizes = [8, 16], strides = [1, 1]} : vector<8x32xf32> to vector<8x16xf32>
    %c56_88 = arith.constant 56 : index
    %c16_89 = arith.constant 16 : index
    %446 = vector.load %arg12[%c56_88, %c16_89] : memref<64x32xf32, #tpu.memory_space<vmem>>, vector<8x16xf32>
    tpu.vector_store %arg12[%c56_88, %c16_89], %445 {strides = array<i32>} : memref<64x32xf32, #tpu.memory_space<vmem>>, vector<8x16xf32>,
    %447 = vector.extract_strided_slice %0 {offsets = [8, 0], sizes = [8, 1], strides = [1, 1]} : vector<64x1xf32> to vector<8x1xf32>
    %448 = vector.extract_strided_slice %0 {offsets = [48, 0], sizes = [8, 1], strides = [1, 1]} : vector<64x1xf32> to vector<8x1xf32>
    %449 = vector.shape_cast %23 : vector<1x32xi1> to vector<1x32xi1>
    %450 = vector.broadcast %449 : vector<1x32xi1> to vector<8x32xi1>
    %451 = vector.shape_cast %447 : vector<8x1xf32> to vector<8x1xf32>
    %452 = vector.broadcast %451 : vector<8x1xf32> to vector<8x32xf32>
    %453 = vector.shape_cast %448 : vector<8x1xf32> to vector<8x1xf32>
    %454 = vector.broadcast %453 : vector<8x1xf32> to vector<8x32xf32>
    %455 = arith.select %450, %452, %454 : vector<8x32xi1>, vector<8x32xf32>
    %456 = vector.extract_strided_slice %397 {offsets = [8, 0], sizes = [8, 128], strides = [1, 1]} : vector<64x128xf32> to vector<8x128xf32>
    %457 = vector.extract_strided_slice %397 {offsets = [48, 0], sizes = [8, 128], strides = [1, 1]} : vector<64x128xf32> to vector<8x128xf32>
    %458 = vector.shape_cast %20 : vector<1x128xi1> to vector<1x128xi1>
    %459 = vector.broadcast %458 : vector<1x128xi1> to vector<8x128xi1>
    %460 = arith.select %459, %456, %457 : vector<8x128xi1>, vector<8x128xf32>
    %cst_90 = arith.constant dense<0.000000e+00> : vector<8x128xf32>
    %461 = tpu.matmul %437, %398, %cst_90 {dimension_numbers = #tpu.dot_dimension_numbers<[1], [0], [0], [1], [0, 0, 1, 1], [], []>} : vector<8x32xf32>, vector<32x128xf32>, vector<8x128xf32> -> vector<8x128xf32>
    %462 = arith.addf %460, %461 : vector<8x128xf32>
    %463 = vector.extract_strided_slice %462 {offsets = [0, 0], sizes = [8, 96], strides = [1, 1]} : vector<8x128xf32> to vector<8x96xf32>
    %464 = arith.negf %463 : vector<8x96xf32>
    %465 = math.exp %464 : vector<8x96xf32>
    %cst_91 = arith.constant 1.000000e+00 : f32
    %466 = vector.broadcast %cst_91 : f32 to vector<8x96xf32>
    %467 = arith.addf %466, %465 : vector<8x96xf32>
    %468 = arith.divf %466, %467 : vector<8x96xf32>
    %469 = vector.extract_strided_slice %462 {offsets = [0, 96], sizes = [8, 32], strides = [1, 1]} : vector<8x128xf32> to vector<8x32xf32>
    %470 = math.tanh %469 : vector<8x32xf32>
    %471 = vector.extract_strided_slice %468 {offsets = [0, 32], sizes = [8, 32], strides = [1, 1]} : vector<8x96xf32> to vector<8x32xf32>
    %472 = arith.mulf %471, %442 : vector<8x32xf32>
    %473 = vector.extract_strided_slice %468 {offsets = [0, 0], sizes = [8, 32], strides = [1, 1]} : vector<8x96xf32> to vector<8x32xf32>
    %474 = arith.mulf %473, %470 : vector<8x32xf32>
    %475 = arith.addf %472, %474 : vector<8x32xf32>
    %476 = vector.extract_strided_slice %468 {offsets = [0, 64], sizes = [8, 32], strides = [1, 1]} : vector<8x96xf32> to vector<8x32xf32>
    %477 = math.tanh %475 : vector<8x32xf32>
    %478 = arith.mulf %476, %477 : vector<8x32xf32>
    %479 = arith.mulf %455, %478 : vector<8x32xf32>
    %cst_92 = arith.constant 1.000000e+00 : f32
    %480 = vector.broadcast %cst_92 : f32 to vector<8x32xf32>
    %481 = arith.subf %480, %455 : vector<8x32xf32>
    %482 = arith.mulf %481, %437 : vector<8x32xf32>
    %483 = arith.addf %479, %482 : vector<8x32xf32>
    %484 = arith.mulf %455, %475 : vector<8x32xf32>
    %cst_93 = arith.constant 1.000000e+00 : f32
    %485 = vector.broadcast %cst_93 : f32 to vector<8x32xf32>
    %486 = arith.subf %485, %455 : vector<8x32xf32>
    %487 = arith.mulf %486, %442 : vector<8x32xf32>
    %488 = arith.addf %484, %487 : vector<8x32xf32>
    %489 = vector.extract_strided_slice %479 {offsets = [0, 0], sizes = [8, 16], strides = [1, 1]} : vector<8x32xf32> to vector<8x16xf32>
    %c8_94 = arith.constant 8 : index
    %c0_95 = arith.constant 0 : index
    %490 = vector.load %arg12[%c8_94, %c0_95] : memref<64x32xf32, #tpu.memory_space<vmem>>, vector<8x16xf32>
    tpu.vector_store %arg12[%c8_94, %c0_95], %489 {strides = array<i32>} : memref<64x32xf32, #tpu.memory_space<vmem>>, vector<8x16xf32>,
    %491 = vector.extract_strided_slice %479 {offsets = [0, 16], sizes = [8, 16], strides = [1, 1]} : vector<8x32xf32> to vector<8x16xf32>
    %c48_96 = arith.constant 48 : index
    %c16_97 = arith.constant 16 : index
    %492 = vector.load %arg12[%c48_96, %c16_97] : memref<64x32xf32, #tpu.memory_space<vmem>>, vector<8x16xf32>
    tpu.vector_store %arg12[%c48_96, %c16_97], %491 {strides = array<i32>} : memref<64x32xf32, #tpu.memory_space<vmem>>, vector<8x16xf32>,
    %493 = vector.extract_strided_slice %0 {offsets = [16, 0], sizes = [8, 1], strides = [1, 1]} : vector<64x1xf32> to vector<8x1xf32>
    %494 = vector.extract_strided_slice %0 {offsets = [40, 0], sizes = [8, 1], strides = [1, 1]} : vector<64x1xf32> to vector<8x1xf32>
    %495 = vector.shape_cast %23 : vector<1x32xi1> to vector<1x32xi1>
    %496 = vector.broadcast %495 : vector<1x32xi1> to vector<8x32xi1>
    %497 = vector.shape_cast %493 : vector<8x1xf32> to vector<8x1xf32>
    %498 = vector.broadcast %497 : vector<8x1xf32> to vector<8x32xf32>
    %499 = vector.shape_cast %494 : vector<8x1xf32> to vector<8x1xf32>
    %500 = vector.broadcast %499 : vector<8x1xf32> to vector<8x32xf32>
    %501 = arith.select %496, %498, %500 : vector<8x32xi1>, vector<8x32xf32>
    %502 = vector.extract_strided_slice %397 {offsets = [16, 0], sizes = [8, 128], strides = [1, 1]} : vector<64x128xf32> to vector<8x128xf32>
    %503 = vector.extract_strided_slice %397 {offsets = [40, 0], sizes = [8, 128], strides = [1, 1]} : vector<64x128xf32> to vector<8x128xf32>
    %504 = vector.shape_cast %20 : vector<1x128xi1> to vector<1x128xi1>
    %505 = vector.broadcast %504 : vector<1x128xi1> to vector<8x128xi1>
    %506 = arith.select %505, %502, %503 : vector<8x128xi1>, vector<8x128xf32>
    %cst_98 = arith.constant dense<0.000000e+00> : vector<8x128xf32>
    %507 = tpu.matmul %483, %398, %cst_98 {dimension_numbers = #tpu.dot_dimension_numbers<[1], [0], [0], [1], [0, 0, 1, 1], [], []>} : vector<8x32xf32>, vector<32x128xf32>, vector<8x128xf32> -> vector<8x128xf32>
    %508 = arith.addf %506, %507 : vector<8x128xf32>
    %509 = vector.extract_strided_slice %508 {offsets = [0, 0], sizes = [8, 96], strides = [1, 1]} : vector<8x128xf32> to vector<8x96xf32>
    %510 = arith.negf %509 : vector<8x96xf32>
    %511 = math.exp %510 : vector<8x96xf32>
    %cst_99 = arith.constant 1.000000e+00 : f32
    %512 = vector.broadcast %cst_99 : f32 to vector<8x96xf32>
    %513 = arith.addf %512, %511 : vector<8x96xf32>
    %514 = arith.divf %512, %513 : vector<8x96xf32>
    %515 = vector.extract_strided_slice %508 {offsets = [0, 96], sizes = [8, 32], strides = [1, 1]} : vector<8x128xf32> to vector<8x32xf32>
    %516 = math.tanh %515 : vector<8x32xf32>
    %517 = vector.extract_strided_slice %514 {offsets = [0, 32], sizes = [8, 32], strides = [1, 1]} : vector<8x96xf32> to vector<8x32xf32>
    %518 = arith.mulf %517, %488 : vector<8x32xf32>
    %519 = vector.extract_strided_slice %514 {offsets = [0, 0], sizes = [8, 32], strides = [1, 1]} : vector<8x96xf32> to vector<8x32xf32>
    %520 = arith.mulf %519, %516 : vector<8x32xf32>
    %521 = arith.addf %518, %520 : vector<8x32xf32>
    %522 = vector.extract_strided_slice %514 {offsets = [0, 64], sizes = [8, 32], strides = [1, 1]} : vector<8x96xf32> to vector<8x32xf32>
    %523 = math.tanh %521 : vector<8x32xf32>
    %524 = arith.mulf %522, %523 : vector<8x32xf32>
    %525 = arith.mulf %501, %524 : vector<8x32xf32>
    %cst_100 = arith.constant 1.000000e+00 : f32
    %526 = vector.broadcast %cst_100 : f32 to vector<8x32xf32>
    %527 = arith.subf %526, %501 : vector<8x32xf32>
    %528 = arith.mulf %527, %483 : vector<8x32xf32>
    %529 = arith.addf %525, %528 : vector<8x32xf32>
    %530 = arith.mulf %501, %521 : vector<8x32xf32>
    %cst_101 = arith.constant 1.000000e+00 : f32
    %531 = vector.broadcast %cst_101 : f32 to vector<8x32xf32>
    %532 = arith.subf %531, %501 : vector<8x32xf32>
    %533 = arith.mulf %532, %488 : vector<8x32xf32>
    %534 = arith.addf %530, %533 : vector<8x32xf32>
    %535 = vector.extract_strided_slice %525 {offsets = [0, 0], sizes = [8, 16], strides = [1, 1]} : vector<8x32xf32> to vector<8x16xf32>
    %c16_102 = arith.constant 16 : index
    %c0_103 = arith.constant 0 : index
    %536 = vector.load %arg12[%c16_102, %c0_103] : memref<64x32xf32, #tpu.memory_space<vmem>>, vector<8x16xf32>
    tpu.vector_store %arg12[%c16_102, %c0_103], %535 {strides = array<i32>} : memref<64x32xf32, #tpu.memory_space<vmem>>, vector<8x16xf32>,
    %537 = vector.extract_strided_slice %525 {offsets = [0, 16], sizes = [8, 16], strides = [1, 1]} : vector<8x32xf32> to vector<8x16xf32>
    %c40_104 = arith.constant 40 : index
    %c16_105 = arith.constant 16 : index
    %538 = vector.load %arg12[%c40_104, %c16_105] : memref<64x32xf32, #tpu.memory_space<vmem>>, vector<8x16xf32>
    tpu.vector_store %arg12[%c40_104, %c16_105], %537 {strides = array<i32>} : memref<64x32xf32, #tpu.memory_space<vmem>>, vector<8x16xf32>,
    %539 = vector.extract_strided_slice %0 {offsets = [24, 0], sizes = [8, 1], strides = [1, 1]} : vector<64x1xf32> to vector<8x1xf32>
    %540 = vector.extract_strided_slice %0 {offsets = [32, 0], sizes = [8, 1], strides = [1, 1]} : vector<64x1xf32> to vector<8x1xf32>
    %541 = vector.shape_cast %23 : vector<1x32xi1> to vector<1x32xi1>
    %542 = vector.broadcast %541 : vector<1x32xi1> to vector<8x32xi1>
    %543 = vector.shape_cast %539 : vector<8x1xf32> to vector<8x1xf32>
    %544 = vector.broadcast %543 : vector<8x1xf32> to vector<8x32xf32>
    %545 = vector.shape_cast %540 : vector<8x1xf32> to vector<8x1xf32>
    %546 = vector.broadcast %545 : vector<8x1xf32> to vector<8x32xf32>
    %547 = arith.select %542, %544, %546 : vector<8x32xi1>, vector<8x32xf32>
    %548 = vector.extract_strided_slice %397 {offsets = [24, 0], sizes = [8, 128], strides = [1, 1]} : vector<64x128xf32> to vector<8x128xf32>
    %549 = vector.extract_strided_slice %397 {offsets = [32, 0], sizes = [8, 128], strides = [1, 1]} : vector<64x128xf32> to vector<8x128xf32>
    %550 = vector.shape_cast %20 : vector<1x128xi1> to vector<1x128xi1>
    %551 = vector.broadcast %550 : vector<1x128xi1> to vector<8x128xi1>
    %552 = arith.select %551, %548, %549 : vector<8x128xi1>, vector<8x128xf32>
    %cst_106 = arith.constant dense<0.000000e+00> : vector<8x128xf32>
    %553 = tpu.matmul %529, %398, %cst_106 {dimension_numbers = #tpu.dot_dimension_numbers<[1], [0], [0], [1], [0, 0, 1, 1], [], []>} : vector<8x32xf32>, vector<32x128xf32>, vector<8x128xf32> -> vector<8x128xf32>
    %554 = arith.addf %552, %553 : vector<8x128xf32>
    %555 = vector.extract_strided_slice %554 {offsets = [0, 0], sizes = [8, 96], strides = [1, 1]} : vector<8x128xf32> to vector<8x96xf32>
    %556 = arith.negf %555 : vector<8x96xf32>
    %557 = math.exp %556 : vector<8x96xf32>
    %cst_107 = arith.constant 1.000000e+00 : f32
    %558 = vector.broadcast %cst_107 : f32 to vector<8x96xf32>
    %559 = arith.addf %558, %557 : vector<8x96xf32>
    %560 = arith.divf %558, %559 : vector<8x96xf32>
    %561 = vector.extract_strided_slice %554 {offsets = [0, 96], sizes = [8, 32], strides = [1, 1]} : vector<8x128xf32> to vector<8x32xf32>
    %562 = math.tanh %561 : vector<8x32xf32>
    %563 = vector.extract_strided_slice %560 {offsets = [0, 32], sizes = [8, 32], strides = [1, 1]} : vector<8x96xf32> to vector<8x32xf32>
    %564 = arith.mulf %563, %534 : vector<8x32xf32>
    %565 = vector.extract_strided_slice %560 {offsets = [0, 0], sizes = [8, 32], strides = [1, 1]} : vector<8x96xf32> to vector<8x32xf32>
    %566 = arith.mulf %565, %562 : vector<8x32xf32>
    %567 = arith.addf %564, %566 : vector<8x32xf32>
    %568 = vector.extract_strided_slice %560 {offsets = [0, 64], sizes = [8, 32], strides = [1, 1]} : vector<8x96xf32> to vector<8x32xf32>
    %569 = math.tanh %567 : vector<8x32xf32>
    %570 = arith.mulf %568, %569 : vector<8x32xf32>
    %571 = arith.mulf %547, %570 : vector<8x32xf32>
    %cst_108 = arith.constant 1.000000e+00 : f32
    %572 = vector.broadcast %cst_108 : f32 to vector<8x32xf32>
    %573 = arith.subf %572, %547 : vector<8x32xf32>
    %574 = arith.mulf %573, %529 : vector<8x32xf32>
    %575 = arith.addf %571, %574 : vector<8x32xf32>
    %576 = arith.mulf %547, %567 : vector<8x32xf32>
    %cst_109 = arith.constant 1.000000e+00 : f32
    %577 = vector.broadcast %cst_109 : f32 to vector<8x32xf32>
    %578 = arith.subf %577, %547 : vector<8x32xf32>
    %579 = arith.mulf %578, %534 : vector<8x32xf32>
    %580 = arith.addf %576, %579 : vector<8x32xf32>
    %581 = vector.extract_strided_slice %571 {offsets = [0, 0], sizes = [8, 16], strides = [1, 1]} : vector<8x32xf32> to vector<8x16xf32>
    %c24_110 = arith.constant 24 : index
    %c0_111 = arith.constant 0 : index
    %582 = vector.load %arg12[%c24_110, %c0_111] : memref<64x32xf32, #tpu.memory_space<vmem>>, vector<8x16xf32>
    tpu.vector_store %arg12[%c24_110, %c0_111], %581 {strides = array<i32>} : memref<64x32xf32, #tpu.memory_space<vmem>>, vector<8x16xf32>,
    %583 = vector.extract_strided_slice %571 {offsets = [0, 16], sizes = [8, 16], strides = [1, 1]} : vector<8x32xf32> to vector<8x16xf32>
    %c32_112 = arith.constant 32 : index
    %c16_113 = arith.constant 16 : index
    %584 = vector.load %arg12[%c32_112, %c16_113] : memref<64x32xf32, #tpu.memory_space<vmem>>, vector<8x16xf32>
    tpu.vector_store %arg12[%c32_112, %c16_113], %583 {strides = array<i32>} : memref<64x32xf32, #tpu.memory_space<vmem>>, vector<8x16xf32>,
    %585 = vector.extract_strided_slice %0 {offsets = [32, 0], sizes = [8, 1], strides = [1, 1]} : vector<64x1xf32> to vector<8x1xf32>
    %586 = vector.extract_strided_slice %0 {offsets = [24, 0], sizes = [8, 1], strides = [1, 1]} : vector<64x1xf32> to vector<8x1xf32>
    %587 = vector.shape_cast %23 : vector<1x32xi1> to vector<1x32xi1>
    %588 = vector.broadcast %587 : vector<1x32xi1> to vector<8x32xi1>
    %589 = vector.shape_cast %585 : vector<8x1xf32> to vector<8x1xf32>
    %590 = vector.broadcast %589 : vector<8x1xf32> to vector<8x32xf32>
    %591 = vector.shape_cast %586 : vector<8x1xf32> to vector<8x1xf32>
    %592 = vector.broadcast %591 : vector<8x1xf32> to vector<8x32xf32>
    %593 = arith.select %588, %590, %592 : vector<8x32xi1>, vector<8x32xf32>
    %594 = vector.extract_strided_slice %397 {offsets = [32, 0], sizes = [8, 128], strides = [1, 1]} : vector<64x128xf32> to vector<8x128xf32>
    %595 = vector.extract_strided_slice %397 {offsets = [24, 0], sizes = [8, 128], strides = [1, 1]} : vector<64x128xf32> to vector<8x128xf32>
    %596 = vector.shape_cast %20 : vector<1x128xi1> to vector<1x128xi1>
    %597 = vector.broadcast %596 : vector<1x128xi1> to vector<8x128xi1>
    %598 = arith.select %597, %594, %595 : vector<8x128xi1>, vector<8x128xf32>
    %cst_114 = arith.constant dense<0.000000e+00> : vector<8x128xf32>
    %599 = tpu.matmul %575, %398, %cst_114 {dimension_numbers = #tpu.dot_dimension_numbers<[1], [0], [0], [1], [0, 0, 1, 1], [], []>} : vector<8x32xf32>, vector<32x128xf32>, vector<8x128xf32> -> vector<8x128xf32>
    %600 = arith.addf %598, %599 : vector<8x128xf32>
    %601 = vector.extract_strided_slice %600 {offsets = [0, 0], sizes = [8, 96], strides = [1, 1]} : vector<8x128xf32> to vector<8x96xf32>
    %602 = arith.negf %601 : vector<8x96xf32>
    %603 = math.exp %602 : vector<8x96xf32>
    %cst_115 = arith.constant 1.000000e+00 : f32
    %604 = vector.broadcast %cst_115 : f32 to vector<8x96xf32>
    %605 = arith.addf %604, %603 : vector<8x96xf32>
    %606 = arith.divf %604, %605 : vector<8x96xf32>
    %607 = vector.extract_strided_slice %600 {offsets = [0, 96], sizes = [8, 32], strides = [1, 1]} : vector<8x128xf32> to vector<8x32xf32>
    %608 = math.tanh %607 : vector<8x32xf32>
    %609 = vector.extract_strided_slice %606 {offsets = [0, 32], sizes = [8, 32], strides = [1, 1]} : vector<8x96xf32> to vector<8x32xf32>
    %610 = arith.mulf %609, %580 : vector<8x32xf32>
    %611 = vector.extract_strided_slice %606 {offsets = [0, 0], sizes = [8, 32], strides = [1, 1]} : vector<8x96xf32> to vector<8x32xf32>
    %612 = arith.mulf %611, %608 : vector<8x32xf32>
    %613 = arith.addf %610, %612 : vector<8x32xf32>
    %614 = vector.extract_strided_slice %606 {offsets = [0, 64], sizes = [8, 32], strides = [1, 1]} : vector<8x96xf32> to vector<8x32xf32>
    %615 = math.tanh %613 : vector<8x32xf32>
    %616 = arith.mulf %614, %615 : vector<8x32xf32>
    %617 = arith.mulf %593, %616 : vector<8x32xf32>
    %cst_116 = arith.constant 1.000000e+00 : f32
    %618 = vector.broadcast %cst_116 : f32 to vector<8x32xf32>
    %619 = arith.subf %618, %593 : vector<8x32xf32>
    %620 = arith.mulf %619, %575 : vector<8x32xf32>
    %621 = arith.addf %617, %620 : vector<8x32xf32>
    %622 = arith.mulf %593, %613 : vector<8x32xf32>
    %cst_117 = arith.constant 1.000000e+00 : f32
    %623 = vector.broadcast %cst_117 : f32 to vector<8x32xf32>
    %624 = arith.subf %623, %593 : vector<8x32xf32>
    %625 = arith.mulf %624, %580 : vector<8x32xf32>
    %626 = arith.addf %622, %625 : vector<8x32xf32>
    %627 = vector.extract_strided_slice %617 {offsets = [0, 0], sizes = [8, 16], strides = [1, 1]} : vector<8x32xf32> to vector<8x16xf32>
    %c32_118 = arith.constant 32 : index
    %c0_119 = arith.constant 0 : index
    %628 = vector.load %arg12[%c32_118, %c0_119] : memref<64x32xf32, #tpu.memory_space<vmem>>, vector<8x16xf32>
    tpu.vector_store %arg12[%c32_118, %c0_119], %627 {strides = array<i32>} : memref<64x32xf32, #tpu.memory_space<vmem>>, vector<8x16xf32>,
    %629 = vector.extract_strided_slice %617 {offsets = [0, 16], sizes = [8, 16], strides = [1, 1]} : vector<8x32xf32> to vector<8x16xf32>
    %c24_120 = arith.constant 24 : index
    %c16_121 = arith.constant 16 : index
    %630 = vector.load %arg12[%c24_120, %c16_121] : memref<64x32xf32, #tpu.memory_space<vmem>>, vector<8x16xf32>
    tpu.vector_store %arg12[%c24_120, %c16_121], %629 {strides = array<i32>} : memref<64x32xf32, #tpu.memory_space<vmem>>, vector<8x16xf32>,
    %631 = vector.extract_strided_slice %0 {offsets = [40, 0], sizes = [8, 1], strides = [1, 1]} : vector<64x1xf32> to vector<8x1xf32>
    %632 = vector.extract_strided_slice %0 {offsets = [16, 0], sizes = [8, 1], strides = [1, 1]} : vector<64x1xf32> to vector<8x1xf32>
    %633 = vector.shape_cast %23 : vector<1x32xi1> to vector<1x32xi1>
    %634 = vector.broadcast %633 : vector<1x32xi1> to vector<8x32xi1>
    %635 = vector.shape_cast %631 : vector<8x1xf32> to vector<8x1xf32>
    %636 = vector.broadcast %635 : vector<8x1xf32> to vector<8x32xf32>
    %637 = vector.shape_cast %632 : vector<8x1xf32> to vector<8x1xf32>
    %638 = vector.broadcast %637 : vector<8x1xf32> to vector<8x32xf32>
    %639 = arith.select %634, %636, %638 : vector<8x32xi1>, vector<8x32xf32>
    %640 = vector.extract_strided_slice %397 {offsets = [40, 0], sizes = [8, 128], strides = [1, 1]} : vector<64x128xf32> to vector<8x128xf32>
    %641 = vector.extract_strided_slice %397 {offsets = [16, 0], sizes = [8, 128], strides = [1, 1]} : vector<64x128xf32> to vector<8x128xf32>
    %642 = vector.shape_cast %20 : vector<1x128xi1> to vector<1x128xi1>
    %643 = vector.broadcast %642 : vector<1x128xi1> to vector<8x128xi1>
    %644 = arith.select %643, %640, %641 : vector<8x128xi1>, vector<8x128xf32>
    %cst_122 = arith.constant dense<0.000000e+00> : vector<8x128xf32>
    %645 = tpu.matmul %621, %398, %cst_122 {dimension_numbers = #tpu.dot_dimension_numbers<[1], [0], [0], [1], [0, 0, 1, 1], [], []>} : vector<8x32xf32>, vector<32x128xf32>, vector<8x128xf32> -> vector<8x128xf32>
    %646 = arith.addf %644, %645 : vector<8x128xf32>
    %647 = vector.extract_strided_slice %646 {offsets = [0, 0], sizes = [8, 96], strides = [1, 1]} : vector<8x128xf32> to vector<8x96xf32>
    %648 = arith.negf %647 : vector<8x96xf32>
    %649 = math.exp %648 : vector<8x96xf32>
    %cst_123 = arith.constant 1.000000e+00 : f32
    %650 = vector.broadcast %cst_123 : f32 to vector<8x96xf32>
    %651 = arith.addf %650, %649 : vector<8x96xf32>
    %652 = arith.divf %650, %651 : vector<8x96xf32>
    %653 = vector.extract_strided_slice %646 {offsets = [0, 96], sizes = [8, 32], strides = [1, 1]} : vector<8x128xf32> to vector<8x32xf32>
    %654 = math.tanh %653 : vector<8x32xf32>
    %655 = vector.extract_strided_slice %652 {offsets = [0, 32], sizes = [8, 32], strides = [1, 1]} : vector<8x96xf32> to vector<8x32xf32>
    %656 = arith.mulf %655, %626 : vector<8x32xf32>
    %657 = vector.extract_strided_slice %652 {offsets = [0, 0], sizes = [8, 32], strides = [1, 1]} : vector<8x96xf32> to vector<8x32xf32>
    %658 = arith.mulf %657, %654 : vector<8x32xf32>
    %659 = arith.addf %656, %658 : vector<8x32xf32>
    %660 = vector.extract_strided_slice %652 {offsets = [0, 64], sizes = [8, 32], strides = [1, 1]} : vector<8x96xf32> to vector<8x32xf32>
    %661 = math.tanh %659 : vector<8x32xf32>
    %662 = arith.mulf %660, %661 : vector<8x32xf32>
    %663 = arith.mulf %639, %662 : vector<8x32xf32>
    %cst_124 = arith.constant 1.000000e+00 : f32
    %664 = vector.broadcast %cst_124 : f32 to vector<8x32xf32>
    %665 = arith.subf %664, %639 : vector<8x32xf32>
    %666 = arith.mulf %665, %621 : vector<8x32xf32>
    %667 = arith.addf %663, %666 : vector<8x32xf32>
    %668 = arith.mulf %639, %659 : vector<8x32xf32>
    %cst_125 = arith.constant 1.000000e+00 : f32
    %669 = vector.broadcast %cst_125 : f32 to vector<8x32xf32>
    %670 = arith.subf %669, %639 : vector<8x32xf32>
    %671 = arith.mulf %670, %626 : vector<8x32xf32>
    %672 = arith.addf %668, %671 : vector<8x32xf32>
    %673 = vector.extract_strided_slice %663 {offsets = [0, 0], sizes = [8, 16], strides = [1, 1]} : vector<8x32xf32> to vector<8x16xf32>
    %c40_126 = arith.constant 40 : index
    %c0_127 = arith.constant 0 : index
    %674 = vector.load %arg12[%c40_126, %c0_127] : memref<64x32xf32, #tpu.memory_space<vmem>>, vector<8x16xf32>
    tpu.vector_store %arg12[%c40_126, %c0_127], %673 {strides = array<i32>} : memref<64x32xf32, #tpu.memory_space<vmem>>, vector<8x16xf32>,
    %675 = vector.extract_strided_slice %663 {offsets = [0, 16], sizes = [8, 16], strides = [1, 1]} : vector<8x32xf32> to vector<8x16xf32>
    %c16_128 = arith.constant 16 : index
    %c16_129 = arith.constant 16 : index
    %676 = vector.load %arg12[%c16_128, %c16_129] : memref<64x32xf32, #tpu.memory_space<vmem>>, vector<8x16xf32>
    tpu.vector_store %arg12[%c16_128, %c16_129], %675 {strides = array<i32>} : memref<64x32xf32, #tpu.memory_space<vmem>>, vector<8x16xf32>,
    %677 = vector.extract_strided_slice %0 {offsets = [48, 0], sizes = [8, 1], strides = [1, 1]} : vector<64x1xf32> to vector<8x1xf32>
    %678 = vector.extract_strided_slice %0 {offsets = [8, 0], sizes = [8, 1], strides = [1, 1]} : vector<64x1xf32> to vector<8x1xf32>
    %679 = vector.shape_cast %23 : vector<1x32xi1> to vector<1x32xi1>
    %680 = vector.broadcast %679 : vector<1x32xi1> to vector<8x32xi1>
    %681 = vector.shape_cast %677 : vector<8x1xf32> to vector<8x1xf32>
    %682 = vector.broadcast %681 : vector<8x1xf32> to vector<8x32xf32>
    %683 = vector.shape_cast %678 : vector<8x1xf32> to vector<8x1xf32>
    %684 = vector.broadcast %683 : vector<8x1xf32> to vector<8x32xf32>
    %685 = arith.select %680, %682, %684 : vector<8x32xi1>, vector<8x32xf32>
    %686 = vector.extract_strided_slice %397 {offsets = [48, 0], sizes = [8, 128], strides = [1, 1]} : vector<64x128xf32> to vector<8x128xf32>
    %687 = vector.extract_strided_slice %397 {offsets = [8, 0], sizes = [8, 128], strides = [1, 1]} : vector<64x128xf32> to vector<8x128xf32>
    %688 = vector.shape_cast %20 : vector<1x128xi1> to vector<1x128xi1>
    %689 = vector.broadcast %688 : vector<1x128xi1> to vector<8x128xi1>
    %690 = arith.select %689, %686, %687 : vector<8x128xi1>, vector<8x128xf32>
    %cst_130 = arith.constant dense<0.000000e+00> : vector<8x128xf32>
    %691 = tpu.matmul %667, %398, %cst_130 {dimension_numbers = #tpu.dot_dimension_numbers<[1], [0], [0], [1], [0, 0, 1, 1], [], []>} : vector<8x32xf32>, vector<32x128xf32>, vector<8x128xf32> -> vector<8x128xf32>
    %692 = arith.addf %690, %691 : vector<8x128xf32>
    %693 = vector.extract_strided_slice %692 {offsets = [0, 0], sizes = [8, 96], strides = [1, 1]} : vector<8x128xf32> to vector<8x96xf32>
    %694 = arith.negf %693 : vector<8x96xf32>
    %695 = math.exp %694 : vector<8x96xf32>
    %cst_131 = arith.constant 1.000000e+00 : f32
    %696 = vector.broadcast %cst_131 : f32 to vector<8x96xf32>
    %697 = arith.addf %696, %695 : vector<8x96xf32>
    %698 = arith.divf %696, %697 : vector<8x96xf32>
    %699 = vector.extract_strided_slice %692 {offsets = [0, 96], sizes = [8, 32], strides = [1, 1]} : vector<8x128xf32> to vector<8x32xf32>
    %700 = math.tanh %699 : vector<8x32xf32>
    %701 = vector.extract_strided_slice %698 {offsets = [0, 32], sizes = [8, 32], strides = [1, 1]} : vector<8x96xf32> to vector<8x32xf32>
    %702 = arith.mulf %701, %672 : vector<8x32xf32>
    %703 = vector.extract_strided_slice %698 {offsets = [0, 0], sizes = [8, 32], strides = [1, 1]} : vector<8x96xf32> to vector<8x32xf32>
    %704 = arith.mulf %703, %700 : vector<8x32xf32>
    %705 = arith.addf %702, %704 : vector<8x32xf32>
    %706 = vector.extract_strided_slice %698 {offsets = [0, 64], sizes = [8, 32], strides = [1, 1]} : vector<8x96xf32> to vector<8x32xf32>
    %707 = math.tanh %705 : vector<8x32xf32>
    %708 = arith.mulf %706, %707 : vector<8x32xf32>
    %709 = arith.mulf %685, %708 : vector<8x32xf32>
    %cst_132 = arith.constant 1.000000e+00 : f32
    %710 = vector.broadcast %cst_132 : f32 to vector<8x32xf32>
    %711 = arith.subf %710, %685 : vector<8x32xf32>
    %712 = arith.mulf %711, %667 : vector<8x32xf32>
    %713 = arith.addf %709, %712 : vector<8x32xf32>
    %714 = arith.mulf %685, %705 : vector<8x32xf32>
    %cst_133 = arith.constant 1.000000e+00 : f32
    %715 = vector.broadcast %cst_133 : f32 to vector<8x32xf32>
    %716 = arith.subf %715, %685 : vector<8x32xf32>
    %717 = arith.mulf %716, %672 : vector<8x32xf32>
    %718 = arith.addf %714, %717 : vector<8x32xf32>
    %719 = vector.extract_strided_slice %709 {offsets = [0, 0], sizes = [8, 16], strides = [1, 1]} : vector<8x32xf32> to vector<8x16xf32>
    %c48_134 = arith.constant 48 : index
    %c0_135 = arith.constant 0 : index
    %720 = vector.load %arg12[%c48_134, %c0_135] : memref<64x32xf32, #tpu.memory_space<vmem>>, vector<8x16xf32>
    tpu.vector_store %arg12[%c48_134, %c0_135], %719 {strides = array<i32>} : memref<64x32xf32, #tpu.memory_space<vmem>>, vector<8x16xf32>,
    %721 = vector.extract_strided_slice %709 {offsets = [0, 16], sizes = [8, 16], strides = [1, 1]} : vector<8x32xf32> to vector<8x16xf32>
    %c8_136 = arith.constant 8 : index
    %c16_137 = arith.constant 16 : index
    %722 = vector.load %arg12[%c8_136, %c16_137] : memref<64x32xf32, #tpu.memory_space<vmem>>, vector<8x16xf32>
    tpu.vector_store %arg12[%c8_136, %c16_137], %721 {strides = array<i32>} : memref<64x32xf32, #tpu.memory_space<vmem>>, vector<8x16xf32>,
    %723 = vector.extract_strided_slice %0 {offsets = [56, 0], sizes = [8, 1], strides = [1, 1]} : vector<64x1xf32> to vector<8x1xf32>
    %724 = vector.extract_strided_slice %0 {offsets = [0, 0], sizes = [8, 1], strides = [1, 1]} : vector<64x1xf32> to vector<8x1xf32>
    %725 = vector.shape_cast %23 : vector<1x32xi1> to vector<1x32xi1>
    %726 = vector.broadcast %725 : vector<1x32xi1> to vector<8x32xi1>
    %727 = vector.shape_cast %723 : vector<8x1xf32> to vector<8x1xf32>
    %728 = vector.broadcast %727 : vector<8x1xf32> to vector<8x32xf32>
    %729 = vector.shape_cast %724 : vector<8x1xf32> to vector<8x1xf32>
    %730 = vector.broadcast %729 : vector<8x1xf32> to vector<8x32xf32>
    %731 = arith.select %726, %728, %730 : vector<8x32xi1>, vector<8x32xf32>
    %732 = vector.extract_strided_slice %397 {offsets = [56, 0], sizes = [8, 128], strides = [1, 1]} : vector<64x128xf32> to vector<8x128xf32>
    %733 = vector.extract_strided_slice %397 {offsets = [0, 0], sizes = [8, 128], strides = [1, 1]} : vector<64x128xf32> to vector<8x128xf32>
    %734 = vector.shape_cast %20 : vector<1x128xi1> to vector<1x128xi1>
    %735 = vector.broadcast %734 : vector<1x128xi1> to vector<8x128xi1>
    %736 = arith.select %735, %732, %733 : vector<8x128xi1>, vector<8x128xf32>
    %cst_138 = arith.constant dense<0.000000e+00> : vector<8x128xf32>
    %737 = tpu.matmul %713, %398, %cst_138 {dimension_numbers = #tpu.dot_dimension_numbers<[1], [0], [0], [1], [0, 0, 1, 1], [], []>} : vector<8x32xf32>, vector<32x128xf32>, vector<8x128xf32> -> vector<8x128xf32>
    %738 = arith.addf %736, %737 : vector<8x128xf32>
    %739 = vector.extract_strided_slice %738 {offsets = [0, 0], sizes = [8, 96], strides = [1, 1]} : vector<8x128xf32> to vector<8x96xf32>
    %740 = arith.negf %739 : vector<8x96xf32>
    %741 = math.exp %740 : vector<8x96xf32>
    %cst_139 = arith.constant 1.000000e+00 : f32
    %742 = vector.broadcast %cst_139 : f32 to vector<8x96xf32>
    %743 = arith.addf %742, %741 : vector<8x96xf32>
    %744 = arith.divf %742, %743 : vector<8x96xf32>
    %745 = vector.extract_strided_slice %738 {offsets = [0, 96], sizes = [8, 32], strides = [1, 1]} : vector<8x128xf32> to vector<8x32xf32>
    %746 = math.tanh %745 : vector<8x32xf32>
    %747 = vector.extract_strided_slice %744 {offsets = [0, 32], sizes = [8, 32], strides = [1, 1]} : vector<8x96xf32> to vector<8x32xf32>
    %748 = arith.mulf %747, %718 : vector<8x32xf32>
    %749 = vector.extract_strided_slice %744 {offsets = [0, 0], sizes = [8, 32], strides = [1, 1]} : vector<8x96xf32> to vector<8x32xf32>
    %750 = arith.mulf %749, %746 : vector<8x32xf32>
    %751 = arith.addf %748, %750 : vector<8x32xf32>
    %752 = vector.extract_strided_slice %744 {offsets = [0, 64], sizes = [8, 32], strides = [1, 1]} : vector<8x96xf32> to vector<8x32xf32>
    %753 = math.tanh %751 : vector<8x32xf32>
    %754 = arith.mulf %752, %753 : vector<8x32xf32>
    %755 = arith.mulf %731, %754 : vector<8x32xf32>
    %756 = vector.extract_strided_slice %755 {offsets = [0, 0], sizes = [8, 16], strides = [1, 1]} : vector<8x32xf32> to vector<8x16xf32>
    %c56_140 = arith.constant 56 : index
    %c0_141 = arith.constant 0 : index
    %757 = vector.load %arg12[%c56_140, %c0_141] : memref<64x32xf32, #tpu.memory_space<vmem>>, vector<8x16xf32>
    tpu.vector_store %arg12[%c56_140, %c0_141], %756 {strides = array<i32>} : memref<64x32xf32, #tpu.memory_space<vmem>>, vector<8x16xf32>,
    %758 = vector.extract_strided_slice %755 {offsets = [0, 16], sizes = [8, 16], strides = [1, 1]} : vector<8x32xf32> to vector<8x16xf32>
    %c0_142 = arith.constant 0 : index
    %c16_143 = arith.constant 16 : index
    %759 = vector.load %arg12[%c0_142, %c16_143] : memref<64x32xf32, #tpu.memory_space<vmem>>, vector<8x16xf32>
    tpu.vector_store %arg12[%c0_142, %c16_143], %758 {strides = array<i32>} : memref<64x32xf32, #tpu.memory_space<vmem>>, vector<8x16xf32>,
    %c0_144 = arith.constant 0 : index
    %c0_145 = arith.constant 0 : index
    %760 = vector.load %arg12[%c0_144, %c0_145] : memref<64x32xf32, #tpu.memory_space<vmem>>, vector<64x32xf32>
    %cst_146 = arith.constant dense<0.000000e+00> : vector<64xf32>
    %761 = vector.multi_reduction <add>, %760, %cst_146 [1] : vector<64x32xf32> to vector<64xf32>
    %762 = vector.shape_cast %761 : vector<64xf32> to vector<64x1xf32>
    %cst_147 = arith.constant 3.200000e+01 : f32
    %763 = vector.broadcast %cst_147 : f32 to vector<64x1xf32>
    %764 = arith.divf %762, %763 : vector<64x1xf32>
    %765 = vector.broadcast %764 : vector<64x1xf32> to vector<64x32xf32>
    %766 = arith.subf %760, %765 : vector<64x32xf32>
    %767 = arith.mulf %766, %766 : vector<64x32xf32>
    %cst_148 = arith.constant dense<0.000000e+00> : vector<64xf32>
    %768 = vector.multi_reduction <add>, %767, %cst_148 [1] : vector<64x32xf32> to vector<64xf32>
    %769 = vector.shape_cast %768 : vector<64xf32> to vector<64x1xf32>
    %cst_149 = arith.constant 3.200000e+01 : f32
    %770 = vector.broadcast %cst_149 : f32 to vector<64x1xf32>
    %771 = arith.divf %769, %770 : vector<64x1xf32>
    %772 = vector.broadcast %764 : vector<64x1xf32> to vector<64x32xf32>
    %773 = arith.subf %760, %772 : vector<64x32xf32>
    %cst_150 = arith.constant 9.99999974E-6 : f32
    %774 = vector.broadcast %cst_150 : f32 to vector<64x1xf32>
    %775 = arith.addf %771, %774 : vector<64x1xf32>
    %776 = math.rsqrt %775 : vector<64x1xf32>
    %777 = vector.broadcast %776 : vector<64x1xf32> to vector<64x32xf32>
    %778 = arith.mulf %773, %777 : vector<64x32xf32>
    %c0_151 = arith.constant 0 : index
    %c0_152 = arith.constant 0 : index
    %779 = vector.load %arg9[%c0_151, %c0_152] : memref<8x5xf32, #tpu.memory_space<vmem>>, vector<5x5xf32>
    %c5 = arith.constant 5 : index
    %c0_153 = arith.constant 0 : index
    %780 = vector.load %arg9[%c5, %c0_153] : memref<8x5xf32, #tpu.memory_space<vmem>>, vector<1x5xf32>
    %c6 = arith.constant 6 : index
    %c0_154 = arith.constant 0 : index
    %781 = vector.load %arg9[%c6, %c0_154] : memref<8x5xf32, #tpu.memory_space<vmem>>, vector<1x5xf32>
    %c7 = arith.constant 7 : index
    %c0_155 = arith.constant 0 : index
    %782 = vector.load %arg9[%c7, %c0_155] : memref<8x5xf32, #tpu.memory_space<vmem>>, vector<1x5xf32>
    %c0_156 = arith.constant 0 : index
    %c0_157 = arith.constant 0 : index
    %783 = vector.load %arg8[%c0_156, %c0_157] : memref<32x5xf32, #tpu.memory_space<vmem>>, vector<32x5xf32>
    %cst_158 = arith.constant dense<0.000000e+00> : vector<64x5xf32>
    %784 = tpu.matmul %778, %783, %cst_158 {dimension_numbers = #tpu.dot_dimension_numbers<[1], [0], [0], [1], [0, 0, 1, 1], [], []>} : vector<64x32xf32>, vector<32x5xf32>, vector<64x5xf32> -> vector<64x5xf32>
    %785 = vector.broadcast %782 : vector<1x5xf32> to vector<64x5xf32>
    %786 = arith.addf %784, %785 : vector<64x5xf32>
    %c0_159 = arith.constant 0 : index
    %c0_160 = arith.constant 0 : index
    %787 = vector.load %arg2[%c0_159, %c0_160] : memref<64x5xf32, #tpu.memory_space<vmem>>, vector<64x5xf32>
    %cst_161 = arith.constant dense<0xFF800000> : vector<5xf32>
    %788 = vector.multi_reduction <maximumf>, %779, %cst_161 [0] : vector<5x5xf32> to vector<5xf32>
    %789 = vector.shape_cast %788 : vector<5xf32> to vector<1x5xf32>
    %790 = vector.broadcast %789 : vector<1x5xf32> to vector<5x5xf32>
    %791 = arith.subf %779, %790 : vector<5x5xf32>
    %792 = math.exp %791 : vector<5x5xf32>
    %793 = arith.mulf %787, %786 : vector<64x5xf32>
    %cst_162 = arith.constant dense<0.000000e+00> : vector<64xf32>
    %794 = vector.multi_reduction <add>, %793, %cst_162 [1] : vector<64x5xf32> to vector<64xf32>
    %795 = vector.shape_cast %794 : vector<64xf32> to vector<64x1xf32>
    %796 = vector.broadcast %781 : vector<1x5xf32> to vector<64x5xf32>
    %797 = arith.mulf %787, %796 : vector<64x5xf32>
    %cst_163 = arith.constant dense<0.000000e+00> : vector<64xf32>
    %798 = vector.multi_reduction <add>, %797, %cst_163 [1] : vector<64x5xf32> to vector<64xf32>
    %799 = vector.shape_cast %798 : vector<64xf32> to vector<64x1xf32>
    %800 = vector.extract_strided_slice %787 {offsets = [0, 0], sizes = [56, 5], strides = [1, 1]} : vector<64x5xf32> to vector<56x5xf32>
    %cst_164 = arith.constant dense<0.000000e+00> : vector<56x5xf32>
    %801 = tpu.matmul %800, %779, %cst_164 {dimension_numbers = #tpu.dot_dimension_numbers<[1], [0], [0], [1], [0, 0, 1, 1], [], []>} : vector<56x5xf32>, vector<5x5xf32>, vector<56x5xf32> -> vector<56x5xf32>
    %802 = vector.extract_strided_slice %787 {offsets = [8, 0], sizes = [56, 5], strides = [1, 1]} : vector<64x5xf32> to vector<56x5xf32>
    %803 = arith.mulf %801, %802 : vector<56x5xf32>
    %cst_165 = arith.constant dense<0.000000e+00> : vector<56xf32>
    %804 = vector.multi_reduction <add>, %803, %cst_165 [1] : vector<56x5xf32> to vector<56xf32>
    %805 = vector.shape_cast %804 : vector<56xf32> to vector<56x1xf32>
    %806 = vector.extract_strided_slice %787 {offsets = [0, 0], sizes = [8, 5], strides = [1, 1]} : vector<64x5xf32> to vector<8x5xf32>
    %807 = vector.broadcast %780 : vector<1x5xf32> to vector<8x5xf32>
    %808 = arith.mulf %807, %806 : vector<8x5xf32>
    %cst_166 = arith.constant dense<0.000000e+00> : vector<8xf32>
    %809 = vector.multi_reduction <add>, %808, %cst_166 [1] : vector<8x5xf32> to vector<8xf32>
    %810 = vector.shape_cast %809 : vector<8xf32> to vector<8x1xf32>
    %811 = vector.extract_strided_slice %795 {offsets = [0, 0], sizes = [8, 1], strides = [1, 1]} : vector<64x1xf32> to vector<8x1xf32>
    %812 = arith.addf %810, %811 : vector<8x1xf32>
    %813 = vector.extract_strided_slice %1 {offsets = [0, 0], sizes = [8, 1], strides = [1, 1]} : vector<64x1xf32> to vector<8x1xf32>
    %814 = vector.extract_strided_slice %799 {offsets = [0, 0], sizes = [8, 1], strides = [1, 1]} : vector<64x1xf32> to vector<8x1xf32>
    %815 = arith.mulf %813, %814 : vector<8x1xf32>
    %816 = arith.addf %812, %815 : vector<8x1xf32>
    %817 = vector.extract_strided_slice %786 {offsets = [0, 0], sizes = [8, 5], strides = [1, 1]} : vector<64x5xf32> to vector<8x5xf32>
    %818 = vector.broadcast %780 : vector<1x5xf32> to vector<8x5xf32>
    %819 = arith.addf %818, %817 : vector<8x5xf32>
    %820 = vector.extract_strided_slice %0 {offsets = [8, 0], sizes = [8, 1], strides = [1, 1]} : vector<64x1xf32> to vector<8x1xf32>
    %821 = vector.extract_strided_slice %805 {offsets = [0, 0], sizes = [8, 1], strides = [1, 1]} : vector<56x1xf32> to vector<8x1xf32>
    %822 = vector.extract_strided_slice %795 {offsets = [8, 0], sizes = [8, 1], strides = [1, 1]} : vector<64x1xf32> to vector<8x1xf32>
    %823 = arith.addf %821, %822 : vector<8x1xf32>
    %824 = arith.mulf %820, %823 : vector<8x1xf32>
    %825 = arith.addf %816, %824 : vector<8x1xf32>
    %826 = vector.extract_strided_slice %1 {offsets = [8, 0], sizes = [8, 1], strides = [1, 1]} : vector<64x1xf32> to vector<8x1xf32>
    %827 = vector.extract_strided_slice %799 {offsets = [8, 0], sizes = [8, 1], strides = [1, 1]} : vector<64x1xf32> to vector<8x1xf32>
    %828 = arith.mulf %826, %827 : vector<8x1xf32>
    %829 = arith.addf %825, %828 : vector<8x1xf32>
    %830 = vector.extract_strided_slice %786 {offsets = [8, 0], sizes = [8, 5], strides = [1, 1]} : vector<64x5xf32> to vector<8x5xf32>
    %cst_167 = arith.constant dense<0xFF800000> : vector<8xf32>
    %831 = vector.multi_reduction <maximumf>, %819, %cst_167 [1] : vector<8x5xf32> to vector<8xf32>
    %832 = vector.shape_cast %831 : vector<8xf32> to vector<8x1xf32>
    %833 = vector.broadcast %832 : vector<8x1xf32> to vector<8x5xf32>
    %834 = arith.subf %819, %833 : vector<8x5xf32>
    %835 = math.exp %834 : vector<8x5xf32>
    %cst_168 = arith.constant dense<0.000000e+00> : vector<8x5xf32>
    %836 = tpu.matmul %835, %792, %cst_168 {dimension_numbers = #tpu.dot_dimension_numbers<[1], [0], [0], [1], [0, 0, 1, 1], [], []>} : vector<8x5xf32>, vector<5x5xf32>, vector<8x5xf32> -> vector<8x5xf32>
    %837 = vector.broadcast %832 : vector<8x1xf32> to vector<8x5xf32>
    %838 = vector.broadcast %789 : vector<1x5xf32> to vector<8x5xf32>
    %839 = arith.addf %837, %838 : vector<8x5xf32>
    %840 = math.log %836 : vector<8x5xf32>
    %841 = arith.addf %839, %840 : vector<8x5xf32>
    %842 = arith.addf %841, %830 : vector<8x5xf32>
    %843 = vector.broadcast %820 : vector<8x1xf32> to vector<8x5xf32>
    %844 = arith.mulf %843, %842 : vector<8x5xf32>
    %cst_169 = arith.constant 1.000000e+00 : f32
    %845 = vector.broadcast %cst_169 : f32 to vector<8x1xf32>
    %846 = arith.subf %845, %820 : vector<8x1xf32>
    %847 = vector.broadcast %846 : vector<8x1xf32> to vector<8x5xf32>
    %848 = arith.mulf %847, %819 : vector<8x5xf32>
    %849 = arith.addf %844, %848 : vector<8x5xf32>
    %850 = vector.extract_strided_slice %0 {offsets = [16, 0], sizes = [8, 1], strides = [1, 1]} : vector<64x1xf32> to vector<8x1xf32>
    %851 = vector.extract_strided_slice %805 {offsets = [8, 0], sizes = [8, 1], strides = [1, 1]} : vector<56x1xf32> to vector<8x1xf32>
    %852 = vector.extract_strided_slice %795 {offsets = [16, 0], sizes = [8, 1], strides = [1, 1]} : vector<64x1xf32> to vector<8x1xf32>
    %853 = arith.addf %851, %852 : vector<8x1xf32>
    %854 = arith.mulf %850, %853 : vector<8x1xf32>
    %855 = arith.addf %829, %854 : vector<8x1xf32>
    %856 = vector.extract_strided_slice %1 {offsets = [16, 0], sizes = [8, 1], strides = [1, 1]} : vector<64x1xf32> to vector<8x1xf32>
    %857 = vector.extract_strided_slice %799 {offsets = [16, 0], sizes = [8, 1], strides = [1, 1]} : vector<64x1xf32> to vector<8x1xf32>
    %858 = arith.mulf %856, %857 : vector<8x1xf32>
    %859 = arith.addf %855, %858 : vector<8x1xf32>
    %860 = vector.extract_strided_slice %786 {offsets = [16, 0], sizes = [8, 5], strides = [1, 1]} : vector<64x5xf32> to vector<8x5xf32>
    %cst_170 = arith.constant dense<0xFF800000> : vector<8xf32>
    %861 = vector.multi_reduction <maximumf>, %849, %cst_170 [1] : vector<8x5xf32> to vector<8xf32>
    %862 = vector.shape_cast %861 : vector<8xf32> to vector<8x1xf32>
    %863 = vector.broadcast %862 : vector<8x1xf32> to vector<8x5xf32>
    %864 = arith.subf %849, %863 : vector<8x5xf32>
    %865 = math.exp %864 : vector<8x5xf32>
    %cst_171 = arith.constant dense<0.000000e+00> : vector<8x5xf32>
    %866 = tpu.matmul %865, %792, %cst_171 {dimension_numbers = #tpu.dot_dimension_numbers<[1], [0], [0], [1], [0, 0, 1, 1], [], []>} : vector<8x5xf32>, vector<5x5xf32>, vector<8x5xf32> -> vector<8x5xf32>
    %867 = vector.broadcast %862 : vector<8x1xf32> to vector<8x5xf32>
    %868 = vector.broadcast %789 : vector<1x5xf32> to vector<8x5xf32>
    %869 = arith.addf %867, %868 : vector<8x5xf32>
    %870 = math.log %866 : vector<8x5xf32>
    %871 = arith.addf %869, %870 : vector<8x5xf32>
    %872 = arith.addf %871, %860 : vector<8x5xf32>
    %873 = vector.broadcast %850 : vector<8x1xf32> to vector<8x5xf32>
    %874 = arith.mulf %873, %872 : vector<8x5xf32>
    %cst_172 = arith.constant 1.000000e+00 : f32
    %875 = vector.broadcast %cst_172 : f32 to vector<8x1xf32>
    %876 = arith.subf %875, %850 : vector<8x1xf32>
    %877 = vector.broadcast %876 : vector<8x1xf32> to vector<8x5xf32>
    %878 = arith.mulf %877, %849 : vector<8x5xf32>
    %879 = arith.addf %874, %878 : vector<8x5xf32>
    %880 = vector.extract_strided_slice %0 {offsets = [24, 0], sizes = [8, 1], strides = [1, 1]} : vector<64x1xf32> to vector<8x1xf32>
    %881 = vector.extract_strided_slice %805 {offsets = [16, 0], sizes = [8, 1], strides = [1, 1]} : vector<56x1xf32> to vector<8x1xf32>
    %882 = vector.extract_strided_slice %795 {offsets = [24, 0], sizes = [8, 1], strides = [1, 1]} : vector<64x1xf32> to vector<8x1xf32>
    %883 = arith.addf %881, %882 : vector<8x1xf32>
    %884 = arith.mulf %880, %883 : vector<8x1xf32>
    %885 = arith.addf %859, %884 : vector<8x1xf32>
    %886 = vector.extract_strided_slice %1 {offsets = [24, 0], sizes = [8, 1], strides = [1, 1]} : vector<64x1xf32> to vector<8x1xf32>
    %887 = vector.extract_strided_slice %799 {offsets = [24, 0], sizes = [8, 1], strides = [1, 1]} : vector<64x1xf32> to vector<8x1xf32>
    %888 = arith.mulf %886, %887 : vector<8x1xf32>
    %889 = arith.addf %885, %888 : vector<8x1xf32>
    %890 = vector.extract_strided_slice %786 {offsets = [24, 0], sizes = [8, 5], strides = [1, 1]} : vector<64x5xf32> to vector<8x5xf32>
    %cst_173 = arith.constant dense<0xFF800000> : vector<8xf32>
    %891 = vector.multi_reduction <maximumf>, %879, %cst_173 [1] : vector<8x5xf32> to vector<8xf32>
    %892 = vector.shape_cast %891 : vector<8xf32> to vector<8x1xf32>
    %893 = vector.broadcast %892 : vector<8x1xf32> to vector<8x5xf32>
    %894 = arith.subf %879, %893 : vector<8x5xf32>
    %895 = math.exp %894 : vector<8x5xf32>
    %cst_174 = arith.constant dense<0.000000e+00> : vector<8x5xf32>
    %896 = tpu.matmul %895, %792, %cst_174 {dimension_numbers = #tpu.dot_dimension_numbers<[1], [0], [0], [1], [0, 0, 1, 1], [], []>} : vector<8x5xf32>, vector<5x5xf32>, vector<8x5xf32> -> vector<8x5xf32>
    %897 = vector.broadcast %892 : vector<8x1xf32> to vector<8x5xf32>
    %898 = vector.broadcast %789 : vector<1x5xf32> to vector<8x5xf32>
    %899 = arith.addf %897, %898 : vector<8x5xf32>
    %900 = math.log %896 : vector<8x5xf32>
    %901 = arith.addf %899, %900 : vector<8x5xf32>
    %902 = arith.addf %901, %890 : vector<8x5xf32>
    %903 = vector.broadcast %880 : vector<8x1xf32> to vector<8x5xf32>
    %904 = arith.mulf %903, %902 : vector<8x5xf32>
    %cst_175 = arith.constant 1.000000e+00 : f32
    %905 = vector.broadcast %cst_175 : f32 to vector<8x1xf32>
    %906 = arith.subf %905, %880 : vector<8x1xf32>
    %907 = vector.broadcast %906 : vector<8x1xf32> to vector<8x5xf32>
    %908 = arith.mulf %907, %879 : vector<8x5xf32>
    %909 = arith.addf %904, %908 : vector<8x5xf32>
    %910 = vector.extract_strided_slice %0 {offsets = [32, 0], sizes = [8, 1], strides = [1, 1]} : vector<64x1xf32> to vector<8x1xf32>
    %911 = vector.extract_strided_slice %805 {offsets = [24, 0], sizes = [8, 1], strides = [1, 1]} : vector<56x1xf32> to vector<8x1xf32>
    %912 = vector.extract_strided_slice %795 {offsets = [32, 0], sizes = [8, 1], strides = [1, 1]} : vector<64x1xf32> to vector<8x1xf32>
    %913 = arith.addf %911, %912 : vector<8x1xf32>
    %914 = arith.mulf %910, %913 : vector<8x1xf32>
    %915 = arith.addf %889, %914 : vector<8x1xf32>
    %916 = vector.extract_strided_slice %1 {offsets = [32, 0], sizes = [8, 1], strides = [1, 1]} : vector<64x1xf32> to vector<8x1xf32>
    %917 = vector.extract_strided_slice %799 {offsets = [32, 0], sizes = [8, 1], strides = [1, 1]} : vector<64x1xf32> to vector<8x1xf32>
    %918 = arith.mulf %916, %917 : vector<8x1xf32>
    %919 = arith.addf %915, %918 : vector<8x1xf32>
    %920 = vector.extract_strided_slice %786 {offsets = [32, 0], sizes = [8, 5], strides = [1, 1]} : vector<64x5xf32> to vector<8x5xf32>
    %cst_176 = arith.constant dense<0xFF800000> : vector<8xf32>
    %921 = vector.multi_reduction <maximumf>, %909, %cst_176 [1] : vector<8x5xf32> to vector<8xf32>
    %922 = vector.shape_cast %921 : vector<8xf32> to vector<8x1xf32>
    %923 = vector.broadcast %922 : vector<8x1xf32> to vector<8x5xf32>
    %924 = arith.subf %909, %923 : vector<8x5xf32>
    %925 = math.exp %924 : vector<8x5xf32>
    %cst_177 = arith.constant dense<0.000000e+00> : vector<8x5xf32>
    %926 = tpu.matmul %925, %792, %cst_177 {dimension_numbers = #tpu.dot_dimension_numbers<[1], [0], [0], [1], [0, 0, 1, 1], [], []>} : vector<8x5xf32>, vector<5x5xf32>, vector<8x5xf32> -> vector<8x5xf32>
    %927 = vector.broadcast %922 : vector<8x1xf32> to vector<8x5xf32>
    %928 = vector.broadcast %789 : vector<1x5xf32> to vector<8x5xf32>
    %929 = arith.addf %927, %928 : vector<8x5xf32>
    %930 = math.log %926 : vector<8x5xf32>
    %931 = arith.addf %929, %930 : vector<8x5xf32>
    %932 = arith.addf %931, %920 : vector<8x5xf32>
    %933 = vector.broadcast %910 : vector<8x1xf32> to vector<8x5xf32>
    %934 = arith.mulf %933, %932 : vector<8x5xf32>
    %cst_178 = arith.constant 1.000000e+00 : f32
    %935 = vector.broadcast %cst_178 : f32 to vector<8x1xf32>
    %936 = arith.subf %935, %910 : vector<8x1xf32>
    %937 = vector.broadcast %936 : vector<8x1xf32> to vector<8x5xf32>
    %938 = arith.mulf %937, %909 : vector<8x5xf32>
    %939 = arith.addf %934, %938 : vector<8x5xf32>
    %940 = vector.extract_strided_slice %0 {offsets = [40, 0], sizes = [8, 1], strides = [1, 1]} : vector<64x1xf32> to vector<8x1xf32>
    %941 = vector.extract_strided_slice %805 {offsets = [32, 0], sizes = [8, 1], strides = [1, 1]} : vector<56x1xf32> to vector<8x1xf32>
    %942 = vector.extract_strided_slice %795 {offsets = [40, 0], sizes = [8, 1], strides = [1, 1]} : vector<64x1xf32> to vector<8x1xf32>
    %943 = arith.addf %941, %942 : vector<8x1xf32>
    %944 = arith.mulf %940, %943 : vector<8x1xf32>
    %945 = arith.addf %919, %944 : vector<8x1xf32>
    %946 = vector.extract_strided_slice %1 {offsets = [40, 0], sizes = [8, 1], strides = [1, 1]} : vector<64x1xf32> to vector<8x1xf32>
    %947 = vector.extract_strided_slice %799 {offsets = [40, 0], sizes = [8, 1], strides = [1, 1]} : vector<64x1xf32> to vector<8x1xf32>
    %948 = arith.mulf %946, %947 : vector<8x1xf32>
    %949 = arith.addf %945, %948 : vector<8x1xf32>
    %950 = vector.extract_strided_slice %786 {offsets = [40, 0], sizes = [8, 5], strides = [1, 1]} : vector<64x5xf32> to vector<8x5xf32>
    %cst_179 = arith.constant dense<0xFF800000> : vector<8xf32>
    %951 = vector.multi_reduction <maximumf>, %939, %cst_179 [1] : vector<8x5xf32> to vector<8xf32>
    %952 = vector.shape_cast %951 : vector<8xf32> to vector<8x1xf32>
    %953 = vector.broadcast %952 : vector<8x1xf32> to vector<8x5xf32>
    %954 = arith.subf %939, %953 : vector<8x5xf32>
    %955 = math.exp %954 : vector<8x5xf32>
    %cst_180 = arith.constant dense<0.000000e+00> : vector<8x5xf32>
    %956 = tpu.matmul %955, %792, %cst_180 {dimension_numbers = #tpu.dot_dimension_numbers<[1], [0], [0], [1], [0, 0, 1, 1], [], []>} : vector<8x5xf32>, vector<5x5xf32>, vector<8x5xf32> -> vector<8x5xf32>
    %957 = vector.broadcast %952 : vector<8x1xf32> to vector<8x5xf32>
    %958 = vector.broadcast %789 : vector<1x5xf32> to vector<8x5xf32>
    %959 = arith.addf %957, %958 : vector<8x5xf32>
    %960 = math.log %956 : vector<8x5xf32>
    %961 = arith.addf %959, %960 : vector<8x5xf32>
    %962 = arith.addf %961, %950 : vector<8x5xf32>
    %963 = vector.broadcast %940 : vector<8x1xf32> to vector<8x5xf32>
    %964 = arith.mulf %963, %962 : vector<8x5xf32>
    %cst_181 = arith.constant 1.000000e+00 : f32
    %965 = vector.broadcast %cst_181 : f32 to vector<8x1xf32>
    %966 = arith.subf %965, %940 : vector<8x1xf32>
    %967 = vector.broadcast %966 : vector<8x1xf32> to vector<8x5xf32>
    %968 = arith.mulf %967, %939 : vector<8x5xf32>
    %969 = arith.addf %964, %968 : vector<8x5xf32>
    %970 = vector.extract_strided_slice %0 {offsets = [48, 0], sizes = [8, 1], strides = [1, 1]} : vector<64x1xf32> to vector<8x1xf32>
    %971 = vector.extract_strided_slice %805 {offsets = [40, 0], sizes = [8, 1], strides = [1, 1]} : vector<56x1xf32> to vector<8x1xf32>
    %972 = vector.extract_strided_slice %795 {offsets = [48, 0], sizes = [8, 1], strides = [1, 1]} : vector<64x1xf32> to vector<8x1xf32>
    %973 = arith.addf %971, %972 : vector<8x1xf32>
    %974 = arith.mulf %970, %973 : vector<8x1xf32>
    %975 = arith.addf %949, %974 : vector<8x1xf32>
    %976 = vector.extract_strided_slice %1 {offsets = [48, 0], sizes = [8, 1], strides = [1, 1]} : vector<64x1xf32> to vector<8x1xf32>
    %977 = vector.extract_strided_slice %799 {offsets = [48, 0], sizes = [8, 1], strides = [1, 1]} : vector<64x1xf32> to vector<8x1xf32>
    %978 = arith.mulf %976, %977 : vector<8x1xf32>
    %979 = arith.addf %975, %978 : vector<8x1xf32>
    %980 = vector.extract_strided_slice %786 {offsets = [48, 0], sizes = [8, 5], strides = [1, 1]} : vector<64x5xf32> to vector<8x5xf32>
    %cst_182 = arith.constant dense<0xFF800000> : vector<8xf32>
    %981 = vector.multi_reduction <maximumf>, %969, %cst_182 [1] : vector<8x5xf32> to vector<8xf32>
    %982 = vector.shape_cast %981 : vector<8xf32> to vector<8x1xf32>
    %983 = vector.broadcast %982 : vector<8x1xf32> to vector<8x5xf32>
    %984 = arith.subf %969, %983 : vector<8x5xf32>
    %985 = math.exp %984 : vector<8x5xf32>
    %cst_183 = arith.constant dense<0.000000e+00> : vector<8x5xf32>
    %986 = tpu.matmul %985, %792, %cst_183 {dimension_numbers = #tpu.dot_dimension_numbers<[1], [0], [0], [1], [0, 0, 1, 1], [], []>} : vector<8x5xf32>, vector<5x5xf32>, vector<8x5xf32> -> vector<8x5xf32>
    %987 = vector.broadcast %982 : vector<8x1xf32> to vector<8x5xf32>
    %988 = vector.broadcast %789 : vector<1x5xf32> to vector<8x5xf32>
    %989 = arith.addf %987, %988 : vector<8x5xf32>
    %990 = math.log %986 : vector<8x5xf32>
    %991 = arith.addf %989, %990 : vector<8x5xf32>
    %992 = arith.addf %991, %980 : vector<8x5xf32>
    %993 = vector.broadcast %970 : vector<8x1xf32> to vector<8x5xf32>
    %994 = arith.mulf %993, %992 : vector<8x5xf32>
    %cst_184 = arith.constant 1.000000e+00 : f32
    %995 = vector.broadcast %cst_184 : f32 to vector<8x1xf32>
    %996 = arith.subf %995, %970 : vector<8x1xf32>
    %997 = vector.broadcast %996 : vector<8x1xf32> to vector<8x5xf32>
    %998 = arith.mulf %997, %969 : vector<8x5xf32>
    %999 = arith.addf %994, %998 : vector<8x5xf32>
    %1000 = vector.extract_strided_slice %0 {offsets = [56, 0], sizes = [8, 1], strides = [1, 1]} : vector<64x1xf32> to vector<8x1xf32>
    %1001 = vector.extract_strided_slice %805 {offsets = [48, 0], sizes = [8, 1], strides = [1, 1]} : vector<56x1xf32> to vector<8x1xf32>
    %1002 = vector.extract_strided_slice %795 {offsets = [56, 0], sizes = [8, 1], strides = [1, 1]} : vector<64x1xf32> to vector<8x1xf32>
    %1003 = arith.addf %1001, %1002 : vector<8x1xf32>
    %1004 = arith.mulf %1000, %1003 : vector<8x1xf32>
    %1005 = arith.addf %979, %1004 : vector<8x1xf32>
    %1006 = vector.extract_strided_slice %1 {offsets = [56, 0], sizes = [8, 1], strides = [1, 1]} : vector<64x1xf32> to vector<8x1xf32>
    %1007 = vector.extract_strided_slice %799 {offsets = [56, 0], sizes = [8, 1], strides = [1, 1]} : vector<64x1xf32> to vector<8x1xf32>
    %1008 = arith.mulf %1006, %1007 : vector<8x1xf32>
    %1009 = arith.addf %1005, %1008 : vector<8x1xf32>
    %1010 = vector.extract_strided_slice %786 {offsets = [56, 0], sizes = [8, 5], strides = [1, 1]} : vector<64x5xf32> to vector<8x5xf32>
    %cst_185 = arith.constant dense<0xFF800000> : vector<8xf32>
    %1011 = vector.multi_reduction <maximumf>, %999, %cst_185 [1] : vector<8x5xf32> to vector<8xf32>
    %1012 = vector.shape_cast %1011 : vector<8xf32> to vector<8x1xf32>
    %1013 = vector.broadcast %1012 : vector<8x1xf32> to vector<8x5xf32>
    %1014 = arith.subf %999, %1013 : vector<8x5xf32>
    %1015 = math.exp %1014 : vector<8x5xf32>
    %cst_186 = arith.constant dense<0.000000e+00> : vector<8x5xf32>
    %1016 = tpu.matmul %1015, %792, %cst_186 {dimension_numbers = #tpu.dot_dimension_numbers<[1], [0], [0], [1], [0, 0, 1, 1], [], []>} : vector<8x5xf32>, vector<5x5xf32>, vector<8x5xf32> -> vector<8x5xf32>
    %1017 = vector.broadcast %1012 : vector<8x1xf32> to vector<8x5xf32>
    %1018 = vector.broadcast %789 : vector<1x5xf32> to vector<8x5xf32>
    %1019 = arith.addf %1017, %1018 : vector<8x5xf32>
    %1020 = math.log %1016 : vector<8x5xf32>
    %1021 = arith.addf %1019, %1020 : vector<8x5xf32>
    %1022 = arith.addf %1021, %1010 : vector<8x5xf32>
    %1023 = vector.broadcast %1000 : vector<8x1xf32> to vector<8x5xf32>
    %1024 = arith.mulf %1023, %1022 : vector<8x5xf32>
    %cst_187 = arith.constant 1.000000e+00 : f32
    %1025 = vector.broadcast %cst_187 : f32 to vector<8x1xf32>
    %1026 = arith.subf %1025, %1000 : vector<8x1xf32>
    %1027 = vector.broadcast %1026 : vector<8x1xf32> to vector<8x5xf32>
    %1028 = arith.mulf %1027, %999 : vector<8x5xf32>
    %1029 = arith.addf %1024, %1028 : vector<8x5xf32>
    %1030 = vector.broadcast %781 : vector<1x5xf32> to vector<8x5xf32>
    %1031 = arith.addf %1029, %1030 : vector<8x5xf32>
    %cst_188 = arith.constant dense<0xFF800000> : vector<8xf32>
    %1032 = vector.multi_reduction <maximumf>, %1031, %cst_188 [1] : vector<8x5xf32> to vector<8xf32>
    %1033 = vector.shape_cast %1032 : vector<8xf32> to vector<8x1xf32>
    %1034 = vector.broadcast %1033 : vector<8x1xf32> to vector<8x5xf32>
    %1035 = arith.subf %1031, %1034 : vector<8x5xf32>
    %1036 = math.exp %1035 : vector<8x5xf32>
    %cst_189 = arith.constant dense<0.000000e+00> : vector<8xf32>
    %1037 = vector.multi_reduction <add>, %1036, %cst_189 [1] : vector<8x5xf32> to vector<8xf32>
    %1038 = vector.shape_cast %1037 : vector<8xf32> to vector<8x1xf32>
    %1039 = math.log %1038 : vector<8x1xf32>
    %1040 = arith.addf %1033, %1039 : vector<8x1xf32>
    %1041 = arith.subf %1040, %1009 : vector<8x1xf32>
    %c0_190 = arith.constant 0 : index
    %c0_191 = arith.constant 0 : index
    %1042 = vector.load %arg10[%c0_190, %c0_191] : memref<8x1xf32, #tpu.memory_space<vmem>>, vector<8x1xf32>
    tpu.vector_store %arg10[%c0_190, %c0_191], %1041 {strides = array<i32>} : memref<8x1xf32, #tpu.memory_space<vmem>>, vector<8x1xf32>,
    return
  }
}

</mosaic_0001>

<llo_original>
// kernel: bilstm_crf_forward.1
$region0: #{bilstm_crf_forward.1}
  #allocation0 [shape = 'u32[]', space=smem, size = 0x4, offset = 0x4, fixed_abs, tag = 'smem constant byte address 0x4 - core index']
  #allocation1 [shape = 'u32[144,128]{1,0:T(1,128)}', space=vmem, size = 0x12000, scoped, tag = 'internal scratch']
  #allocation2 [shape = 'f32[64,32]{1,0:T(8,128)}', space=vmem, size = 0x8000, scoped, tag = 'scratch operand']
  #allocation3 [shape = 'f32[64,32]{1,0:T(8,128)}', space=vmem, size = 0x8000, scoped, tag = 'scratch operand']
  %s0 = inlined_call_operand.vmem [shape: f32[64,32], index: 0, kind: input, shape index: {}]
  %s1 = inlined_call_operand.vmem [shape: f32[64,2], index: 1, kind: input, shape index: {}]
  %s2 = inlined_call_operand.vmem [shape: f32[64,5], index: 2, kind: input, shape index: {}]
  %s3 = inlined_call_operand.vmem [shape: f32[32,128], index: 3, kind: input, shape index: {}]
  %s4 = inlined_call_operand.vmem [shape: f32[32,128], index: 4, kind: input, shape index: {}]
  %s5 = inlined_call_operand.vmem [shape: f32[32,128], index: 5, kind: input, shape index: {}]
  %s6 = inlined_call_operand.vmem [shape: f32[32,128], index: 6, kind: input, shape index: {}]
  %s7 = inlined_call_operand.vmem [shape: f32[2,128], index: 7, kind: input, shape index: {}]
  %s8 = inlined_call_operand.vmem [shape: f32[32,5], index: 8, kind: input, shape index: {}]
  %s9 = inlined_call_operand.vmem [shape: f32[8,5], index: 9, kind: input, shape index: {}]
  %s10 = inlined_call_operand.vmem [shape: f32[8,1], index: 10, kind: output, shape index: {}]
  %s11 = sld [smem:[#allocation0]]
  $region50: #{bilstm_crf_forward.1} parent=0
    _
  %s13 = ssub.s32 1, %s11
  %s14 = scalar_select 0, %s13, %s11
  // Predicated region
  $region2: #{bilstm_crf_forward.1} parent=0 // pred_check
    _
  $region3: #{bilstm_crf_forward.1} parent=0 // pred_check_branch
    %16 = sbr.rel (0) target = $region5
  $region4: #{bilstm_crf_forward.1} parent=0 // pred_region
    _
  $region5: #{bilstm_crf_forward.1} parent=0 // pred_fallthru
    _
  // Predicated region
  $region6: #{bilstm_crf_forward.1} parent=0 // pred_check
    _
  $region7: #{bilstm_crf_forward.1} parent=0 // pred_check_branch
    %18 = sbr.rel (0) target = $region9
  $region8: #{bilstm_crf_forward.1} parent=0 // pred_region
    _
  $region9: #{bilstm_crf_forward.1} parent=0 // pred_fallthru
    _
  // Predicated region
  $region10: #{bilstm_crf_forward.1} parent=0 // pred_check
    _
  $region11: #{bilstm_crf_forward.1} parent=0 // pred_check_branch
    %20 = sbr.rel (0) target = $region13
  $region12: #{bilstm_crf_forward.1} parent=0 // pred_region
    _
  $region13: #{bilstm_crf_forward.1} parent=0 // pred_fallthru
    _
  // Predicated region
  $region14: #{bilstm_crf_forward.1} parent=0 // pred_check
    _
  $region15: #{bilstm_crf_forward.1} parent=0 // pred_check_branch
    %22 = sbr.rel (0) target = $region17
  $region16: #{bilstm_crf_forward.1} parent=0 // pred_region
    _
  $region17: #{bilstm_crf_forward.1} parent=0 // pred_fallthru
    _
  // Predicated region
  $region18: #{bilstm_crf_forward.1} parent=0 // pred_check
    _
  $region19: #{bilstm_crf_forward.1} parent=0 // pred_check_branch
    %24 = sbr.rel (0) target = $region21
  $region20: #{bilstm_crf_forward.1} parent=0 // pred_region
    _
  $region21: #{bilstm_crf_forward.1} parent=0 // pred_fallthru
    _
  // Predicated region
  $region22: #{bilstm_crf_forward.1} parent=0 // pred_check
    _
  $region23: #{bilstm_crf_forward.1} parent=0 // pred_check_branch
    %26 = sbr.rel (0) target = $region25
  $region24: #{bilstm_crf_forward.1} parent=0 // pred_region
    _
  $region25: #{bilstm_crf_forward.1} parent=0 // pred_fallthru
    _
  // Predicated region
  $region26: #{bilstm_crf_forward.1} parent=0 // pred_check
    _
  $region27: #{bilstm_crf_forward.1} parent=0 // pred_check_branch
    %28 = sbr.rel (0) target = $region29
  $region28: #{bilstm_crf_forward.1} parent=0 // pred_region
    _
  $region29: #{bilstm_crf_forward.1} parent=0 // pred_fallthru
    _
  // Predicated region
  $region30: #{bilstm_crf_forward.1} parent=0 // pred_check
    _
  $region31: #{bilstm_crf_forward.1} parent=0 // pred_check_branch
    %30 = sbr.rel (0) target = $region33
  $region32: #{bilstm_crf_forward.1} parent=0 // pred_region
    _
  $region33: #{bilstm_crf_forward.1} parent=0 // pred_fallthru
    _
  // Predicated region
  $region34: #{bilstm_crf_forward.1} parent=0 // pred_check
    _
  $region35: #{bilstm_crf_forward.1} parent=0 // pred_check_branch
    %32 = sbr.rel (0) target = $region37
  $region36: #{bilstm_crf_forward.1} parent=0 // pred_region
    _
  $region37: #{bilstm_crf_forward.1} parent=0 // pred_fallthru
    _
  // Predicated region
  $region38: #{bilstm_crf_forward.1} parent=0 // pred_check
    _
  $region39: #{bilstm_crf_forward.1} parent=0 // pred_check_branch
    %34 = sbr.rel (0) target = $region41
  $region40: #{bilstm_crf_forward.1} parent=0 // pred_region
    _
  $region41: #{bilstm_crf_forward.1} parent=0 // pred_fallthru
    _
  %v35 = vld [vmem:[%s1] sm:$0xff]
  %v36 = vld [vmem:[%s1 + $0x8] sm:$0xff]
  %v37 = vld [vmem:[%s1 + $0x10] sm:$0xff]
  %v38 = vld [vmem:[%s1 + $0x18] sm:$0xff]
  %v39 = vld [vmem:[%s1 + $0x20] sm:$0xff]
  %v40 = vld [vmem:[%s1 + $0x28] sm:$0xff]
  %v41 = vld [vmem:[%s1 + $0x30] sm:$0xff]
  %v42 = vld [vmem:[%s1 + $0x38] sm:$0xff]
  %v43 = vlaneseq
  %v44 = vand.u32 %v43, 127
  %vm45 = vcmp.lt.s32.totalorder %v44, 0
  %v46 = vsub.s32 0, %v44
  %v47 = vsel %vm45, %v46, %v44
  %v48 = vshrl.u32 %v47, 5
  %v49 = vand.u32 %v47, 31
  %v50 = vsub.s32 0, %v49
  %v51 = vsel %vm45, %v50, %v49
  %vm52 = vcmp.ne.s32.totalorder %v51, 0
  %vm53 = vcmp.lt.s32.totalorder %v51, 0
  %vm54 = vmand %vm53, %vm52
  %v55 = vadd.s32 %v51, 32
  %v56 = vsel %vm54, %v55, %v51
  %vm57 = vcmp.lt.s32.totalorder %v56, 16
  %vm58 = vcmp.lt.s32.totalorder %v44, 16
  %v59 = vld [vmem:[%s0] sm:$0xff]
  %v60 = vld [vmem:[%s0 + $0x8] sm:$0xff]
  %v61 = vld [vmem:[%s0 + $0x10] sm:$0xff]
  %v62 = vld [vmem:[%s0 + $0x18] sm:$0xff]
  %v63 = vld [vmem:[%s0 + $0x20] sm:$0xff]
  %v64 = vld [vmem:[%s0 + $0x28] sm:$0xff]
  %v65 = vld [vmem:[%s0 + $0x30] sm:$0xff]
  %v66 = vld [vmem:[%s0 + $0x38] sm:$0xff]
  %v67 = vld [vmem:[%s3] sm:$0xff]
  %v68 = vld [vmem:[%s3 + $0x8] sm:$0xff]
  %v69 = vld [vmem:[%s3 + $0x10] sm:$0xff]
  %v70 = vld [vmem:[%s3 + $0x18] sm:$0xff]
  %v71 = vld [vmem:[%s7] sm:$0x1]
  %v72 = vlaneseq
  %v73 = vshrl.u32 %v72, 7
  %v74 = vsub.s32 0, %v73
  %v75 = vrot.slane %v71, %v74
  %vm76 = vcmask 261120
  %v78 = vsel %vm76, %v59, 0
  %v81 = vsel %vm76, %v60, 0
  %v84 = vsel %vm76, %v61, 0
  %v87 = vsel %vm76, %v62, 0
  %v90 = vsel %vm76, %v63, 0
  %v93 = vsel %vm76, %v64, 0
  %v96 = vsel %vm76, %v65, 0
  %v99 = vsel %vm76, %v66, 0
  %101 = vmatprep.subr.mxu0 0.0
  %102 = vmatpush1.msra.mxu0 %v67
  %103 = vmatprep.subr.mxu0 0.0
  %104 = vmatpush1.msra.mxu0 %v68
  %105 = vmatprep.subr.mxu0 0.0
  %106 = vmatpush1.msra.mxu0 %v69
  %107 = vmatprep.subr.mxu0 0.0
  %108 = vmatpush1.msra.mxu0 %v70
  %109 = vmatprep.subr.mxu0 0.0
  %110 = vmatpush1.msra.mxu0 0.0
  %111 = vmatprep.subr.mxu0 0.0
  %112 = vmatpush1.msra.mxu0 0.0
  %113 = vmatprep.subr.mxu0 0.0
  %114 = vmatpush1.msra.mxu0 0.0
  %115 = vmatprep.subr.mxu0 0.0
  %116 = vmatpush1.msra.mxu0 0.0
  %117 = vmatprep.subr.mxu0 0.0
  %118 = vmatpush1.msra.mxu0 0.0
  %119 = vmatprep.subr.mxu0 0.0
  %120 = vmatpush1.msra.mxu0 0.0
  %121 = vmatprep.subr.mxu0 0.0
  %122 = vmatpush1.msra.mxu0 0.0
  %123 = vmatprep.subr.mxu0 0.0
  %124 = vmatpush1.msra.mxu0 0.0
  %125 = vmatprep.subr.mxu0 0.0
  %126 = vmatpush1.msra.mxu0 0.0
  %127 = vmatprep.subr.mxu0 0.0
  %128 = vmatpush1.msra.mxu0 0.0
  %129 = vmatprep.subr.mxu0 0.0
  %130 = vmatpush1.msra.mxu0 0.0
  %131 = vmatprep.subr.mxu0 0.0
  %132 = vmatpush1.msra.mxu0 0.0
  %133 = vmatprep.subr.mxu0 0.0
  %134 = vmatpush1.msra.mxu0 0.0
  %135 = vmatprep.subr.mxu0 0.0
  %136 = vmatpush1.msra.mxu0 0.0
  %137 = vmatprep.subr.mxu0 0.0
  %138 = vmatpush1.msra.mxu0 0.0
  %139 = vmatprep.subr.mxu0 0.0
  %140 = vmatpush1.msra.mxu0 0.0
  %141 = vmatprep.subr.mxu0 0.0
  %142 = vmatpush1.msra.mxu0 0.0
  %143 = vmatprep.subr.mxu0 0.0
  %144 = vmatpush1.msra.mxu0 0.0
  %145 = vmatprep.subr.mxu0 0.0
  %146 = vmatpush1.msra.mxu0 0.0
  %147 = vmatprep.subr.mxu0 0.0
  %148 = vmatpush1.msra.mxu0 0.0
  %149 = vmatprep.subr.mxu0 0.0
  %150 = vmatpush1.msra.mxu0 0.0
  %151 = vmatprep.subr.mxu0 0.0
  %152 = vmatpush1.msra.mxu0 0.0
  %153 = vmatprep.subr.mxu0 0.0
  %154 = vmatpush1.msra.mxu0 0.0
  %155 = vmatprep.subr.mxu0 0.0
  %156 = vmatpush1.msra.mxu0 0.0
  %157 = vmatprep.subr.mxu0 0.0
  %158 = vmatpush1.msra.mxu0 0.0
  %159 = vmatprep.subr.mxu0 0.0
  %160 = vmatpush1.msra.mxu0 0.0
  %161 = vmatprep.subr.mxu0 0.0
  %162 = vmatpush1.msra.mxu0 0.0
  %163 = vmatprep.subr.mxu0 0.0
  %164 = vmatpush1.msra.mxu0 0.0
  %165 = vmatprep.mubr.f32.mxu0 0.0
  %166 = vmatmul.mubr.f32.gmra.mrb[0].mxu0 %v78
  %v167 = vpop.f32.mrb[0].mxu0
  %v168 = vadd.f32 %v75, %v167
  %v169 = vpop.f32.mrb[0].mxu0
  %170 = vmatprep.mubr.f32.mxu0 0.0
  %171 = vmatmul.mubr.f32.gmra.mrb[0].mxu0 %v81
  %v172 = vpop.f32.mrb[0].mxu0
  %v173 = vadd.f32 %v75, %v172
  %v174 = vpop.f32.mrb[0].mxu0
  %175 = vmatprep.mubr.f32.mxu0 0.0
  %176 = vmatmul.mubr.f32.gmra.mrb[0].mxu0 %v84
  %v177 = vpop.f32.mrb[0].mxu0
  %v178 = vadd.f32 %v75, %v177
  %v179 = vpop.f32.mrb[0].mxu0
  %180 = vmatprep.mubr.f32.mxu0 0.0
  %181 = vmatmul.mubr.f32.gmra.mrb[0].mxu0 %v87
  %v182 = vpop.f32.mrb[0].mxu0
  %v183 = vadd.f32 %v75, %v182
  %v184 = vpop.f32.mrb[0].mxu0
  %185 = vmatprep.mubr.f32.mxu0 0.0
  %186 = vmatmul.mubr.f32.gmra.mrb[0].mxu0 %v90
  %v187 = vpop.f32.mrb[0].mxu0
  %v188 = vadd.f32 %v75, %v187
  %v189 = vpop.f32.mrb[0].mxu0
  %190 = vmatprep.mubr.f32.mxu0 0.0
  %191 = vmatmul.mubr.f32.gmra.mrb[0].mxu0 %v93
  %v192 = vpop.f32.mrb[0].mxu0
  %v193 = vadd.f32 %v75, %v192
  %v194 = vpop.f32.mrb[0].mxu0
  %195 = vmatprep.mubr.f32.mxu0 0.0
  %196 = vmatmul.mubr.f32.gmra.mrb[0].mxu0 %v96
  %v197 = vpop.f32.mrb[0].mxu0
  %v198 = vadd.f32 %v75, %v197
  %v199 = vpop.f32.mrb[0].mxu0
  %200 = vmatprep.mubr.f32.mxu0 0.0
  %201 = vmatmul.mubr.f32.gmra.mrb[0].mxu0 %v99
  %v202 = vpop.f32.mrb[0].mxu0
  %v203 = vadd.f32 %v75, %v202
  %v204 = vpop.f32.mrb[0].mxu0
  %205 = vdwg.mxu0
  %v206 = vld [vmem:[%s4] sm:$0xff]
  %v207 = vld [vmem:[%s4 + $0x8] sm:$0xff]
  %v208 = vld [vmem:[%s4 + $0x10] sm:$0xff]
  %v209 = vld [vmem:[%s4 + $0x18] sm:$0xff]
  %v210 = vsel %vm58, 1, 0
  %vm211 = vcmp.eq.s32.totalorder %v210, 1
  %213 = vset.pattern.permute.xlu0 0
  %214 = vperm.xlu0 %213, %v35
  %v215 = vpop.permute.xlu0 %214
  %218 = vset.pattern.permute.xlu0 0
  %219 = vperm.xlu0 %218, %v42
  %v220 = vpop.permute.xlu0 %219
  %v222 = vsel %vm211, %v215, %v220
  %v223 = vsel %vm57, 1, 0
  %vm224 = vcmp.eq.s32.totalorder %v223, 1
  %v225 = vsel %vm224, %v168, %v203
  %v227 = vsel %vm76, 0.0, 0
  %229 = vmatprep.subr.mxu0 0.0
  %230 = vmatpush1.msra.mxu0 %v206
  %231 = vmatprep.subr.mxu0 0.0
  %232 = vmatpush1.msra.mxu0 %v207
  %233 = vmatprep.subr.mxu0 0.0
  %234 = vmatpush1.msra.mxu0 %v208
  %235 = vmatprep.subr.mxu0 0.0
  %236 = vmatpush1.msra.mxu0 %v209
  %237 = vmatprep.subr.mxu0 0.0
  %238 = vmatpush1.msra.mxu0 0.0
  %239 = vmatprep.subr.mxu0 0.0
  %240 = vmatpush1.msra.mxu0 0.0
  %241 = vmatprep.subr.mxu0 0.0
  %242 = vmatpush1.msra.mxu0 0.0
  %243 = vmatprep.subr.mxu0 0.0
  %244 = vmatpush1.msra.mxu0 0.0
  %245 = vmatprep.subr.mxu0 0.0
  %246 = vmatpush1.msra.mxu0 0.0
  %247 = vmatprep.subr.mxu0 0.0
  %248 = vmatpush1.msra.mxu0 0.0
  %249 = vmatprep.subr.mxu0 0.0
  %250 = vmatpush1.msra.mxu0 0.0
  %251 = vmatprep.subr.mxu0 0.0
  %252 = vmatpush1.msra.mxu0 0.0
  %253 = vmatprep.subr.mxu0 0.0
  %254 = vmatpush1.msra.mxu0 0.0
  %255 = vmatprep.subr.mxu0 0.0
  %256 = vmatpush1.msra.mxu0 0.0
  %257 = vmatprep.subr.mxu0 0.0
  %258 = vmatpush1.msra.mxu0 0.0
  %259 = vmatprep.subr.mxu0 0.0
  %260 = vmatpush1.msra.mxu0 0.0
  %261 = vmatprep.subr.mxu0 0.0
  %262 = vmatpush1.msra.mxu0 0.0
  %263 = vmatprep.subr.mxu0 0.0
  %264 = vmatpush1.msra.mxu0 0.0
  %265 = vmatprep.subr.mxu0 0.0
  %266 = vmatpush1.msra.mxu0 0.0
  %267 = vmatprep.subr.mxu0 0.0
  %268 = vmatpush1.msra.mxu0 0.0
  %269 = vmatprep.subr.mxu0 0.0
  %270 = vmatpush1.msra.mxu0 0.0
  %271 = vmatprep.subr.mxu0 0.0
  %272 = vmatpush1.msra.mxu0 0.0
  %273 = vmatprep.subr.mxu0 0.0
  %274 = vmatpush1.msra.mxu0 0.0
  %275 = vmatprep.subr.mxu0 0.0
  %276 = vmatpush1.msra.mxu0 0.0
  %277 = vmatprep.subr.mxu0 0.0
  %278 = vmatpush1.msra.mxu0 0.0
  %279 = vmatprep.subr.mxu0 0.0
  %280 = vmatpush1.msra.mxu0 0.0
  %281 = vmatprep.subr.mxu0 0.0
  %282 = vmatpush1.msra.mxu0 0.0
  %283 = vmatprep.subr.mxu0 0.0
  %284 = vmatpush1.msra.mxu0 0.0
  %285 = vmatprep.subr.mxu0 0.0
  %286 = vmatpush1.msra.mxu0 0.0
  %287 = vmatprep.subr.mxu0 0.0
  %288 = vmatpush1.msra.mxu0 0.0
  %289 = vmatprep.subr.mxu0 0.0
  %290 = vmatpush1.msra.mxu0 0.0
  %291 = vmatprep.subr.mxu0 0.0
  %292 = vmatpush1.msra.mxu0 0.0
  %293 = vmatprep.mubr.f32.mxu0 0.0
  %294 = vmatmul.mubr.f32.gmra.mrb[0].mxu0 %v227
  %v295 = vpop.f32.mrb[0].mxu0
  %v296 = vadd.f32 0.0, %v295
  %v297 = vpop.f32.mrb[0].mxu0
  %298 = vdwg.mxu0
  %v299 = vadd.f32 %v225, %v296
  %v300 = vxor.u32 %v299, 2147483648
  %v301 = vmul.f32 %v300, 1.442695
  %v302 = vpow.pop %v301
  %v303 = vadd.f32 %v302, 1.0
  %v304 = vrcp.pop %v303
  %v305 = vmul.f32 1.0, %v304
  %v306 = vtanh.pop %v299
  %v307 = vmul.f32 %v305, 0.0
  %309 = vrot.lane.b32.xlu0 %v306, 32
  %v310 = vpop.permute.xlu0 %309
  %v312 = vmul.f32 %v305, %v310
  %314 = vrot.lane.b32.xlu0 %v312, 32
  %v315 = vpop.permute.xlu0 %314
  %v317 = vadd.f32 %v307, %v315
  %v318 = vtanh.pop %v317
  %320 = vrot.lane.b32.xlu0 %v318, 32
  %v321 = vpop.permute.xlu0 %320
  %v323 = vmul.f32 %v305, %v321
  %325 = vrot.lane.b32.xlu0 %v323, 64
  %v326 = vpop.permute.xlu0 %325
  %v328 = vmul.f32 %v222, %v326
  %v329 = vsub.f32 1.0, %v222
  %v330 = vmul.f32 %v329, 0.0
  %v331 = vadd.f32 %v328, %v330
  %333 = vrot.lane.b32.xlu0 %v317, 96
  %v334 = vpop.permute.xlu0 %333
  %v336 = vmul.f32 %v222, %v334
  %v337 = vadd.f32 %v336, %v330
  %vm338 = vcmask 130048
  %339 = vst.msk [vmem:[#allocation2] sm:$0xff] %vm338, %v328
  %vm340 = vcmask 261248
  %341 = vst.msk [vmem:[#allocation2 + $0x38] sm:$0xff] %vm340, %v328
  %343 = vset.pattern.permute.xlu0 0
  %344 = vperm.xlu0 %343, %v36
  %v345 = vpop.permute.xlu0 %344
  %348 = vset.pattern.permute.xlu0 0
  %349 = vperm.xlu0 %348, %v41
  %v350 = vpop.permute.xlu0 %349
  %v352 = vsel %vm211, %v345, %v350
  %v353 = vsel %vm224, %v173, %v198
  %v355 = vsel %vm76, %v331, 0
  %357 = vmatprep.subr.mxu0 0.0
  %358 = vmatpush1.msra.mxu0 %v206
  %359 = vmatprep.subr.mxu0 0.0
  %360 = vmatpush1.msra.mxu0 %v207
  %361 = vmatprep.subr.mxu0 0.0
  %362 = vmatpush1.msra.mxu0 %v208
  %363 = vmatprep.subr.mxu0 0.0
  %364 = vmatpush1.msra.mxu0 %v209
  %365 = vmatprep.subr.mxu0 0.0
  %366 = vmatpush1.msra.mxu0 0.0
  %367 = vmatprep.subr.mxu0 0.0
  %368 = vmatpush1.msra.mxu0 0.0
  %369 = vmatprep.subr.mxu0 0.0
  %370 = vmatpush1.msra.mxu0 0.0
  %371 = vmatprep.subr.mxu0 0.0
  %372 = vmatpush1.msra.mxu0 0.0
  %373 = vmatprep.subr.mxu0 0.0
  %374 = vmatpush1.msra.mxu0 0.0
  %375 = vmatprep.subr.mxu0 0.0
  %376 = vmatpush1.msra.mxu0 0.0
  %377 = vmatprep.subr.mxu0 0.0
  %378 = vmatpush1.msra.mxu0 0.0
  %379 = vmatprep.subr.mxu0 0.0
  %380 = vmatpush1.msra.mxu0 0.0
  %381 = vmatprep.subr.mxu0 0.0
  %382 = vmatpush1.msra.mxu0 0.0
  %383 = vmatprep.subr.mxu0 0.0
  %384 = vmatpush1.msra.mxu0 0.0
  %385 = vmatprep.subr.mxu0 0.0
  %386 = vmatpush1.msra.mxu0 0.0
  %387 = vmatprep.subr.mxu0 0.0
  %388 = vmatpush1.msra.mxu0 0.0
  %389 = vmatprep.subr.mxu0 0.0
  %390 = vmatpush1.msra.mxu0 0.0
  %391 = vmatprep.subr.mxu0 0.0
  %392 = vmatpush1.msra.mxu0 0.0
  %393 = vmatprep.subr.mxu0 0.0
  %394 = vmatpush1.msra.mxu0 0.0
  %395 = vmatprep.subr.mxu0 0.0
  %396 = vmatpush1.msra.mxu0 0.0
  %397 = vmatprep.subr.mxu0 0.0
  %398 = vmatpush1.msra.mxu0 0.0
  %399 = vmatprep.subr.mxu0 0.0
  %400 = vmatpush1.msra.mxu0 0.0
  %401 = vmatprep.subr.mxu0 0.0
  %402 = vmatpush1.msra.mxu0 0.0
  %403 = vmatprep.subr.mxu0 0.0
  %404 = vmatpush1.msra.mxu0 0.0
  %405 = vmatprep.subr.mxu0 0.0
  %406 = vmatpush1.msra.mxu0 0.0
  %407 = vmatprep.subr.mxu0 0.0
  %408 = vmatpush1.msra.mxu0 0.0
  %409 = vmatprep.subr.mxu0 0.0
  %410 = vmatpush1.msra.mxu0 0.0
  %411 = vmatprep.subr.mxu0 0.0
  %412 = vmatpush1.msra.mxu0 0.0
  %413 = vmatprep.subr.mxu0 0.0
  %414 = vmatpush1.msra.mxu0 0.0
  %415 = vmatprep.subr.mxu0 0.0
  %416 = vmatpush1.msra.mxu0 0.0
  %417 = vmatprep.subr.mxu0 0.0
  %418 = vmatpush1.msra.mxu0 0.0
  %419 = vmatprep.subr.mxu0 0.0
  %420 = vmatpush1.msra.mxu0 0.0
  %421 = vmatprep.mubr.f32.mxu0 0.0
  %422 = vmatmul.mubr.f32.gmra.mrb[0].mxu0 %v355
  %v423 = vpop.f32.mrb[0].mxu0
  %v424 = vadd.f32 0.0, %v423
  %v425 = vpop.f32.mrb[0].mxu0
  %426 = vdwg.mxu0
  %v427 = vadd.f32 %v353, %v424
  %v428 = vxor.u32 %v427, 2147483648
  %v429 = vmul.f32 %v428, 1.442695
  %v430 = vpow.pop %v429
  %v431 = vadd.f32 %v430, 1.0
  %v432 = vrcp.pop %v431
  %v433 = vmul.f32 1.0, %v432
  %v434 = vtanh.pop %v427
  %436 = vrot.lane.b32.xlu0 %v337, 32
  %v437 = vpop.permute.xlu0 %436
  %v439 = vmul.f32 %v433, %v437
  %441 = vrot.lane.b32.xlu0 %v434, 32
  %v442 = vpop.permute.xlu0 %441
  %v444 = vmul.f32 %v433, %v442
  %446 = vrot.lane.b32.xlu0 %v444, 32
  %v447 = vpop.permute.xlu0 %446
  %v449 = vadd.f32 %v439, %v447
  %v450 = vtanh.pop %v449
  %452 = vrot.lane.b32.xlu0 %v450, 32
  %v453 = vpop.permute.xlu0 %452
  %v455 = vmul.f32 %v433, %v453
  %457 = vrot.lane.b32.xlu0 %v455, 64
  %v458 = vpop.permute.xlu0 %457
  %v460 = vmul.f32 %v352, %v458
  %v461 = vsub.f32 1.0, %v352
  %v462 = vmul.f32 %v461, %v331
  %v463 = vadd.f32 %v460, %v462
  %465 = vrot.lane.b32.xlu0 %v449, 96
  %v466 = vpop.permute.xlu0 %465
  %v468 = vmul.f32 %v352, %v466
  %v469 = vmul.f32 %v461, %v337
  %v470 = vadd.f32 %v468, %v469
  %471 = vst.msk [vmem:[#allocation2 + $0x8] sm:$0xff] %vm338, %v460
  %472 = vst.msk [vmem:[#allocation2 + $0x30] sm:$0xff] %vm340, %v460
  %474 = vset.pattern.permute.xlu0 0
  %475 = vperm.xlu0 %474, %v37
  %v476 = vpop.permute.xlu0 %475
  %479 = vset.pattern.permute.xlu0 0
  %480 = vperm.xlu0 %479, %v40
  %v481 = vpop.permute.xlu0 %480
  %v483 = vsel %vm211, %v476, %v481
  %v484 = vsel %vm224, %v178, %v193
  %v486 = vsel %vm76, %v463, 0
  %488 = vmatprep.subr.mxu0 0.0
  %489 = vmatpush1.msra.mxu0 %v206
  %490 = vmatprep.subr.mxu0 0.0
  %491 = vmatpush1.msra.mxu0 %v207
  %492 = vmatprep.subr.mxu0 0.0
  %493 = vmatpush1.msra.mxu0 %v208
  %494 = vmatprep.subr.mxu0 0.0
  %495 = vmatpush1.msra.mxu0 %v209
  %496 = vmatprep.subr.mxu0 0.0
  %497 = vmatpush1.msra.mxu0 0.0
  %498 = vmatprep.subr.mxu0 0.0
  %499 = vmatpush1.msra.mxu0 0.0
  %500 = vmatprep.subr.mxu0 0.0
  %501 = vmatpush1.msra.mxu0 0.0
  %502 = vmatprep.subr.mxu0 0.0
  %503 = vmatpush1.msra.mxu0 0.0
  %504 = vmatprep.subr.mxu0 0.0
  %505 = vmatpush1.msra.mxu0 0.0
  %506 = vmatprep.subr.mxu0 0.0
  %507 = vmatpush1.msra.mxu0 0.0
  %508 = vmatprep.subr.mxu0 0.0
  %509 = vmatpush1.msra.mxu0 0.0
  %510 = vmatprep.subr.mxu0 0.0
  %511 = vmatpush1.msra.mxu0 0.0
  %512 = vmatprep.subr.mxu0 0.0
  %513 = vmatpush1.msra.mxu0 0.0
  %514 = vmatprep.subr.mxu0 0.0
  %515 = vmatpush1.msra.mxu0 0.0
  %516 = vmatprep.subr.mxu0 0.0
  %517 = vmatpush1.msra.mxu0 0.0
  %518 = vmatprep.subr.mxu0 0.0
  %519 = vmatpush1.msra.mxu0 0.0
  %520 = vmatprep.subr.mxu0 0.0
  %521 = vmatpush1.msra.mxu0 0.0
  %522 = vmatprep.subr.mxu0 0.0
  %523 = vmatpush1.msra.mxu0 0.0
  %524 = vmatprep.subr.mxu0 0.0
  %525 = vmatpush1.msra.mxu0 0.0
  %526 = vmatprep.subr.mxu0 0.0
  %527 = vmatpush1.msra.mxu0 0.0
  %528 = vmatprep.subr.mxu0 0.0
  %529 = vmatpush1.msra.mxu0 0.0
  %530 = vmatprep.subr.mxu0 0.0
  %531 = vmatpush1.msra.mxu0 0.0
  %532 = vmatprep.subr.mxu0 0.0
  %533 = vmatpush1.msra.mxu0 0.0
  %534 = vmatprep.subr.mxu0 0.0
  %535 = vmatpush1.msra.mxu0 0.0
  %536 = vmatprep.subr.mxu0 0.0
  %537 = vmatpush1.msra.mxu0 0.0
  %538 = vmatprep.subr.mxu0 0.0
  %539 = vmatpush1.msra.mxu0 0.0
  %540 = vmatprep.subr.mxu0 0.0
  %541 = vmatpush1.msra.mxu0 0.0
  %542 = vmatprep.subr.mxu0 0.0
  %543 = vmatpush1.msra.mxu0 0.0
  %544 = vmatprep.subr.mxu0 0.0
  %545 = vmatpush1.msra.mxu0 0.0
  %546 = vmatprep.subr.mxu0 0.0
  %547 = vmatpush1.msra.mxu0 0.0
  %548 = vmatprep.subr.mxu0 0.0
  %549 = vmatpush1.msra.mxu0 0.0
  %550 = vmatprep.subr.mxu0 0.0
  %551 = vmatpush1.msra.mxu0 0.0
  %552 = vmatprep.mubr.f32.mxu0 0.0
  %553 = vmatmul.mubr.f32.gmra.mrb[0].mxu0 %v486
  %v554 = vpop.f32.mrb[0].mxu0
  %v555 = vadd.f32 0.0, %v554
  %v556 = vpop.f32.mrb[0].mxu0
  %557 = vdwg.mxu0
  %v558 = vadd.f32 %v484, %v555
  %v559 = vxor.u32 %v558, 2147483648
  %v560 = vmul.f32 %v559, 1.442695
  %v561 = vpow.pop %v560
  %v562 = vadd.f32 %v561, 1.0
  %v563 = vrcp.pop %v562
  %v564 = vmul.f32 1.0, %v563
  %v565 = vtanh.pop %v558
  %567 = vrot.lane.b32.xlu0 %v470, 32
  %v568 = vpop.permute.xlu0 %567
  %v570 = vmul.f32 %v564, %v568
  %572 = vrot.lane.b32.xlu0 %v565, 32
  %v573 = vpop.permute.xlu0 %572
  %v575 = vmul.f32 %v564, %v573
  %577 = vrot.lane.b32.xlu0 %v575, 32
  %v578 = vpop.permute.xlu0 %577
  %v580 = vadd.f32 %v570, %v578
  %v581 = vtanh.pop %v580
  %583 = vrot.lane.b32.xlu0 %v581, 32
  %v584 = vpop.permute.xlu0 %583
  %v586 = vmul.f32 %v564, %v584
  %588 = vrot.lane.b32.xlu0 %v586, 64
  %v589 = vpop.permute.xlu0 %588
  %v591 = vmul.f32 %v483, %v589
  %v592 = vsub.f32 1.0, %v483
  %v593 = vmul.f32 %v592, %v463
  %v594 = vadd.f32 %v591, %v593
  %596 = vrot.lane.b32.xlu0 %v580, 96
  %v597 = vpop.permute.xlu0 %596
  %v599 = vmul.f32 %v483, %v597
  %v600 = vmul.f32 %v592, %v470
  %v601 = vadd.f32 %v599, %v600
  %602 = vst.msk [vmem:[#allocation2 + $0x10] sm:$0xff] %vm338, %v591
  %603 = vst.msk [vmem:[#allocation2 + $0x28] sm:$0xff] %vm340, %v591
  %605 = vset.pattern.permute.xlu0 0
  %606 = vperm.xlu0 %605, %v38
  %v607 = vpop.permute.xlu0 %606
  %610 = vset.pattern.permute.xlu0 0
  %611 = vperm.xlu0 %610, %v39
  %v612 = vpop.permute.xlu0 %611
  %v614 = vsel %vm211, %v607, %v612
  %v615 = vsel %vm224, %v183, %v188
  %v617 = vsel %vm76, %v594, 0
  %619 = vmatprep.subr.mxu0 0.0
  %620 = vmatpush1.msra.mxu0 %v206
  %621 = vmatprep.subr.mxu0 0.0
  %622 = vmatpush1.msra.mxu0 %v207
  %623 = vmatprep.subr.mxu0 0.0
  %624 = vmatpush1.msra.mxu0 %v208
  %625 = vmatprep.subr.mxu0 0.0
  %626 = vmatpush1.msra.mxu0 %v209
  %627 = vmatprep.subr.mxu0 0.0
  %628 = vmatpush1.msra.mxu0 0.0
  %629 = vmatprep.subr.mxu0 0.0
  %630 = vmatpush1.msra.mxu0 0.0
  %631 = vmatprep.subr.mxu0 0.0
  %632 = vmatpush1.msra.mxu0 0.0
  %633 = vmatprep.subr.mxu0 0.0
  %634 = vmatpush1.msra.mxu0 0.0
  %635 = vmatprep.subr.mxu0 0.0
  %636 = vmatpush1.msra.mxu0 0.0
  %637 = vmatprep.subr.mxu0 0.0
  %638 = vmatpush1.msra.mxu0 0.0
  %639 = vmatprep.subr.mxu0 0.0
  %640 = vmatpush1.msra.mxu0 0.0
  %641 = vmatprep.subr.mxu0 0.0
  %642 = vmatpush1.msra.mxu0 0.0
  %643 = vmatprep.subr.mxu0 0.0
  %644 = vmatpush1.msra.mxu0 0.0
  %645 = vmatprep.subr.mxu0 0.0
  %646 = vmatpush1.msra.mxu0 0.0
  %647 = vmatprep.subr.mxu0 0.0
  %648 = vmatpush1.msra.mxu0 0.0
  %649 = vmatprep.subr.mxu0 0.0
  %650 = vmatpush1.msra.mxu0 0.0
  %651 = vmatprep.subr.mxu0 0.0
  %652 = vmatpush1.msra.mxu0 0.0
  %653 = vmatprep.subr.mxu0 0.0
  %654 = vmatpush1.msra.mxu0 0.0
  %655 = vmatprep.subr.mxu0 0.0
  %656 = vmatpush1.msra.mxu0 0.0
  %657 = vmatprep.subr.mxu0 0.0
  %658 = vmatpush1.msra.mxu0 0.0
  %659 = vmatprep.subr.mxu0 0.0
  %660 = vmatpush1.msra.mxu0 0.0
  %661 = vmatprep.subr.mxu0 0.0
  %662 = vmatpush1.msra.mxu0 0.0
  %663 = vmatprep.subr.mxu0 0.0
  %664 = vmatpush1.msra.mxu0 0.0
  %665 = vmatprep.subr.mxu0 0.0
  %666 = vmatpush1.msra.mxu0 0.0
  %667 = vmatprep.subr.mxu0 0.0
  %668 = vmatpush1.msra.mxu0 0.0
  %669 = vmatprep.subr.mxu0 0.0
  %670 = vmatpush1.msra.mxu0 0.0
  %671 = vmatprep.subr.mxu0 0.0
  %672 = vmatpush1.msra.mxu0 0.0
  %673 = vmatprep.subr.mxu0 0.0
  %674 = vmatpush1.msra.mxu0 0.0
  %675 = vmatprep.subr.mxu0 0.0
  %676 = vmatpush1.msra.mxu0 0.0
  %677 = vmatprep.subr.mxu0 0.0
  %678 = vmatpush1.msra.mxu0 0.0
  %679 = vmatprep.subr.mxu0 0.0
  %680 = vmatpush1.msra.mxu0 0.0
  %681 = vmatprep.subr.mxu0 0.0
  %682 = vmatpush1.msra.mxu0 0.0
  %683 = vmatprep.mubr.f32.mxu0 0.0
  %684 = vmatmul.mubr.f32.gmra.mrb[0].mxu0 %v617
  %v685 = vpop.f32.mrb[0].mxu0
  %v686 = vadd.f32 0.0, %v685
  %v687 = vpop.f32.mrb[0].mxu0
  %688 = vdwg.mxu0
  %v689 = vadd.f32 %v615, %v686
  %v690 = vxor.u32 %v689, 2147483648
  %v691 = vmul.f32 %v690, 1.442695
  %v692 = vpow.pop %v691
  %v693 = vadd.f32 %v692, 1.0
  %v694 = vrcp.pop %v693
  %v695 = vmul.f32 1.0, %v694
  %v696 = vtanh.pop %v689
  %698 = vrot.lane.b32.xlu0 %v601, 32
  %v699 = vpop.permute.xlu0 %698
  %v701 = vmul.f32 %v695, %v699
  %703 = vrot.lane.b32.xlu0 %v696, 32
  %v704 = vpop.permute.xlu0 %703
  %v706 = vmul.f32 %v695, %v704
  %708 = vrot.lane.b32.xlu0 %v706, 32
  %v709 = vpop.permute.xlu0 %708
  %v711 = vadd.f32 %v701, %v709
  %v712 = vtanh.pop %v711
  %714 = vrot.lane.b32.xlu0 %v712, 32
  %v715 = vpop.permute.xlu0 %714
  %v717 = vmul.f32 %v695, %v715
  %719 = vrot.lane.b32.xlu0 %v717, 64
  %v720 = vpop.permute.xlu0 %719
  %v722 = vmul.f32 %v614, %v720
  %v723 = vsub.f32 1.0, %v614
  %v724 = vmul.f32 %v723, %v594
  %v725 = vadd.f32 %v722, %v724
  %727 = vrot.lane.b32.xlu0 %v711, 96
  %v728 = vpop.permute.xlu0 %727
  %v730 = vmul.f32 %v614, %v728
  %v731 = vmul.f32 %v723, %v601
  %v732 = vadd.f32 %v730, %v731
  %733 = vst.msk [vmem:[#allocation2 + $0x18] sm:$0xff] %vm338, %v722
  %734 = vst.msk [vmem:[#allocation2 + $0x20] sm:$0xff] %vm340, %v722
  %v735 = vsel %vm211, %v612, %v607
  %v736 = vsel %vm224, %v188, %v183
  %v738 = vsel %vm76, %v725, 0
  %740 = vmatprep.subr.mxu0 0.0
  %741 = vmatpush1.msra.mxu0 %v206
  %742 = vmatprep.subr.mxu0 0.0
  %743 = vmatpush1.msra.mxu0 %v207
  %744 = vmatprep.subr.mxu0 0.0
  %745 = vmatpush1.msra.mxu0 %v208
  %746 = vmatprep.subr.mxu0 0.0
  %747 = vmatpush1.msra.mxu0 %v209
  %748 = vmatprep.subr.mxu0 0.0
  %749 = vmatpush1.msra.mxu0 0.0
  %750 = vmatprep.subr.mxu0 0.0
  %751 = vmatpush1.msra.mxu0 0.0
  %752 = vmatprep.subr.mxu0 0.0
  %753 = vmatpush1.msra.mxu0 0.0
  %754 = vmatprep.subr.mxu0 0.0
  %755 = vmatpush1.msra.mxu0 0.0
  %756 = vmatprep.subr.mxu0 0.0
  %757 = vmatpush1.msra.mxu0 0.0
  %758 = vmatprep.subr.mxu0 0.0
  %759 = vmatpush1.msra.mxu0 0.0
  %760 = vmatprep.subr.mxu0 0.0
  %761 = vmatpush1.msra.mxu0 0.0
  %762 = vmatprep.subr.mxu0 0.0
  %763 = vmatpush1.msra.mxu0 0.0
  %764 = vmatprep.subr.mxu0 0.0
  %765 = vmatpush1.msra.mxu0 0.0
  %766 = vmatprep.subr.mxu0 0.0
  %767 = vmatpush1.msra.mxu0 0.0
  %768 = vmatprep.subr.mxu0 0.0
  %769 = vmatpush1.msra.mxu0 0.0
  %770 = vmatprep.subr.mxu0 0.0
  %771 = vmatpush1.msra.mxu0 0.0
  %772 = vmatprep.subr.mxu0 0.0
  %773 = vmatpush1.msra.mxu0 0.0
  %774 = vmatprep.subr.mxu0 0.0
  %775 = vmatpush1.msra.mxu0 0.0
  %776 = vmatprep.subr.mxu0 0.0
  %777 = vmatpush1.msra.mxu0 0.0
  %778 = vmatprep.subr.mxu0 0.0
  %779 = vmatpush1.msra.mxu0 0.0
  %780 = vmatprep.subr.mxu0 0.0
  %781 = vmatpush1.msra.mxu0 0.0
  %782 = vmatprep.subr.mxu0 0.0
  %783 = vmatpush1.msra.mxu0 0.0
  %784 = vmatprep.subr.mxu0 0.0
  %785 = vmatpush1.msra.mxu0 0.0
  %786 = vmatprep.subr.mxu0 0.0
  %787 = vmatpush1.msra.mxu0 0.0
  %788 = vmatprep.subr.mxu0 0.0
  %789 = vmatpush1.msra.mxu0 0.0
  %790 = vmatprep.subr.mxu0 0.0
  %791 = vmatpush1.msra.mxu0 0.0
  %792 = vmatprep.subr.mxu0 0.0
  %793 = vmatpush1.msra.mxu0 0.0
  %794 = vmatprep.subr.mxu0 0.0
  %795 = vmatpush1.msra.mxu0 0.0
  %796 = vmatprep.subr.mxu0 0.0
  %797 = vmatpush1.msra.mxu0 0.0
  %798 = vmatprep.subr.mxu0 0.0
  %799 = vmatpush1.msra.mxu0 0.0
  %800 = vmatprep.subr.mxu0 0.0
  %801 = vmatpush1.msra.mxu0 0.0
  %802 = vmatprep.subr.mxu0 0.0
  %803 = vmatpush1.msra.mxu0 0.0
  %804 = vmatprep.mubr.f32.mxu0 0.0
  %805 = vmatmul.mubr.f32.gmra.mrb[0].mxu0 %v738
  %v806 = vpop.f32.mrb[0].mxu0
  %v807 = vadd.f32 0.0, %v806
  %v808 = vpop.f32.mrb[0].mxu0
  %809 = vdwg.mxu0
  %v810 = vadd.f32 %v736, %v807
  %v811 = vxor.u32 %v810, 2147483648
  %v812 = vmul.f32 %v811, 1.442695
  %v813 = vpow.pop %v812
  %v814 = vadd.f32 %v813, 1.0
  %v815 = vrcp.pop %v814
  %v816 = vmul.f32 1.0, %v815
  %v817 = vtanh.pop %v810
  %819 = vrot.lane.b32.xlu0 %v732, 32
  %v820 = vpop.permute.xlu0 %819
  %v822 = vmul.f32 %v816, %v820
  %824 = vrot.lane.b32.xlu0 %v817, 32
  %v825 = vpop.permute.xlu0 %824
  %v827 = vmul.f32 %v816, %v825
  %829 = vrot.lane.b32.xlu0 %v827, 32
  %v830 = vpop.permute.xlu0 %829
  %v832 = vadd.f32 %v822, %v830
  %v833 = vtanh.pop %v832
  %835 = vrot.lane.b32.xlu0 %v833, 32
  %v836 = vpop.permute.xlu0 %835
  %v838 = vmul.f32 %v816, %v836
  %840 = vrot.lane.b32.xlu0 %v838, 64
  %v841 = vpop.permute.xlu0 %840
  %v843 = vmul.f32 %v735, %v841
  %v844 = vsub.f32 1.0, %v735
  %v845 = vmul.f32 %v844, %v725
  %v846 = vadd.f32 %v843, %v845
  %848 = vrot.lane.b32.xlu0 %v832, 96
  %v849 = vpop.permute.xlu0 %848
  %v851 = vmul.f32 %v735, %v849
  %v852 = vmul.f32 %v844, %v732
  %v853 = vadd.f32 %v851, %v852
  %854 = vst.msk [vmem:[#allocation2 + $0x20] sm:$0xff] %vm338, %v843
  %855 = vst.msk [vmem:[#allocation2 + $0x18] sm:$0xff] %vm340, %v843
  %v856 = vsel %vm211, %v481, %v476
  %v857 = vsel %vm224, %v193, %v178
  %v859 = vsel %vm76, %v846, 0
  %861 = vmatprep.subr.mxu0 0.0
  %862 = vmatpush1.msra.mxu0 %v206
  %863 = vmatprep.subr.mxu0 0.0
  %864 = vmatpush1.msra.mxu0 %v207
  %865 = vmatprep.subr.mxu0 0.0
  %866 = vmatpush1.msra.mxu0 %v208
  %867 = vmatprep.subr.mxu0 0.0
  %868 = vmatpush1.msra.mxu0 %v209
  %869 = vmatprep.subr.mxu0 0.0
  %870 = vmatpush1.msra.mxu0 0.0
  %871 = vmatprep.subr.mxu0 0.0
  %872 = vmatpush1.msra.mxu0 0.0
  %873 = vmatprep.subr.mxu0 0.0
  %874 = vmatpush1.msra.mxu0 0.0
  %875 = vmatprep.subr.mxu0 0.0
  %876 = vmatpush1.msra.mxu0 0.0
  %877 = vmatprep.subr.mxu0 0.0
  %878 = vmatpush1.msra.mxu0 0.0
  %879 = vmatprep.subr.mxu0 0.0
  %880 = vmatpush1.msra.mxu0 0.0
  %881 = vmatprep.subr.mxu0 0.0
  %882 = vmatpush1.msra.mxu0 0.0
  %883 = vmatprep.subr.mxu0 0.0
  %884 = vmatpush1.msra.mxu0 0.0
  %885 = vmatprep.subr.mxu0 0.0
  %886 = vmatpush1.msra.mxu0 0.0
  %887 = vmatprep.subr.mxu0 0.0
  %888 = vmatpush1.msra.mxu0 0.0
  %889 = vmatprep.subr.mxu0 0.0
  %890 = vmatpush1.msra.mxu0 0.0
  %891 = vmatprep.subr.mxu0 0.0
  %892 = vmatpush1.msra.mxu0 0.0
  %893 = vmatprep.subr.mxu0 0.0
  %894 = vmatpush1.msra.mxu0 0.0
  %895 = vmatprep.subr.mxu0 0.0
  %896 = vmatpush1.msra.mxu0 0.0
  %897 = vmatprep.subr.mxu0 0.0
  %898 = vmatpush1.msra.mxu0 0.0
  %899 = vmatprep.subr.mxu0 0.0
  %900 = vmatpush1.msra.mxu0 0.0
  %901 = vmatprep.subr.mxu0 0.0
  %902 = vmatpush1.msra.mxu0 0.0
  %903 = vmatprep.subr.mxu0 0.0
  %904 = vmatpush1.msra.mxu0 0.0
  %905 = vmatprep.subr.mxu0 0.0
  %906 = vmatpush1.msra.mxu0 0.0
  %907 = vmatprep.subr.mxu0 0.0
  %908 = vmatpush1.msra.mxu0 0.0
  %909 = vmatprep.subr.mxu0 0.0
  %910 = vmatpush1.msra.mxu0 0.0
  %911 = vmatprep.subr.mxu0 0.0
  %912 = vmatpush1.msra.mxu0 0.0
  %913 = vmatprep.subr.mxu0 0.0
  %914 = vmatpush1.msra.mxu0 0.0
  %915 = vmatprep.subr.mxu0 0.0
  %916 = vmatpush1.msra.mxu0 0.0
  %917 = vmatprep.subr.mxu0 0.0
  %918 = vmatpush1.msra.mxu0 0.0
  %919 = vmatprep.subr.mxu0 0.0
  %920 = vmatpush1.msra.mxu0 0.0
  %921 = vmatprep.subr.mxu0 0.0
  %922 = vmatpush1.msra.mxu0 0.0
  %923 = vmatprep.subr.mxu0 0.0
  %924 = vmatpush1.msra.mxu0 0.0
  %925 = vmatprep.mubr.f32.mxu0 0.0
  %926 = vmatmul.mubr.f32.gmra.mrb[0].mxu0 %v859
  %v927 = vpop.f32.mrb[0].mxu0
  %v928 = vadd.f32 0.0, %v927
  %v929 = vpop.f32.mrb[0].mxu0
  %930 = vdwg.mxu0
  %v931 = vadd.f32 %v857, %v928
  %v932 = vxor.u32 %v931, 2147483648
  %v933 = vmul.f32 %v932, 1.442695
  %v934 = vpow.pop %v933
  %v935 = vadd.f32 %v934, 1.0
  %v936 = vrcp.pop %v935
  %v937 = vmul.f32 1.0, %v936
  %v938 = vtanh.pop %v931
  %940 = vrot.lane.b32.xlu0 %v853, 32
  %v941 = vpop.permute.xlu0 %940
  %v943 = vmul.f32 %v937, %v941
  %945 = vrot.lane.b32.xlu0 %v938, 32
  %v946 = vpop.permute.xlu0 %945
  %v948 = vmul.f32 %v937, %v946
  %950 = vrot.lane.b32.xlu0 %v948, 32
  %v951 = vpop.permute.xlu0 %950
  %v953 = vadd.f32 %v943, %v951
  %v954 = vtanh.pop %v953
  %956 = vrot.lane.b32.xlu0 %v954, 32
  %v957 = vpop.permute.xlu0 %956
  %v959 = vmul.f32 %v937, %v957
  %961 = vrot.lane.b32.xlu0 %v959, 64
  %v962 = vpop.permute.xlu0 %961
  %v964 = vmul.f32 %v856, %v962
  %v965 = vsub.f32 1.0, %v856
  %v966 = vmul.f32 %v965, %v846
  %v967 = vadd.f32 %v964, %v966
  %969 = vrot.lane.b32.xlu0 %v953, 96
  %v970 = vpop.permute.xlu0 %969
  %v972 = vmul.f32 %v856, %v970
  %v973 = vmul.f32 %v965, %v853
  %v974 = vadd.f32 %v972, %v973
  %975 = vst.msk [vmem:[#allocation2 + $0x28] sm:$0xff] %vm338, %v964
  %976 = vst.msk [vmem:[#allocation2 + $0x10] sm:$0xff] %vm340, %v964
  %v977 = vsel %vm211, %v350, %v345
  %v978 = vsel %vm224, %v198, %v173
  %v980 = vsel %vm76, %v967, 0
  %982 = vmatprep.subr.mxu0 0.0
  %983 = vmatpush1.msra.mxu0 %v206
  %984 = vmatprep.subr.mxu0 0.0
  %985 = vmatpush1.msra.mxu0 %v207
  %986 = vmatprep.subr.mxu0 0.0
  %987 = vmatpush1.msra.mxu0 %v208
  %988 = vmatprep.subr.mxu0 0.0
  %989 = vmatpush1.msra.mxu0 %v209
  %990 = vmatprep.subr.mxu0 0.0
  %991 = vmatpush1.msra.mxu0 0.0
  %992 = vmatprep.subr.mxu0 0.0
  %993 = vmatpush1.msra.mxu0 0.0
  %994 = vmatprep.subr.mxu0 0.0
  %995 = vmatpush1.msra.mxu0 0.0
  %996 = vmatprep.subr.mxu0 0.0
  %997 = vmatpush1.msra.mxu0 0.0
  %998 = vmatprep.subr.mxu0 0.0
  %999 = vmatpush1.msra.mxu0 0.0
  %1000 = vmatprep.subr.mxu0 0.0
  %1001 = vmatpush1.msra.mxu0 0.0
  %1002 = vmatprep.subr.mxu0 0.0
  %1003 = vmatpush1.msra.mxu0 0.0
  %1004 = vmatprep.subr.mxu0 0.0
  %1005 = vmatpush1.msra.mxu0 0.0
  %1006 = vmatprep.subr.mxu0 0.0
  %1007 = vmatpush1.msra.mxu0 0.0
  %1008 = vmatprep.subr.mxu0 0.0
  %1009 = vmatpush1.msra.mxu0 0.0
  %1010 = vmatprep.subr.mxu0 0.0
  %1011 = vmatpush1.msra.mxu0 0.0
  %1012 = vmatprep.subr.mxu0 0.0
  %1013 = vmatpush1.msra.mxu0 0.0
  %1014 = vmatprep.subr.mxu0 0.0
  %1015 = vmatpush1.msra.mxu0 0.0
  %1016 = vmatprep.subr.mxu0 0.0
  %1017 = vmatpush1.msra.mxu0 0.0
  %1018 = vmatprep.subr.mxu0 0.0
  %1019 = vmatpush1.msra.mxu0 0.0
  %1020 = vmatprep.subr.mxu0 0.0
  %1021 = vmatpush1.msra.mxu0 0.0
  %1022 = vmatprep.subr.mxu0 0.0
  %1023 = vmatpush1.msra.mxu0 0.0
  %1024 = vmatprep.subr.mxu0 0.0
  %1025 = vmatpush1.msra.mxu0 0.0
  %1026 = vmatprep.subr.mxu0 0.0
  %1027 = vmatpush1.msra.mxu0 0.0
  %1028 = vmatprep.subr.mxu0 0.0
  %1029 = vmatpush1.msra.mxu0 0.0
  %1030 = vmatprep.subr.mxu0 0.0
  %1031 = vmatpush1.msra.mxu0 0.0
  %1032 = vmatprep.subr.mxu0 0.0
  %1033 = vmatpush1.msra.mxu0 0.0
  %1034 = vmatprep.subr.mxu0 0.0
  %1035 = vmatpush1.msra.mxu0 0.0
  %1036 = vmatprep.subr.mxu0 0.0
  %1037 = vmatpush1.msra.mxu0 0.0
  %1038 = vmatprep.subr.mxu0 0.0
  %1039 = vmatpush1.msra.mxu0 0.0
  %1040 = vmatprep.subr.mxu0 0.0
  %1041 = vmatpush1.msra.mxu0 0.0
  %1042 = vmatprep.subr.mxu0 0.0
  %1043 = vmatpush1.msra.mxu0 0.0
  %1044 = vmatprep.subr.mxu0 0.0
  %1045 = vmatpush1.msra.mxu0 0.0
  %1046 = vmatprep.mubr.f32.mxu0 0.0
  %1047 = vmatmul.mubr.f32.gmra.mrb[0].mxu0 %v980
  %v1048 = vpop.f32.mrb[0].mxu0
  %v1049 = vadd.f32 0.0, %v1048
  %v1050 = vpop.f32.mrb[0].mxu0
  %1051 = vdwg.mxu0
  %v1052 = vadd.f32 %v978, %v1049
  %v1053 = vxor.u32 %v1052, 2147483648
  %v1054 = vmul.f32 %v1053, 1.442695
  %v1055 = vpow.pop %v1054
  %v1056 = vadd.f32 %v1055, 1.0
  %v1057 = vrcp.pop %v1056
  %v1058 = vmul.f32 1.0, %v1057
  %v1059 = vtanh.pop %v1052
  %1061 = vrot.lane.b32.xlu0 %v974, 32
  %v1062 = vpop.permute.xlu0 %1061
  %v1064 = vmul.f32 %v1058, %v1062
  %1066 = vrot.lane.b32.xlu0 %v1059, 32
  %v1067 = vpop.permute.xlu0 %1066
  %v1069 = vmul.f32 %v1058, %v1067
  %1071 = vrot.lane.b32.xlu0 %v1069, 32
  %v1072 = vpop.permute.xlu0 %1071
  %v1074 = vadd.f32 %v1064, %v1072
  %v1075 = vtanh.pop %v1074
  %1077 = vrot.lane.b32.xlu0 %v1075, 32
  %v1078 = vpop.permute.xlu0 %1077
  %v1080 = vmul.f32 %v1058, %v1078
  %1082 = vrot.lane.b32.xlu0 %v1080, 64
  %v1083 = vpop.permute.xlu0 %1082
  %v1085 = vmul.f32 %v977, %v1083
  %v1086 = vsub.f32 1.0, %v977
  %v1087 = vmul.f32 %v1086, %v967
  %v1088 = vadd.f32 %v1085, %v1087
  %1090 = vrot.lane.b32.xlu0 %v1074, 96
  %v1091 = vpop.permute.xlu0 %1090
  %v1093 = vmul.f32 %v977, %v1091
  %v1094 = vmul.f32 %v1086, %v974
  %v1095 = vadd.f32 %v1093, %v1094
  %1096 = vst.msk [vmem:[#allocation2 + $0x30] sm:$0xff] %vm338, %v1085
  %1097 = vst.msk [vmem:[#allocation2 + $0x8] sm:$0xff] %vm340, %v1085
  %v1098 = vsel %vm211, %v220, %v215
  %v1099 = vsel %vm224, %v203, %v168
  %v1101 = vsel %vm76, %v1088, 0
  %1103 = vmatprep.subr.mxu0 0.0
  %1104 = vmatpush1.msra.mxu0 %v206
  %1105 = vmatprep.subr.mxu0 0.0
  %1106 = vmatpush1.msra.mxu0 %v207
  %1107 = vmatprep.subr.mxu0 0.0
  %1108 = vmatpush1.msra.mxu0 %v208
  %1109 = vmatprep.subr.mxu0 0.0
  %1110 = vmatpush1.msra.mxu0 %v209
  %1111 = vmatprep.subr.mxu0 0.0
  %1112 = vmatpush1.msra.mxu0 0.0
  %1113 = vmatprep.subr.mxu0 0.0
  %1114 = vmatpush1.msra.mxu0 0.0
  %1115 = vmatprep.subr.mxu0 0.0
  %1116 = vmatpush1.msra.mxu0 0.0
  %1117 = vmatprep.subr.mxu0 0.0
  %1118 = vmatpush1.msra.mxu0 0.0
  %1119 = vmatprep.subr.mxu0 0.0
  %1120 = vmatpush1.msra.mxu0 0.0
  %1121 = vmatprep.subr.mxu0 0.0
  %1122 = vmatpush1.msra.mxu0 0.0
  %1123 = vmatprep.subr.mxu0 0.0
  %1124 = vmatpush1.msra.mxu0 0.0
  %1125 = vmatprep.subr.mxu0 0.0
  %1126 = vmatpush1.msra.mxu0 0.0
  %1127 = vmatprep.subr.mxu0 0.0
  %1128 = vmatpush1.msra.mxu0 0.0
  %1129 = vmatprep.subr.mxu0 0.0
  %1130 = vmatpush1.msra.mxu0 0.0
  %1131 = vmatprep.subr.mxu0 0.0
  %1132 = vmatpush1.msra.mxu0 0.0
  %1133 = vmatprep.subr.mxu0 0.0
  %1134 = vmatpush1.msra.mxu0 0.0
  %1135 = vmatprep.subr.mxu0 0.0
  %1136 = vmatpush1.msra.mxu0 0.0
  %1137 = vmatprep.subr.mxu0 0.0
  %1138 = vmatpush1.msra.mxu0 0.0
  %1139 = vmatprep.subr.mxu0 0.0
  %1140 = vmatpush1.msra.mxu0 0.0
  %1141 = vmatprep.subr.mxu0 0.0
  %1142 = vmatpush1.msra.mxu0 0.0
  %1143 = vmatprep.subr.mxu0 0.0
  %1144 = vmatpush1.msra.mxu0 0.0
  %1145 = vmatprep.subr.mxu0 0.0
  %1146 = vmatpush1.msra.mxu0 0.0
  %1147 = vmatprep.subr.mxu0 0.0
  %1148 = vmatpush1.msra.mxu0 0.0
  %1149 = vmatprep.subr.mxu0 0.0
  %1150 = vmatpush1.msra.mxu0 0.0
  %1151 = vmatprep.subr.mxu0 0.0
  %1152 = vmatpush1.msra.mxu0 0.0
  %1153 = vmatprep.subr.mxu0 0.0
  %1154 = vmatpush1.msra.mxu0 0.0
  %1155 = vmatprep.subr.mxu0 0.0
  %1156 = vmatpush1.msra.mxu0 0.0
  %1157 = vmatprep.subr.mxu0 0.0
  %1158 = vmatpush1.msra.mxu0 0.0
  %1159 = vmatprep.subr.mxu0 0.0
  %1160 = vmatpush1.msra.mxu0 0.0
  %1161 = vmatprep.subr.mxu0 0.0
  %1162 = vmatpush1.msra.mxu0 0.0
  %1163 = vmatprep.subr.mxu0 0.0
  %1164 = vmatpush1.msra.mxu0 0.0
  %1165 = vmatprep.subr.mxu0 0.0
  %1166 = vmatpush1.msra.mxu0 0.0
  %1167 = vmatprep.mubr.f32.mxu0 0.0
  %1168 = vmatmul.mubr.f32.gmra.mrb[0].mxu0 %v1101
  %v1169 = vpop.f32.mrb[0].mxu0
  %v1170 = vadd.f32 0.0, %v1169
  %v1171 = vpop.f32.mrb[0].mxu0
  %1172 = vdwg.mxu0
  %v1173 = vadd.f32 %v1099, %v1170
  %v1174 = vxor.u32 %v1173, 2147483648
  %v1175 = vmul.f32 %v1174, 1.442695
  %v1176 = vpow.pop %v1175
  %v1177 = vadd.f32 %v1176, 1.0
  %v1178 = vrcp.pop %v1177
  %v1179 = vmul.f32 1.0, %v1178
  %v1180 = vtanh.pop %v1173
  %1182 = vrot.lane.b32.xlu0 %v1095, 32
  %v1183 = vpop.permute.xlu0 %1182
  %v1185 = vmul.f32 %v1179, %v1183
  %1187 = vrot.lane.b32.xlu0 %v1180, 32
  %v1188 = vpop.permute.xlu0 %1187
  %v1190 = vmul.f32 %v1179, %v1188
  %1192 = vrot.lane.b32.xlu0 %v1190, 32
  %v1193 = vpop.permute.xlu0 %1192
  %v1195 = vadd.f32 %v1185, %v1193
  %v1196 = vtanh.pop %v1195
  %1198 = vrot.lane.b32.xlu0 %v1196, 32
  %v1199 = vpop.permute.xlu0 %1198
  %v1201 = vmul.f32 %v1179, %v1199
  %1203 = vrot.lane.b32.xlu0 %v1201, 64
  %v1204 = vpop.permute.xlu0 %1203
  %v1206 = vmul.f32 %v1098, %v1204
  %1207 = vst.msk [vmem:[#allocation2 + $0x38] sm:$0xff] %vm338, %v1206
  %1208 = vst.msk [vmem:[#allocation2] sm:$0xff] %vm340, %v1206
  %v1209 = vld [vmem:[#allocation2] sm:$0xff]
  %v1210 = vld [vmem:[#allocation2 + $0x8] sm:$0xff]
  %v1211 = vld [vmem:[#allocation2 + $0x10] sm:$0xff]
  %v1212 = vld [vmem:[#allocation2 + $0x18] sm:$0xff]
  %v1213 = vld [vmem:[#allocation2 + $0x20] sm:$0xff]
  %v1214 = vld [vmem:[#allocation2 + $0x28] sm:$0xff]
  %v1215 = vld [vmem:[#allocation2 + $0x30] sm:$0xff]
  %v1216 = vld [vmem:[#allocation2 + $0x38] sm:$0xff]
  %v1217 = vld [vmem:[%s5] sm:$0xff]
  %v1218 = vld [vmem:[%s5 + $0x8] sm:$0xff]
  %v1219 = vld [vmem:[%s5 + $0x10] sm:$0xff]
  %v1220 = vld [vmem:[%s5 + $0x18] sm:$0xff]
  %v1221 = vld [vmem:[%s7 + $0x1] sm:$0x1]
  %v1222 = vlaneseq
  %v1223 = vshrl.u32 %v1222, 7
  %v1224 = vsub.s32 0, %v1223
  %v1225 = vrot.slane %v1221, %v1224
  %v1227 = vsel %vm76, %v1209, 0
  %v1230 = vsel %vm76, %v1210, 0
  %v1233 = vsel %vm76, %v1211, 0
  %v1236 = vsel %vm76, %v1212, 0
  %v1239 = vsel %vm76, %v1213, 0
  %v1242 = vsel %vm76, %v1214, 0
  %v1245 = vsel %vm76, %v1215, 0
  %v1248 = vsel %vm76, %v1216, 0
  %1250 = vmatprep.subr.mxu0 0.0
  %1251 = vmatpush1.msra.mxu0 %v1217
  %1252 = vmatprep.subr.mxu0 0.0
  %1253 = vmatpush1.msra.mxu0 %v1218
  %1254 = vmatprep.subr.mxu0 0.0
  %1255 = vmatpush1.msra.mxu0 %v1219
  %1256 = vmatprep.subr.mxu0 0.0
  %1257 = vmatpush1.msra.mxu0 %v1220
  %1258 = vmatprep.subr.mxu0 0.0
  %1259 = vmatpush1.msra.mxu0 0.0
  %1260 = vmatprep.subr.mxu0 0.0
  %1261 = vmatpush1.msra.mxu0 0.0
  %1262 = vmatprep.subr.mxu0 0.0
  %1263 = vmatpush1.msra.mxu0 0.0
  %1264 = vmatprep.subr.mxu0 0.0
  %1265 = vmatpush1.msra.mxu0 0.0
  %1266 = vmatprep.subr.mxu0 0.0
  %1267 = vmatpush1.msra.mxu0 0.0
  %1268 = vmatprep.subr.mxu0 0.0
  %1269 = vmatpush1.msra.mxu0 0.0
  %1270 = vmatprep.subr.mxu0 0.0
  %1271 = vmatpush1.msra.mxu0 0.0
  %1272 = vmatprep.subr.mxu0 0.0
  %1273 = vmatpush1.msra.mxu0 0.0
  %1274 = vmatprep.subr.mxu0 0.0
  %1275 = vmatpush1.msra.mxu0 0.0
  %1276 = vmatprep.subr.mxu0 0.0
  %1277 = vmatpush1.msra.mxu0 0.0
  %1278 = vmatprep.subr.mxu0 0.0
  %1279 = vmatpush1.msra.mxu0 0.0
  %1280 = vmatprep.subr.mxu0 0.0
  %1281 = vmatpush1.msra.mxu0 0.0
  %1282 = vmatprep.subr.mxu0 0.0
  %1283 = vmatpush1.msra.mxu0 0.0
  %1284 = vmatprep.subr.mxu0 0.0
  %1285 = vmatpush1.msra.mxu0 0.0
  %1286 = vmatprep.subr.mxu0 0.0
  %1287 = vmatpush1.msra.mxu0 0.0
  %1288 = vmatprep.subr.mxu0 0.0
  %1289 = vmatpush1.msra.mxu0 0.0
  %1290 = vmatprep.subr.mxu0 0.0
  %1291 = vmatpush1.msra.mxu0 0.0
  %1292 = vmatprep.subr.mxu0 0.0
  %1293 = vmatpush1.msra.mxu0 0.0
  %1294 = vmatprep.subr.mxu0 0.0
  %1295 = vmatpush1.msra.mxu0 0.0
  %1296 = vmatprep.subr.mxu0 0.0
  %1297 = vmatpush1.msra.mxu0 0.0
  %1298 = vmatprep.subr.mxu0 0.0
  %1299 = vmatpush1.msra.mxu0 0.0
  %1300 = vmatprep.subr.mxu0 0.0
  %1301 = vmatpush1.msra.mxu0 0.0
  %1302 = vmatprep.subr.mxu0 0.0
  %1303 = vmatpush1.msra.mxu0 0.0
  %1304 = vmatprep.subr.mxu0 0.0
  %1305 = vmatpush1.msra.mxu0 0.0
  %1306 = vmatprep.subr.mxu0 0.0
  %1307 = vmatpush1.msra.mxu0 0.0
  %1308 = vmatprep.subr.mxu0 0.0
  %1309 = vmatpush1.msra.mxu0 0.0
  %1310 = vmatprep.subr.mxu0 0.0
  %1311 = vmatpush1.msra.mxu0 0.0
  %1312 = vmatprep.subr.mxu0 0.0
  %1313 = vmatpush1.msra.mxu0 0.0
  %1314 = vmatprep.mubr.f32.mxu0 0.0
  %1315 = vmatmul.mubr.f32.gmra.mrb[0].mxu0 %v1227
  %v1316 = vpop.f32.mrb[0].mxu0
  %v1317 = vadd.f32 %v1225, %v1316
  %v1318 = vpop.f32.mrb[0].mxu0
  %1319 = vmatprep.mubr.f32.mxu0 0.0
  %1320 = vmatmul.mubr.f32.gmra.mrb[0].mxu0 %v1230
  %v1321 = vpop.f32.mrb[0].mxu0
  %v1322 = vadd.f32 %v1225, %v1321
  %v1323 = vpop.f32.mrb[0].mxu0
  %1324 = vmatprep.mubr.f32.mxu0 0.0
  %1325 = vmatmul.mubr.f32.gmra.mrb[0].mxu0 %v1233
  %v1326 = vpop.f32.mrb[0].mxu0
  %v1327 = vadd.f32 %v1225, %v1326
  %v1328 = vpop.f32.mrb[0].mxu0
  %1329 = vmatprep.mubr.f32.mxu0 0.0
  %1330 = vmatmul.mubr.f32.gmra.mrb[0].mxu0 %v1236
  %v1331 = vpop.f32.mrb[0].mxu0
  %v1332 = vadd.f32 %v1225, %v1331
  %v1333 = vpop.f32.mrb[0].mxu0
  %1334 = vmatprep.mubr.f32.mxu0 0.0
  %1335 = vmatmul.mubr.f32.gmra.mrb[0].mxu0 %v1239
  %v1336 = vpop.f32.mrb[0].mxu0
  %v1337 = vadd.f32 %v1225, %v1336
  %v1338 = vpop.f32.mrb[0].mxu0
  %1339 = vmatprep.mubr.f32.mxu0 0.0
  %1340 = vmatmul.mubr.f32.gmra.mrb[0].mxu0 %v1242
  %v1341 = vpop.f32.mrb[0].mxu0
  %v1342 = vadd.f32 %v1225, %v1341
  %v1343 = vpop.f32.mrb[0].mxu0
  %1344 = vmatprep.mubr.f32.mxu0 0.0
  %1345 = vmatmul.mubr.f32.gmra.mrb[0].mxu0 %v1245
  %v1346 = vpop.f32.mrb[0].mxu0
  %v1347 = vadd.f32 %v1225, %v1346
  %v1348 = vpop.f32.mrb[0].mxu0
  %1349 = vmatprep.mubr.f32.mxu0 0.0
  %1350 = vmatmul.mubr.f32.gmra.mrb[0].mxu0 %v1248
  %v1351 = vpop.f32.mrb[0].mxu0
  %v1352 = vadd.f32 %v1225, %v1351
  %v1353 = vpop.f32.mrb[0].mxu0
  %1354 = vdwg.mxu0
  %v1355 = vld [vmem:[%s6] sm:$0xff]
  %v1356 = vld [vmem:[%s6 + $0x8] sm:$0xff]
  %v1357 = vld [vmem:[%s6 + $0x10] sm:$0xff]
  %v1358 = vld [vmem:[%s6 + $0x18] sm:$0xff]
  %v1359 = vsel %vm224, %v1317, %v1352
  %1360 = vmatprep.subr.mxu0 0.0
  %1361 = vmatpush1.msra.mxu0 %v1355
  %1362 = vmatprep.subr.mxu0 0.0
  %1363 = vmatpush1.msra.mxu0 %v1356
  %1364 = vmatprep.subr.mxu0 0.0
  %1365 = vmatpush1.msra.mxu0 %v1357
  %1366 = vmatprep.subr.mxu0 0.0
  %1367 = vmatpush1.msra.mxu0 %v1358
  %1368 = vmatprep.subr.mxu0 0.0
  %1369 = vmatpush1.msra.mxu0 0.0
  %1370 = vmatprep.subr.mxu0 0.0
  %1371 = vmatpush1.msra.mxu0 0.0
  %1372 = vmatprep.subr.mxu0 0.0
  %1373 = vmatpush1.msra.mxu0 0.0
  %1374 = vmatprep.subr.mxu0 0.0
  %1375 = vmatpush1.msra.mxu0 0.0
  %1376 = vmatprep.subr.mxu0 0.0
  %1377 = vmatpush1.msra.mxu0 0.0
  %1378 = vmatprep.subr.mxu0 0.0
  %1379 = vmatpush1.msra.mxu0 0.0
  %1380 = vmatprep.subr.mxu0 0.0
  %1381 = vmatpush1.msra.mxu0 0.0
  %1382 = vmatprep.subr.mxu0 0.0
  %1383 = vmatpush1.msra.mxu0 0.0
  %1384 = vmatprep.subr.mxu0 0.0
  %1385 = vmatpush1.msra.mxu0 0.0
  %1386 = vmatprep.subr.mxu0 0.0
  %1387 = vmatpush1.msra.mxu0 0.0
  %1388 = vmatprep.subr.mxu0 0.0
  %1389 = vmatpush1.msra.mxu0 0.0
  %1390 = vmatprep.subr.mxu0 0.0
  %1391 = vmatpush1.msra.mxu0 0.0
  %1392 = vmatprep.subr.mxu0 0.0
  %1393 = vmatpush1.msra.mxu0 0.0
  %1394 = vmatprep.subr.mxu0 0.0
  %1395 = vmatpush1.msra.mxu0 0.0
  %1396 = vmatprep.subr.mxu0 0.0
  %1397 = vmatpush1.msra.mxu0 0.0
  %1398 = vmatprep.subr.mxu0 0.0
  %1399 = vmatpush1.msra.mxu0 0.0
  %1400 = vmatprep.subr.mxu0 0.0
  %1401 = vmatpush1.msra.mxu0 0.0
  %1402 = vmatprep.subr.mxu0 0.0
  %1403 = vmatpush1.msra.mxu0 0.0
  %1404 = vmatprep.subr.mxu0 0.0
  %1405 = vmatpush1.msra.mxu0 0.0
  %1406 = vmatprep.subr.mxu0 0.0
  %1407 = vmatpush1.msra.mxu0 0.0
  %1408 = vmatprep.subr.mxu0 0.0
  %1409 = vmatpush1.msra.mxu0 0.0
  %1410 = vmatprep.subr.mxu0 0.0
  %1411 = vmatpush1.msra.mxu0 0.0
  %1412 = vmatprep.subr.mxu0 0.0
  %1413 = vmatpush1.msra.mxu0 0.0
  %1414 = vmatprep.subr.mxu0 0.0
  %1415 = vmatpush1.msra.mxu0 0.0
  %1416 = vmatprep.subr.mxu0 0.0
  %1417 = vmatpush1.msra.mxu0 0.0
  %1418 = vmatprep.subr.mxu0 0.0
  %1419 = vmatpush1.msra.mxu0 0.0
  %1420 = vmatprep.subr.mxu0 0.0
  %1421 = vmatpush1.msra.mxu0 0.0
  %1422 = vmatprep.subr.mxu0 0.0
  %1423 = vmatpush1.msra.mxu0 0.0
  %1424 = vmatprep.mubr.f32.mxu0 0.0
  %1425 = vmatmul.mubr.f32.gmra.mrb[0].mxu0 %v227
  %v1426 = vpop.f32.mrb[0].mxu0
  %v1427 = vadd.f32 0.0, %v1426
  %v1428 = vpop.f32.mrb[0].mxu0
  %1429 = vdwg.mxu0
  %v1430 = vadd.f32 %v1359, %v1427
  %v1431 = vxor.u32 %v1430, 2147483648
  %v1432 = vmul.f32 %v1431, 1.442695
  %v1433 = vpow.pop %v1432
  %v1434 = vadd.f32 %v1433, 1.0
  %v1435 = vrcp.pop %v1434
  %v1436 = vmul.f32 1.0, %v1435
  %v1437 = vtanh.pop %v1430
  %v1438 = vmul.f32 %v1436, 0.0
  %1440 = vrot.lane.b32.xlu0 %v1437, 32
  %v1441 = vpop.permute.xlu0 %1440
  %v1443 = vmul.f32 %v1436, %v1441
  %1445 = vrot.lane.b32.xlu0 %v1443, 32
  %v1446 = vpop.permute.xlu0 %1445
  %v1448 = vadd.f32 %v1438, %v1446
  %v1449 = vtanh.pop %v1448
  %1451 = vrot.lane.b32.xlu0 %v1449, 32
  %v1452 = vpop.permute.xlu0 %1451
  %v1454 = vmul.f32 %v1436, %v1452
  %1456 = vrot.lane.b32.xlu0 %v1454, 64
  %v1457 = vpop.permute.xlu0 %1456
  %v1459 = vmul.f32 %v222, %v1457
  %v1460 = vadd.f32 %v1459, %v330
  %1462 = vrot.lane.b32.xlu0 %v1448, 96
  %v1463 = vpop.permute.xlu0 %1462
  %v1465 = vmul.f32 %v222, %v1463
  %v1466 = vadd.f32 %v1465, %v330
  %1467 = vst.msk [vmem:[#allocation3] sm:$0xff] %vm338, %v1459
  %1468 = vst.msk [vmem:[#allocation3 + $0x38] sm:$0xff] %vm340, %v1459
  %v1469 = vsel %vm224, %v1322, %v1347
  %v1471 = vsel %vm76, %v1460, 0
  %1473 = vmatprep.subr.mxu0 0.0
  %1474 = vmatpush1.msra.mxu0 %v1355
  %1475 = vmatprep.subr.mxu0 0.0
  %1476 = vmatpush1.msra.mxu0 %v1356
  %1477 = vmatprep.subr.mxu0 0.0
  %1478 = vmatpush1.msra.mxu0 %v1357
  %1479 = vmatprep.subr.mxu0 0.0
  %1480 = vmatpush1.msra.mxu0 %v1358
  %1481 = vmatprep.subr.mxu0 0.0
  %1482 = vmatpush1.msra.mxu0 0.0
  %1483 = vmatprep.subr.mxu0 0.0
  %1484 = vmatpush1.msra.mxu0 0.0
  %1485 = vmatprep.subr.mxu0 0.0
  %1486 = vmatpush1.msra.mxu0 0.0
  %1487 = vmatprep.subr.mxu0 0.0
  %1488 = vmatpush1.msra.mxu0 0.0
  %1489 = vmatprep.subr.mxu0 0.0
  %1490 = vmatpush1.msra.mxu0 0.0
  %1491 = vmatprep.subr.mxu0 0.0
  %1492 = vmatpush1.msra.mxu0 0.0
  %1493 = vmatprep.subr.mxu0 0.0
  %1494 = vmatpush1.msra.mxu0 0.0
  %1495 = vmatprep.subr.mxu0 0.0
  %1496 = vmatpush1.msra.mxu0 0.0
  %1497 = vmatprep.subr.mxu0 0.0
  %1498 = vmatpush1.msra.mxu0 0.0
  %1499 = vmatprep.subr.mxu0 0.0
  %1500 = vmatpush1.msra.mxu0 0.0
  %1501 = vmatprep.subr.mxu0 0.0
  %1502 = vmatpush1.msra.mxu0 0.0
  %1503 = vmatprep.subr.mxu0 0.0
  %1504 = vmatpush1.msra.mxu0 0.0
  %1505 = vmatprep.subr.mxu0 0.0
  %1506 = vmatpush1.msra.mxu0 0.0
  %1507 = vmatprep.subr.mxu0 0.0
  %1508 = vmatpush1.msra.mxu0 0.0
  %1509 = vmatprep.subr.mxu0 0.0
  %1510 = vmatpush1.msra.mxu0 0.0
  %1511 = vmatprep.subr.mxu0 0.0
  %1512 = vmatpush1.msra.mxu0 0.0
  %1513 = vmatprep.subr.mxu0 0.0
  %1514 = vmatpush1.msra.mxu0 0.0
  %1515 = vmatprep.subr.mxu0 0.0
  %1516 = vmatpush1.msra.mxu0 0.0
  %1517 = vmatprep.subr.mxu0 0.0
  %1518 = vmatpush1.msra.mxu0 0.0
  %1519 = vmatprep.subr.mxu0 0.0
  %1520 = vmatpush1.msra.mxu0 0.0
  %1521 = vmatprep.subr.mxu0 0.0
  %1522 = vmatpush1.msra.mxu0 0.0
  %1523 = vmatprep.subr.mxu0 0.0
  %1524 = vmatpush1.msra.mxu0 0.0
  %1525 = vmatprep.subr.mxu0 0.0
  %1526 = vmatpush1.msra.mxu0 0.0
  %1527 = vmatprep.subr.mxu0 0.0
  %1528 = vmatpush1.msra.mxu0 0.0
  %1529 = vmatprep.subr.mxu0 0.0
  %1530 = vmatpush1.msra.mxu0 0.0
  %1531 = vmatprep.subr.mxu0 0.0
  %1532 = vmatpush1.msra.mxu0 0.0
  %1533 = vmatprep.subr.mxu0 0.0
  %1534 = vmatpush1.msra.mxu0 0.0
  %1535 = vmatprep.subr.mxu0 0.0
  %1536 = vmatpush1.msra.mxu0 0.0
  %1537 = vmatprep.mubr.f32.mxu0 0.0
  %1538 = vmatmul.mubr.f32.gmra.mrb[0].mxu0 %v1471
  %v1539 = vpop.f32.mrb[0].mxu0
  %v1540 = vadd.f32 0.0, %v1539
  %v1541 = vpop.f32.mrb[0].mxu0
  %1542 = vdwg.mxu0
  %v1543 = vadd.f32 %v1469, %v1540
  %v1544 = vxor.u32 %v1543, 2147483648
  %v1545 = vmul.f32 %v1544, 1.442695
  %v1546 = vpow.pop %v1545
  %v1547 = vadd.f32 %v1546, 1.0
  %v1548 = vrcp.pop %v1547
  %v1549 = vmul.f32 1.0, %v1548
  %v1550 = vtanh.pop %v1543
  %1552 = vrot.lane.b32.xlu0 %v1466, 32
  %v1553 = vpop.permute.xlu0 %1552
  %v1555 = vmul.f32 %v1549, %v1553
  %1557 = vrot.lane.b32.xlu0 %v1550, 32
  %v1558 = vpop.permute.xlu0 %1557
  %v1560 = vmul.f32 %v1549, %v1558
  %1562 = vrot.lane.b32.xlu0 %v1560, 32
  %v1563 = vpop.permute.xlu0 %1562
  %v1565 = vadd.f32 %v1555, %v1563
  %v1566 = vtanh.pop %v1565
  %1568 = vrot.lane.b32.xlu0 %v1566, 32
  %v1569 = vpop.permute.xlu0 %1568
  %v1571 = vmul.f32 %v1549, %v1569
  %1573 = vrot.lane.b32.xlu0 %v1571, 64
  %v1574 = vpop.permute.xlu0 %1573
  %v1576 = vmul.f32 %v352, %v1574
  %v1577 = vmul.f32 %v461, %v1460
  %v1578 = vadd.f32 %v1576, %v1577
  %1580 = vrot.lane.b32.xlu0 %v1565, 96
  %v1581 = vpop.permute.xlu0 %1580
  %v1583 = vmul.f32 %v352, %v1581
  %v1584 = vmul.f32 %v461, %v1466
  %v1585 = vadd.f32 %v1583, %v1584
  %1586 = vst.msk [vmem:[#allocation3 + $0x8] sm:$0xff] %vm338, %v1576
  %1587 = vst.msk [vmem:[#allocation3 + $0x30] sm:$0xff] %vm340, %v1576
  %v1588 = vsel %vm224, %v1327, %v1342
  %v1590 = vsel %vm76, %v1578, 0
  %1592 = vmatprep.subr.mxu0 0.0
  %1593 = vmatpush1.msra.mxu0 %v1355
  %1594 = vmatprep.subr.mxu0 0.0
  %1595 = vmatpush1.msra.mxu0 %v1356
  %1596 = vmatprep.subr.mxu0 0.0
  %1597 = vmatpush1.msra.mxu0 %v1357
  %1598 = vmatprep.subr.mxu0 0.0
  %1599 = vmatpush1.msra.mxu0 %v1358
  %1600 = vmatprep.subr.mxu0 0.0
  %1601 = vmatpush1.msra.mxu0 0.0
  %1602 = vmatprep.subr.mxu0 0.0
  %1603 = vmatpush1.msra.mxu0 0.0
  %1604 = vmatprep.subr.mxu0 0.0
  %1605 = vmatpush1.msra.mxu0 0.0
  %1606 = vmatprep.subr.mxu0 0.0
  %1607 = vmatpush1.msra.mxu0 0.0
  %1608 = vmatprep.subr.mxu0 0.0
  %1609 = vmatpush1.msra.mxu0 0.0
  %1610 = vmatprep.subr.mxu0 0.0
  %1611 = vmatpush1.msra.mxu0 0.0
  %1612 = vmatprep.subr.mxu0 0.0
  %1613 = vmatpush1.msra.mxu0 0.0
  %1614 = vmatprep.subr.mxu0 0.0
  %1615 = vmatpush1.msra.mxu0 0.0
  %1616 = vmatprep.subr.mxu0 0.0
  %1617 = vmatpush1.msra.mxu0 0.0
  %1618 = vmatprep.subr.mxu0 0.0
  %1619 = vmatpush1.msra.mxu0 0.0
  %1620 = vmatprep.subr.mxu0 0.0
  %1621 = vmatpush1.msra.mxu0 0.0
  %1622 = vmatprep.subr.mxu0 0.0
  %1623 = vmatpush1.msra.mxu0 0.0
  %1624 = vmatprep.subr.mxu0 0.0
  %1625 = vmatpush1.msra.mxu0 0.0
  %1626 = vmatprep.subr.mxu0 0.0
  %1627 = vmatpush1.msra.mxu0 0.0
  %1628 = vmatprep.subr.mxu0 0.0
  %1629 = vmatpush1.msra.mxu0 0.0
  %1630 = vmatprep.subr.mxu0 0.0
  %1631 = vmatpush1.msra.mxu0 0.0
  %1632 = vmatprep.subr.mxu0 0.0
  %1633 = vmatpush1.msra.mxu0 0.0
  %1634 = vmatprep.subr.mxu0 0.0
  %1635 = vmatpush1.msra.mxu0 0.0
  %1636 = vmatprep.subr.mxu0 0.0
  %1637 = vmatpush1.msra.mxu0 0.0
  %1638 = vmatprep.subr.mxu0 0.0
  %1639 = vmatpush1.msra.mxu0 0.0
  %1640 = vmatprep.subr.mxu0 0.0
  %1641 = vmatpush1.msra.mxu0 0.0
  %1642 = vmatprep.subr.mxu0 0.0
  %1643 = vmatpush1.msra.mxu0 0.0
  %1644 = vmatprep.subr.mxu0 0.0
  %1645 = vmatpush1.msra.mxu0 0.0
  %1646 = vmatprep.subr.mxu0 0.0
  %1647 = vmatpush1.msra.mxu0 0.0
  %1648 = vmatprep.subr.mxu0 0.0
  %1649 = vmatpush1.msra.mxu0 0.0
  %1650 = vmatprep.subr.mxu0 0.0
  %1651 = vmatpush1.msra.mxu0 0.0
  %1652 = vmatprep.subr.mxu0 0.0
  %1653 = vmatpush1.msra.mxu0 0.0
  %1654 = vmatprep.subr.mxu0 0.0
  %1655 = vmatpush1.msra.mxu0 0.0
  %1656 = vmatprep.mubr.f32.mxu0 0.0
  %1657 = vmatmul.mubr.f32.gmra.mrb[0].mxu0 %v1590
  %v1658 = vpop.f32.mrb[0].mxu0
  %v1659 = vadd.f32 0.0, %v1658
  %v1660 = vpop.f32.mrb[0].mxu0
  %1661 = vdwg.mxu0
  %v1662 = vadd.f32 %v1588, %v1659
  %v1663 = vxor.u32 %v1662, 2147483648
  %v1664 = vmul.f32 %v1663, 1.442695
  %v1665 = vpow.pop %v1664
  %v1666 = vadd.f32 %v1665, 1.0
  %v1667 = vrcp.pop %v1666
  %v1668 = vmul.f32 1.0, %v1667
  %v1669 = vtanh.pop %v1662
  %1671 = vrot.lane.b32.xlu0 %v1585, 32
  %v1672 = vpop.permute.xlu0 %1671
  %v1674 = vmul.f32 %v1668, %v1672
  %1676 = vrot.lane.b32.xlu0 %v1669, 32
  %v1677 = vpop.permute.xlu0 %1676
  %v1679 = vmul.f32 %v1668, %v1677
  %1681 = vrot.lane.b32.xlu0 %v1679, 32
  %v1682 = vpop.permute.xlu0 %1681
  %v1684 = vadd.f32 %v1674, %v1682
  %v1685 = vtanh.pop %v1684
  %1687 = vrot.lane.b32.xlu0 %v1685, 32
  %v1688 = vpop.permute.xlu0 %1687
  %v1690 = vmul.f32 %v1668, %v1688
  %1692 = vrot.lane.b32.xlu0 %v1690, 64
  %v1693 = vpop.permute.xlu0 %1692
  %v1695 = vmul.f32 %v483, %v1693
  %v1696 = vmul.f32 %v592, %v1578
  %v1697 = vadd.f32 %v1695, %v1696
  %1699 = vrot.lane.b32.xlu0 %v1684, 96
  %v1700 = vpop.permute.xlu0 %1699
  %v1702 = vmul.f32 %v483, %v1700
  %v1703 = vmul.f32 %v592, %v1585
  %v1704 = vadd.f32 %v1702, %v1703
  %1705 = vst.msk [vmem:[#allocation3 + $0x10] sm:$0xff] %vm338, %v1695
  %1706 = vst.msk [vmem:[#allocation3 + $0x28] sm:$0xff] %vm340, %v1695
  %v1707 = vsel %vm224, %v1332, %v1337
  %v1709 = vsel %vm76, %v1697, 0
  %1711 = vmatprep.subr.mxu0 0.0
  %1712 = vmatpush1.msra.mxu0 %v1355
  %1713 = vmatprep.subr.mxu0 0.0
  %1714 = vmatpush1.msra.mxu0 %v1356
  %1715 = vmatprep.subr.mxu0 0.0
  %1716 = vmatpush1.msra.mxu0 %v1357
  %1717 = vmatprep.subr.mxu0 0.0
  %1718 = vmatpush1.msra.mxu0 %v1358
  %1719 = vmatprep.subr.mxu0 0.0
  %1720 = vmatpush1.msra.mxu0 0.0
  %1721 = vmatprep.subr.mxu0 0.0
  %1722 = vmatpush1.msra.mxu0 0.0
  %1723 = vmatprep.subr.mxu0 0.0
  %1724 = vmatpush1.msra.mxu0 0.0
  %1725 = vmatprep.subr.mxu0 0.0
  %1726 = vmatpush1.msra.mxu0 0.0
  %1727 = vmatprep.subr.mxu0 0.0
  %1728 = vmatpush1.msra.mxu0 0.0
  %1729 = vmatprep.subr.mxu0 0.0
  %1730 = vmatpush1.msra.mxu0 0.0
  %1731 = vmatprep.subr.mxu0 0.0
  %1732 = vmatpush1.msra.mxu0 0.0
  %1733 = vmatprep.subr.mxu0 0.0
  %1734 = vmatpush1.msra.mxu0 0.0
  %1735 = vmatprep.subr.mxu0 0.0
  %1736 = vmatpush1.msra.mxu0 0.0
  %1737 = vmatprep.subr.mxu0 0.0
  %1738 = vmatpush1.msra.mxu0 0.0
  %1739 = vmatprep.subr.mxu0 0.0
  %1740 = vmatpush1.msra.mxu0 0.0
  %1741 = vmatprep.subr.mxu0 0.0
  %1742 = vmatpush1.msra.mxu0 0.0
  %1743 = vmatprep.subr.mxu0 0.0
  %1744 = vmatpush1.msra.mxu0 0.0
  %1745 = vmatprep.subr.mxu0 0.0
  %1746 = vmatpush1.msra.mxu0 0.0
  %1747 = vmatprep.subr.mxu0 0.0
  %1748 = vmatpush1.msra.mxu0 0.0
  %1749 = vmatprep.subr.mxu0 0.0
  %1750 = vmatpush1.msra.mxu0 0.0
  %1751 = vmatprep.subr.mxu0 0.0
  %1752 = vmatpush1.msra.mxu0 0.0
  %1753 = vmatprep.subr.mxu0 0.0
  %1754 = vmatpush1.msra.mxu0 0.0
  %1755 = vmatprep.subr.mxu0 0.0
  %1756 = vmatpush1.msra.mxu0 0.0
  %1757 = vmatprep.subr.mxu0 0.0
  %1758 = vmatpush1.msra.mxu0 0.0
  %1759 = vmatprep.subr.mxu0 0.0
  %1760 = vmatpush1.msra.mxu0 0.0
  %1761 = vmatprep.subr.mxu0 0.0
  %1762 = vmatpush1.msra.mxu0 0.0
  %1763 = vmatprep.subr.mxu0 0.0
  %1764 = vmatpush1.msra.mxu0 0.0
  %1765 = vmatprep.subr.mxu0 0.0
  %1766 = vmatpush1.msra.mxu0 0.0
  %1767 = vmatprep.subr.mxu0 0.0
  %1768 = vmatpush1.msra.mxu0 0.0
  %1769 = vmatprep.subr.mxu0 0.0
  %1770 = vmatpush1.msra.mxu0 0.0
  %1771 = vmatprep.subr.mxu0 0.0
  %1772 = vmatpush1.msra.mxu0 0.0
  %1773 = vmatprep.subr.mxu0 0.0
  %1774 = vmatpush1.msra.mxu0 0.0
  %1775 = vmatprep.mubr.f32.mxu0 0.0
  %1776 = vmatmul.mubr.f32.gmra.mrb[0].mxu0 %v1709
  %v1777 = vpop.f32.mrb[0].mxu0
  %v1778 = vadd.f32 0.0, %v1777
  %v1779 = vpop.f32.mrb[0].mxu0
  %1780 = vdwg.mxu0
  %v1781 = vadd.f32 %v1707, %v1778
  %v1782 = vxor.u32 %v1781, 2147483648
  %v1783 = vmul.f32 %v1782, 1.442695
  %v1784 = vpow.pop %v1783
  %v1785 = vadd.f32 %v1784, 1.0
  %v1786 = vrcp.pop %v1785
  %v1787 = vmul.f32 1.0, %v1786
  %v1788 = vtanh.pop %v1781
  %1790 = vrot.lane.b32.xlu0 %v1704, 32
  %v1791 = vpop.permute.xlu0 %1790
  %v1793 = vmul.f32 %v1787, %v1791
  %1795 = vrot.lane.b32.xlu0 %v1788, 32
  %v1796 = vpop.permute.xlu0 %1795
  %v1798 = vmul.f32 %v1787, %v1796
  %1800 = vrot.lane.b32.xlu0 %v1798, 32
  %v1801 = vpop.permute.xlu0 %1800
  %v1803 = vadd.f32 %v1793, %v1801
  %v1804 = vtanh.pop %v1803
  %1806 = vrot.lane.b32.xlu0 %v1804, 32
  %v1807 = vpop.permute.xlu0 %1806
  %v1809 = vmul.f32 %v1787, %v1807
  %1811 = vrot.lane.b32.xlu0 %v1809, 64
  %v1812 = vpop.permute.xlu0 %1811
  %v1814 = vmul.f32 %v614, %v1812
  %v1815 = vmul.f32 %v723, %v1697
  %v1816 = vadd.f32 %v1814, %v1815
  %1818 = vrot.lane.b32.xlu0 %v1803, 96
  %v1819 = vpop.permute.xlu0 %1818
  %v1821 = vmul.f32 %v614, %v1819
  %v1822 = vmul.f32 %v723, %v1704
  %v1823 = vadd.f32 %v1821, %v1822
  %1824 = vst.msk [vmem:[#allocation3 + $0x18] sm:$0xff] %vm338, %v1814
  %1825 = vst.msk [vmem:[#allocation3 + $0x20] sm:$0xff] %vm340, %v1814
  %v1826 = vsel %vm224, %v1337, %v1332
  %v1828 = vsel %vm76, %v1816, 0
  %1830 = vmatprep.subr.mxu0 0.0
  %1831 = vmatpush1.msra.mxu0 %v1355
  %1832 = vmatprep.subr.mxu0 0.0
  %1833 = vmatpush1.msra.mxu0 %v1356
  %1834 = vmatprep.subr.mxu0 0.0
  %1835 = vmatpush1.msra.mxu0 %v1357
  %1836 = vmatprep.subr.mxu0 0.0
  %1837 = vmatpush1.msra.mxu0 %v1358
  %1838 = vmatprep.subr.mxu0 0.0
  %1839 = vmatpush1.msra.mxu0 0.0
  %1840 = vmatprep.subr.mxu0 0.0
  %1841 = vmatpush1.msra.mxu0 0.0
  %1842 = vmatprep.subr.mxu0 0.0
  %1843 = vmatpush1.msra.mxu0 0.0
  %1844 = vmatprep.subr.mxu0 0.0
  %1845 = vmatpush1.msra.mxu0 0.0
  %1846 = vmatprep.subr.mxu0 0.0
  %1847 = vmatpush1.msra.mxu0 0.0
  %1848 = vmatprep.subr.mxu0 0.0
  %1849 = vmatpush1.msra.mxu0 0.0
  %1850 = vmatprep.subr.mxu0 0.0
  %1851 = vmatpush1.msra.mxu0 0.0
  %1852 = vmatprep.subr.mxu0 0.0
  %1853 = vmatpush1.msra.mxu0 0.0
  %1854 = vmatprep.subr.mxu0 0.0
  %1855 = vmatpush1.msra.mxu0 0.0
  %1856 = vmatprep.subr.mxu0 0.0
  %1857 = vmatpush1.msra.mxu0 0.0
  %1858 = vmatprep.subr.mxu0 0.0
  %1859 = vmatpush1.msra.mxu0 0.0
  %1860 = vmatprep.subr.mxu0 0.0
  %1861 = vmatpush1.msra.mxu0 0.0
  %1862 = vmatprep.subr.mxu0 0.0
  %1863 = vmatpush1.msra.mxu0 0.0
  %1864 = vmatprep.subr.mxu0 0.0
  %1865 = vmatpush1.msra.mxu0 0.0
  %1866 = vmatprep.subr.mxu0 0.0
  %1867 = vmatpush1.msra.mxu0 0.0
  %1868 = vmatprep.subr.mxu0 0.0
  %1869 = vmatpush1.msra.mxu0 0.0
  %1870 = vmatprep.subr.mxu0 0.0
  %1871 = vmatpush1.msra.mxu0 0.0
  %1872 = vmatprep.subr.mxu0 0.0
  %1873 = vmatpush1.msra.mxu0 0.0
  %1874 = vmatprep.subr.mxu0 0.0
  %1875 = vmatpush1.msra.mxu0 0.0
  %1876 = vmatprep.subr.mxu0 0.0
  %1877 = vmatpush1.msra.mxu0 0.0
  %1878 = vmatprep.subr.mxu0 0.0
  %1879 = vmatpush1.msra.mxu0 0.0
  %1880 = vmatprep.subr.mxu0 0.0
  %1881 = vmatpush1.msra.mxu0 0.0
  %1882 = vmatprep.subr.mxu0 0.0
  %1883 = vmatpush1.msra.mxu0 0.0
  %1884 = vmatprep.subr.mxu0 0.0
  %1885 = vmatpush1.msra.mxu0 0.0
  %1886 = vmatprep.subr.mxu0 0.0
  %1887 = vmatpush1.msra.mxu0 0.0
  %1888 = vmatprep.subr.mxu0 0.0
  %1889 = vmatpush1.msra.mxu0 0.0
  %1890 = vmatprep.subr.mxu0 0.0
  %1891 = vmatpush1.msra.mxu0 0.0
  %1892 = vmatprep.subr.mxu0 0.0
  %1893 = vmatpush1.msra.mxu0 0.0
  %1894 = vmatprep.mubr.f32.mxu0 0.0
  %1895 = vmatmul.mubr.f32.gmra.mrb[0].mxu0 %v1828
  %v1896 = vpop.f32.mrb[0].mxu0
  %v1897 = vadd.f32 0.0, %v1896
  %v1898 = vpop.f32.mrb[0].mxu0
  %1899 = vdwg.mxu0
  %v1900 = vadd.f32 %v1826, %v1897
  %v1901 = vxor.u32 %v1900, 2147483648
  %v1902 = vmul.f32 %v1901, 1.442695
  %v1903 = vpow.pop %v1902
  %v1904 = vadd.f32 %v1903, 1.0
  %v1905 = vrcp.pop %v1904
  %v1906 = vmul.f32 1.0, %v1905
  %v1907 = vtanh.pop %v1900
  %1909 = vrot.lane.b32.xlu0 %v1823, 32
  %v1910 = vpop.permute.xlu0 %1909
  %v1912 = vmul.f32 %v1906, %v1910
  %1914 = vrot.lane.b32.xlu0 %v1907, 32
  %v1915 = vpop.permute.xlu0 %1914
  %v1917 = vmul.f32 %v1906, %v1915
  %1919 = vrot.lane.b32.xlu0 %v1917, 32
  %v1920 = vpop.permute.xlu0 %1919
  %v1922 = vadd.f32 %v1912, %v1920
  %v1923 = vtanh.pop %v1922
  %1925 = vrot.lane.b32.xlu0 %v1923, 32
  %v1926 = vpop.permute.xlu0 %1925
  %v1928 = vmul.f32 %v1906, %v1926
  %1930 = vrot.lane.b32.xlu0 %v1928, 64
  %v1931 = vpop.permute.xlu0 %1930
  %v1933 = vmul.f32 %v735, %v1931
  %v1934 = vmul.f32 %v844, %v1816
  %v1935 = vadd.f32 %v1933, %v1934
  %1937 = vrot.lane.b32.xlu0 %v1922, 96
  %v1938 = vpop.permute.xlu0 %1937
  %v1940 = vmul.f32 %v735, %v1938
  %v1941 = vmul.f32 %v844, %v1823
  %v1942 = vadd.f32 %v1940, %v1941
  %1943 = vst.msk [vmem:[#allocation3 + $0x20] sm:$0xff] %vm338, %v1933
  %1944 = vst.msk [vmem:[#allocation3 + $0x18] sm:$0xff] %vm340, %v1933
  %v1945 = vsel %vm224, %v1342, %v1327
  %v1947 = vsel %vm76, %v1935, 0
  %1949 = vmatprep.subr.mxu0 0.0
  %1950 = vmatpush1.msra.mxu0 %v1355
  %1951 = vmatprep.subr.mxu0 0.0
  %1952 = vmatpush1.msra.mxu0 %v1356
  %1953 = vmatprep.subr.mxu0 0.0
  %1954 = vmatpush1.msra.mxu0 %v1357
  %1955 = vmatprep.subr.mxu0 0.0
  %1956 = vmatpush1.msra.mxu0 %v1358
  %1957 = vmatprep.subr.mxu0 0.0
  %1958 = vmatpush1.msra.mxu0 0.0
  %1959 = vmatprep.subr.mxu0 0.0
  %1960 = vmatpush1.msra.mxu0 0.0
  %1961 = vmatprep.subr.mxu0 0.0
  %1962 = vmatpush1.msra.mxu0 0.0
  %1963 = vmatprep.subr.mxu0 0.0
  %1964 = vmatpush1.msra.mxu0 0.0
  %1965 = vmatprep.subr.mxu0 0.0
  %1966 = vmatpush1.msra.mxu0 0.0
  %1967 = vmatprep.subr.mxu0 0.0
  %1968 = vmatpush1.msra.mxu0 0.0
  %1969 = vmatprep.subr.mxu0 0.0
  %1970 = vmatpush1.msra.mxu0 0.0
  %1971 = vmatprep.subr.mxu0 0.0
  %1972 = vmatpush1.msra.mxu0 0.0
  %1973 = vmatprep.subr.mxu0 0.0
  %1974 = vmatpush1.msra.mxu0 0.0
  %1975 = vmatprep.subr.mxu0 0.0
  %1976 = vmatpush1.msra.mxu0 0.0
  %1977 = vmatprep.subr.mxu0 0.0
  %1978 = vmatpush1.msra.mxu0 0.0
  %1979 = vmatprep.subr.mxu0 0.0
  %1980 = vmatpush1.msra.mxu0 0.0
  %1981 = vmatprep.subr.mxu0 0.0
  %1982 = vmatpush1.msra.mxu0 0.0
  %1983 = vmatprep.subr.mxu0 0.0
  %1984 = vmatpush1.msra.mxu0 0.0
  %1985 = vmatprep.subr.mxu0 0.0
  %1986 = vmatpush1.msra.mxu0 0.0
  %1987 = vmatprep.subr.mxu0 0.0
  %1988 = vmatpush1.msra.mxu0 0.0
  %1989 = vmatprep.subr.mxu0 0.0
  %1990 = vmatpush1.msra.mxu0 0.0
  %1991 = vmatprep.subr.mxu0 0.0
  %1992 = vmatpush1.msra.mxu0 0.0
  %1993 = vmatprep.subr.mxu0 0.0
  %1994 = vmatpush1.msra.mxu0 0.0
  %1995 = vmatprep.subr.mxu0 0.0
  %1996 = vmatpush1.msra.mxu0 0.0
  %1997 = vmatprep.subr.mxu0 0.0
  %1998 = vmatpush1.msra.mxu0 0.0
  %1999 = vmatprep.subr.mxu0 0.0
  %2000 = vmatpush1.msra.mxu0 0.0
  %2001 = vmatprep.subr.mxu0 0.0
  %2002 = vmatpush1.msra.mxu0 0.0
  %2003 = vmatprep.subr.mxu0 0.0
  %2004 = vmatpush1.msra.mxu0 0.0
  %2005 = vmatprep.subr.mxu0 0.0
  %2006 = vmatpush1.msra.mxu0 0.0
  %2007 = vmatprep.subr.mxu0 0.0
  %2008 = vmatpush1.msra.mxu0 0.0
  %2009 = vmatprep.subr.mxu0 0.0
  %2010 = vmatpush1.msra.mxu0 0.0
  %2011 = vmatprep.subr.mxu0 0.0
  %2012 = vmatpush1.msra.mxu0 0.0
  %2013 = vmatprep.mubr.f32.mxu0 0.0
  %2014 = vmatmul.mubr.f32.gmra.mrb[0].mxu0 %v1947
  %v2015 = vpop.f32.mrb[0].mxu0
  %v2016 = vadd.f32 0.0, %v2015
  %v2017 = vpop.f32.mrb[0].mxu0
  %2018 = vdwg.mxu0
  %v2019 = vadd.f32 %v1945, %v2016
  %v2020 = vxor.u32 %v2019, 2147483648
  %v2021 = vmul.f32 %v2020, 1.442695
  %v2022 = vpow.pop %v2021
  %v2023 = vadd.f32 %v2022, 1.0
  %v2024 = vrcp.pop %v2023
  %v2025 = vmul.f32 1.0, %v2024
  %v2026 = vtanh.pop %v2019
  %2028 = vrot.lane.b32.xlu0 %v1942, 32
  %v2029 = vpop.permute.xlu0 %2028
  %v2031 = vmul.f32 %v2025, %v2029
  %2033 = vrot.lane.b32.xlu0 %v2026, 32
  %v2034 = vpop.permute.xlu0 %2033
  %v2036 = vmul.f32 %v2025, %v2034
  %2038 = vrot.lane.b32.xlu0 %v2036, 32
  %v2039 = vpop.permute.xlu0 %2038
  %v2041 = vadd.f32 %v2031, %v2039
  %v2042 = vtanh.pop %v2041
  %2044 = vrot.lane.b32.xlu0 %v2042, 32
  %v2045 = vpop.permute.xlu0 %2044
  %v2047 = vmul.f32 %v2025, %v2045
  %2049 = vrot.lane.b32.xlu0 %v2047, 64
  %v2050 = vpop.permute.xlu0 %2049
  %v2052 = vmul.f32 %v856, %v2050
  %v2053 = vmul.f32 %v965, %v1935
  %v2054 = vadd.f32 %v2052, %v2053
  %2056 = vrot.lane.b32.xlu0 %v2041, 96
  %v2057 = vpop.permute.xlu0 %2056
  %v2059 = vmul.f32 %v856, %v2057
  %v2060 = vmul.f32 %v965, %v1942
  %v2061 = vadd.f32 %v2059, %v2060
  %2062 = vst.msk [vmem:[#allocation3 + $0x28] sm:$0xff] %vm338, %v2052
  %2063 = vst.msk [vmem:[#allocation3 + $0x10] sm:$0xff] %vm340, %v2052
  %v2064 = vsel %vm224, %v1347, %v1322
  %v2066 = vsel %vm76, %v2054, 0
  %2068 = vmatprep.subr.mxu0 0.0
  %2069 = vmatpush1.msra.mxu0 %v1355
  %2070 = vmatprep.subr.mxu0 0.0
  %2071 = vmatpush1.msra.mxu0 %v1356
  %2072 = vmatprep.subr.mxu0 0.0
  %2073 = vmatpush1.msra.mxu0 %v1357
  %2074 = vmatprep.subr.mxu0 0.0
  %2075 = vmatpush1.msra.mxu0 %v1358
  %2076 = vmatprep.subr.mxu0 0.0
  %2077 = vmatpush1.msra.mxu0 0.0
  %2078 = vmatprep.subr.mxu0 0.0
  %2079 = vmatpush1.msra.mxu0 0.0
  %2080 = vmatprep.subr.mxu0 0.0
  %2081 = vmatpush1.msra.mxu0 0.0
  %2082 = vmatprep.subr.mxu0 0.0
  %2083 = vmatpush1.msra.mxu0 0.0
  %2084 = vmatprep.subr.mxu0 0.0
  %2085 = vmatpush1.msra.mxu0 0.0
  %2086 = vmatprep.subr.mxu0 0.0
  %2087 = vmatpush1.msra.mxu0 0.0
  %2088 = vmatprep.subr.mxu0 0.0
  %2089 = vmatpush1.msra.mxu0 0.0
  %2090 = vmatprep.subr.mxu0 0.0
  %2091 = vmatpush1.msra.mxu0 0.0
  %2092 = vmatprep.subr.mxu0 0.0
  %2093 = vmatpush1.msra.mxu0 0.0
  %2094 = vmatprep.subr.mxu0 0.0
  %2095 = vmatpush1.msra.mxu0 0.0
  %2096 = vmatprep.subr.mxu0 0.0
  %2097 = vmatpush1.msra.mxu0 0.0
  %2098 = vmatprep.subr.mxu0 0.0
  %2099 = vmatpush1.msra.mxu0 0.0
  %2100 = vmatprep.subr.mxu0 0.0
  %2101 = vmatpush1.msra.mxu0 0.0
  %2102 = vmatprep.subr.mxu0 0.0
  %2103 = vmatpush1.msra.mxu0 0.0
  %2104 = vmatprep.subr.mxu0 0.0
  %2105 = vmatpush1.msra.mxu0 0.0
  %2106 = vmatprep.subr.mxu0 0.0
  %2107 = vmatpush1.msra.mxu0 0.0
  %2108 = vmatprep.subr.mxu0 0.0
  %2109 = vmatpush1.msra.mxu0 0.0
  %2110 = vmatprep.subr.mxu0 0.0
  %2111 = vmatpush1.msra.mxu0 0.0
  %2112 = vmatprep.subr.mxu0 0.0
  %2113 = vmatpush1.msra.mxu0 0.0
  %2114 = vmatprep.subr.mxu0 0.0
  %2115 = vmatpush1.msra.mxu0 0.0
  %2116 = vmatprep.subr.mxu0 0.0
  %2117 = vmatpush1.msra.mxu0 0.0
  %2118 = vmatprep.subr.mxu0 0.0
  %2119 = vmatpush1.msra.mxu0 0.0
  %2120 = vmatprep.subr.mxu0 0.0
  %2121 = vmatpush1.msra.mxu0 0.0
  %2122 = vmatprep.subr.mxu0 0.0
  %2123 = vmatpush1.msra.mxu0 0.0
  %2124 = vmatprep.subr.mxu0 0.0
  %2125 = vmatpush1.msra.mxu0 0.0
  %2126 = vmatprep.subr.mxu0 0.0
  %2127 = vmatpush1.msra.mxu0 0.0
  %2128 = vmatprep.subr.mxu0 0.0
  %2129 = vmatpush1.msra.mxu0 0.0
  %2130 = vmatprep.subr.mxu0 0.0
  %2131 = vmatpush1.msra.mxu0 0.0
  %2132 = vmatprep.mubr.f32.mxu0 0.0
  %2133 = vmatmul.mubr.f32.gmra.mrb[0].mxu0 %v2066
  %v2134 = vpop.f32.mrb[0].mxu0
  %v2135 = vadd.f32 0.0, %v2134
  %v2136 = vpop.f32.mrb[0].mxu0
  %2137 = vdwg.mxu0
  %v2138 = vadd.f32 %v2064, %v2135
  %v2139 = vxor.u32 %v2138, 2147483648
  %v2140 = vmul.f32 %v2139, 1.442695
  %v2141 = vpow.pop %v2140
  %v2142 = vadd.f32 %v2141, 1.0
  %v2143 = vrcp.pop %v2142
  %v2144 = vmul.f32 1.0, %v2143
  %v2145 = vtanh.pop %v2138
  %2147 = vrot.lane.b32.xlu0 %v2061, 32
  %v2148 = vpop.permute.xlu0 %2147
  %v2150 = vmul.f32 %v2144, %v2148
  %2152 = vrot.lane.b32.xlu0 %v2145, 32
  %v2153 = vpop.permute.xlu0 %2152
  %v2155 = vmul.f32 %v2144, %v2153
  %2157 = vrot.lane.b32.xlu0 %v2155, 32
  %v2158 = vpop.permute.xlu0 %2157
  %v2160 = vadd.f32 %v2150, %v2158
  %v2161 = vtanh.pop %v2160
  %2163 = vrot.lane.b32.xlu0 %v2161, 32
  %v2164 = vpop.permute.xlu0 %2163
  %v2166 = vmul.f32 %v2144, %v2164
  %2168 = vrot.lane.b32.xlu0 %v2166, 64
  %v2169 = vpop.permute.xlu0 %2168
  %v2171 = vmul.f32 %v977, %v2169
  %v2172 = vmul.f32 %v1086, %v2054
  %v2173 = vadd.f32 %v2171, %v2172
  %2175 = vrot.lane.b32.xlu0 %v2160, 96
  %v2176 = vpop.permute.xlu0 %2175
  %v2178 = vmul.f32 %v977, %v2176
  %v2179 = vmul.f32 %v1086, %v2061
  %v2180 = vadd.f32 %v2178, %v2179
  %2181 = vst.msk [vmem:[#allocation3 + $0x30] sm:$0xff] %vm338, %v2171
  %2182 = vst.msk [vmem:[#allocation3 + $0x8] sm:$0xff] %vm340, %v2171
  %v2183 = vsel %vm224, %v1352, %v1317
  %v2185 = vsel %vm76, %v2173, 0
  %2187 = vmatprep.subr.mxu0 0.0
  %2188 = vmatpush1.msra.mxu0 %v1355
  %2189 = vmatprep.subr.mxu0 0.0
  %2190 = vmatpush1.msra.mxu0 %v1356
  %2191 = vmatprep.subr.mxu0 0.0
  %2192 = vmatpush1.msra.mxu0 %v1357
  %2193 = vmatprep.subr.mxu0 0.0
  %2194 = vmatpush1.msra.mxu0 %v1358
  %2195 = vmatprep.subr.mxu0 0.0
  %2196 = vmatpush1.msra.mxu0 0.0
  %2197 = vmatprep.subr.mxu0 0.0
  %2198 = vmatpush1.msra.mxu0 0.0
  %2199 = vmatprep.subr.mxu0 0.0
  %2200 = vmatpush1.msra.mxu0 0.0
  %2201 = vmatprep.subr.mxu0 0.0
  %2202 = vmatpush1.msra.mxu0 0.0
  %2203 = vmatprep.subr.mxu0 0.0
  %2204 = vmatpush1.msra.mxu0 0.0
  %2205 = vmatprep.subr.mxu0 0.0
  %2206 = vmatpush1.msra.mxu0 0.0
  %2207 = vmatprep.subr.mxu0 0.0
  %2208 = vmatpush1.msra.mxu0 0.0
  %2209 = vmatprep.subr.mxu0 0.0
  %2210 = vmatpush1.msra.mxu0 0.0
  %2211 = vmatprep.subr.mxu0 0.0
  %2212 = vmatpush1.msra.mxu0 0.0
  %2213 = vmatprep.subr.mxu0 0.0
  %2214 = vmatpush1.msra.mxu0 0.0
  %2215 = vmatprep.subr.mxu0 0.0
  %2216 = vmatpush1.msra.mxu0 0.0
  %2217 = vmatprep.subr.mxu0 0.0
  %2218 = vmatpush1.msra.mxu0 0.0
  %2219 = vmatprep.subr.mxu0 0.0
  %2220 = vmatpush1.msra.mxu0 0.0
  %2221 = vmatprep.subr.mxu0 0.0
  %2222 = vmatpush1.msra.mxu0 0.0
  %2223 = vmatprep.subr.mxu0 0.0
  %2224 = vmatpush1.msra.mxu0 0.0
  %2225 = vmatprep.subr.mxu0 0.0
  %2226 = vmatpush1.msra.mxu0 0.0
  %2227 = vmatprep.subr.mxu0 0.0
  %2228 = vmatpush1.msra.mxu0 0.0
  %2229 = vmatprep.subr.mxu0 0.0
  %2230 = vmatpush1.msra.mxu0 0.0
  %2231 = vmatprep.subr.mxu0 0.0
  %2232 = vmatpush1.msra.mxu0 0.0
  %2233 = vmatprep.subr.mxu0 0.0
  %2234 = vmatpush1.msra.mxu0 0.0
  %2235 = vmatprep.subr.mxu0 0.0
  %2236 = vmatpush1.msra.mxu0 0.0
  %2237 = vmatprep.subr.mxu0 0.0
  %2238 = vmatpush1.msra.mxu0 0.0
  %2239 = vmatprep.subr.mxu0 0.0
  %2240 = vmatpush1.msra.mxu0 0.0
  %2241 = vmatprep.subr.mxu0 0.0
  %2242 = vmatpush1.msra.mxu0 0.0
  %2243 = vmatprep.subr.mxu0 0.0
  %2244 = vmatpush1.msra.mxu0 0.0
  %2245 = vmatprep.subr.mxu0 0.0
  %2246 = vmatpush1.msra.mxu0 0.0
  %2247 = vmatprep.subr.mxu0 0.0
  %2248 = vmatpush1.msra.mxu0 0.0
  %2249 = vmatprep.subr.mxu0 0.0
  %2250 = vmatpush1.msra.mxu0 0.0
  %2251 = vmatprep.mubr.f32.mxu0 0.0
  %2252 = vmatmul.mubr.f32.gmra.mrb[0].mxu0 %v2185
  %v2253 = vpop.f32.mrb[0].mxu0
  %v2254 = vadd.f32 0.0, %v2253
  %v2255 = vpop.f32.mrb[0].mxu0
  %2256 = vdwg.mxu0
  %v2257 = vadd.f32 %v2183, %v2254
  %v2258 = vxor.u32 %v2257, 2147483648
  %v2259 = vmul.f32 %v2258, 1.442695
  %v2260 = vpow.pop %v2259
  %v2261 = vadd.f32 %v2260, 1.0
  %v2262 = vrcp.pop %v2261
  %v2263 = vmul.f32 1.0, %v2262
  %v2264 = vtanh.pop %v2257
  %2266 = vrot.lane.b32.xlu0 %v2180, 32
  %v2267 = vpop.permute.xlu0 %2266
  %v2269 = vmul.f32 %v2263, %v2267
  %2271 = vrot.lane.b32.xlu0 %v2264, 32
  %v2272 = vpop.permute.xlu0 %2271
  %v2274 = vmul.f32 %v2263, %v2272
  %2276 = vrot.lane.b32.xlu0 %v2274, 32
  %v2277 = vpop.permute.xlu0 %2276
  %v2279 = vadd.f32 %v2269, %v2277
  %v2280 = vtanh.pop %v2279
  %2282 = vrot.lane.b32.xlu0 %v2280, 32
  %v2283 = vpop.permute.xlu0 %2282
  %v2285 = vmul.f32 %v2263, %v2283
  %2287 = vrot.lane.b32.xlu0 %v2285, 64
  %v2288 = vpop.permute.xlu0 %2287
  %v2290 = vmul.f32 %v1098, %v2288
  %2291 = vst.msk [vmem:[#allocation3 + $0x38] sm:$0xff] %vm338, %v2290
  %2292 = vst.msk [vmem:[#allocation3] sm:$0xff] %vm340, %v2290
  %v2293 = vld [vmem:[#allocation3] sm:$0xff]
  %v2294 = vld [vmem:[#allocation3 + $0x8] sm:$0xff]
  %v2295 = vld [vmem:[#allocation3 + $0x10] sm:$0xff]
  %v2296 = vld [vmem:[#allocation3 + $0x18] sm:$0xff]
  %v2297 = vld [vmem:[#allocation3 + $0x20] sm:$0xff]
  %v2298 = vld [vmem:[#allocation3 + $0x28] sm:$0xff]
  %v2299 = vld [vmem:[#allocation3 + $0x30] sm:$0xff]
  %v2300 = vld [vmem:[#allocation3 + $0x38] sm:$0xff]
  %v2301 = vsel %vm76, %v2293, 0.0
  %2302 = vadd.xlane.f32.xlu0 %v2301
  %v2303 = vpop.xlane.xlu0 %2302
  %v2304 = vsel %vm76, %v2294, 0.0
  %2305 = vadd.xlane.f32.xlu0 %v2304
  %v2306 = vpop.xlane.xlu0 %2305
  %v2307 = vsel %vm76, %v2295, 0.0
  %2308 = vadd.xlane.f32.xlu0 %v2307
  %v2309 = vpop.xlane.xlu0 %2308
  %v2310 = vsel %vm76, %v2296, 0.0
  %2311 = vadd.xlane.f32.xlu0 %v2310
  %v2312 = vpop.xlane.xlu0 %2311
  %v2313 = vsel %vm76, %v2297, 0.0
  %2314 = vadd.xlane.f32.xlu0 %v2313
  %v2315 = vpop.xlane.xlu0 %2314
  %v2316 = vsel %vm76, %v2298, 0.0
  %2317 = vadd.xlane.f32.xlu0 %v2316
  %v2318 = vpop.xlane.xlu0 %2317
  %v2319 = vsel %vm76, %v2299, 0.0
  %2320 = vadd.xlane.f32.xlu0 %v2319
  %v2321 = vpop.xlane.xlu0 %2320
  %v2322 = vsel %vm76, %v2300, 0.0
  %2323 = vadd.xlane.f32.xlu0 %v2322
  %v2324 = vpop.xlane.xlu0 %2323
  %v2325 = vrcp.pop 32.0
  %v2326 = vmul.f32 %v2303, %v2325
  %v2327 = vmul.f32 %v2306, %v2325
  %v2328 = vmul.f32 %v2309, %v2325
  %v2329 = vmul.f32 %v2312, %v2325
  %v2330 = vmul.f32 %v2315, %v2325
  %v2331 = vmul.f32 %v2318, %v2325
  %v2332 = vmul.f32 %v2321, %v2325
  %v2333 = vmul.f32 %v2324, %v2325
  %v2334 = vsub.f32 %v2293, %v2326
  %v2335 = vsub.f32 %v2294, %v2327
  %v2336 = vsub.f32 %v2295, %v2328
  %v2337 = vsub.f32 %v2296, %v2329
  %v2338 = vsub.f32 %v2297, %v2330
  %v2339 = vsub.f32 %v2298, %v2331
  %v2340 = vsub.f32 %v2299, %v2332
  %v2341 = vsub.f32 %v2300, %v2333
  %v2342 = vmul.f32 %v2334, %v2334
  %v2343 = vmul.f32 %v2335, %v2335
  %v2344 = vmul.f32 %v2336, %v2336
  %v2345 = vmul.f32 %v2337, %v2337
  %v2346 = vmul.f32 %v2338, %v2338
  %v2347 = vmul.f32 %v2339, %v2339
  %v2348 = vmul.f32 %v2340, %v2340
  %v2349 = vmul.f32 %v2341, %v2341
  %v2350 = vsel %vm76, %v2342, 0.0
  %2351 = vadd.xlane.f32.xlu0 %v2350
  %v2352 = vpop.xlane.xlu0 %2351
  %v2353 = vsel %vm76, %v2343, 0.0
  %2354 = vadd.xlane.f32.xlu0 %v2353
  %v2355 = vpop.xlane.xlu0 %2354
  %v2356 = vsel %vm76, %v2344, 0.0
  %2357 = vadd.xlane.f32.xlu0 %v2356
  %v2358 = vpop.xlane.xlu0 %2357
  %v2359 = vsel %vm76, %v2345, 0.0
  %2360 = vadd.xlane.f32.xlu0 %v2359
  %v2361 = vpop.xlane.xlu0 %2360
  %v2362 = vsel %vm76, %v2346, 0.0
  %2363 = vadd.xlane.f32.xlu0 %v2362
  %v2364 = vpop.xlane.xlu0 %2363
  %v2365 = vsel %vm76, %v2347, 0.0
  %2366 = vadd.xlane.f32.xlu0 %v2365
  %v2367 = vpop.xlane.xlu0 %2366
  %v2368 = vsel %vm76, %v2348, 0.0
  %2369 = vadd.xlane.f32.xlu0 %v2368
  %v2370 = vpop.xlane.xlu0 %2369
  %v2371 = vsel %vm76, %v2349, 0.0
  %2372 = vadd.xlane.f32.xlu0 %v2371
  %v2373 = vpop.xlane.xlu0 %2372
  %v2374 = vmul.f32 %v2352, %v2325
  %v2375 = vmul.f32 %v2355, %v2325
  %v2376 = vmul.f32 %v2358, %v2325
  %v2377 = vmul.f32 %v2361, %v2325
  %v2378 = vmul.f32 %v2364, %v2325
  %v2379 = vmul.f32 %v2367, %v2325
  %v2380 = vmul.f32 %v2370, %v2325
  %v2381 = vmul.f32 %v2373, %v2325
  %v2382 = vadd.f32 %v2374, 1e-05
  %v2383 = vadd.f32 %v2375, 1e-05
  %v2384 = vadd.f32 %v2376, 1e-05
  %v2385 = vadd.f32 %v2377, 1e-05
  %v2386 = vadd.f32 %v2378, 1e-05
  %v2387 = vadd.f32 %v2379, 1e-05
  %v2388 = vadd.f32 %v2380, 1e-05
  %v2389 = vadd.f32 %v2381, 1e-05
  %v2390 = vrsqrt.pop %v2382
  %v2391 = vrsqrt.pop %v2383
  %v2392 = vrsqrt.pop %v2384
  %v2393 = vrsqrt.pop %v2385
  %v2394 = vrsqrt.pop %v2386
  %v2395 = vrsqrt.pop %v2387
  %v2396 = vrsqrt.pop %v2388
  %v2397 = vrsqrt.pop %v2389
  %v2398 = vmul.f32 %v2334, %v2390
  %v2399 = vmul.f32 %v2335, %v2391
  %v2400 = vmul.f32 %v2336, %v2392
  %v2401 = vmul.f32 %v2337, %v2393
  %v2402 = vmul.f32 %v2338, %v2394
  %v2403 = vmul.f32 %v2339, %v2395
  %v2404 = vmul.f32 %v2340, %v2396
  %v2405 = vmul.f32 %v2341, %v2397
  %v2406 = vld [vmem:[%s9] sm:$0x1f]
  %v2407 = vld [vmem:[%s9 + $0x5] sm:$0x1]
  %v2408 = vld [vmem:[%s9 + $0x6] sm:$0x1]
  %v2409 = vld [vmem:[%s9 + $0x7] sm:$0x1]
  %v2410 = vld [vmem:[%s8] sm:$0xff]
  %v2411 = vld [vmem:[%s8 + $0x8] sm:$0xff]
  %v2412 = vld [vmem:[%s8 + $0x10] sm:$0xff]
  %v2413 = vld [vmem:[%s8 + $0x18] sm:$0xff]
  %v2414 = vlaneseq
  %v2415 = vshrl.u32 %v2414, 7
  %v2416 = vsub.s32 0, %v2415
  %v2417 = vrot.slane %v2409, %v2416
  %v2419 = vsel %vm76, %v2398, 0
  %v2422 = vsel %vm76, %v2399, 0
  %v2425 = vsel %vm76, %v2400, 0
  %v2428 = vsel %vm76, %v2401, 0
  %v2431 = vsel %vm76, %v2402, 0
  %v2434 = vsel %vm76, %v2403, 0
  %v2437 = vsel %vm76, %v2404, 0
  %v2440 = vsel %vm76, %v2405, 0
  %2442 = vmatprep.subr.mxu0 0.0
  %2443 = vmatpush1.msra.mxu0 %v2410
  %2444 = vmatprep.subr.mxu0 0.0
  %2445 = vmatpush1.msra.mxu0 %v2411
  %2446 = vmatprep.subr.mxu0 0.0
  %2447 = vmatpush1.msra.mxu0 %v2412
  %2448 = vmatprep.subr.mxu0 0.0
  %2449 = vmatpush1.msra.mxu0 %v2413
  %2450 = vmatprep.subr.mxu0 0.0
  %2451 = vmatpush1.msra.mxu0 0.0
  %2452 = vmatprep.subr.mxu0 0.0
  %2453 = vmatpush1.msra.mxu0 0.0
  %2454 = vmatprep.subr.mxu0 0.0
  %2455 = vmatpush1.msra.mxu0 0.0
  %2456 = vmatprep.subr.mxu0 0.0
  %2457 = vmatpush1.msra.mxu0 0.0
  %2458 = vmatprep.subr.mxu0 0.0
  %2459 = vmatpush1.msra.mxu0 0.0
  %2460 = vmatprep.subr.mxu0 0.0
  %2461 = vmatpush1.msra.mxu0 0.0
  %2462 = vmatprep.subr.mxu0 0.0
  %2463 = vmatpush1.msra.mxu0 0.0
  %2464 = vmatprep.subr.mxu0 0.0
  %2465 = vmatpush1.msra.mxu0 0.0
  %2466 = vmatprep.subr.mxu0 0.0
  %2467 = vmatpush1.msra.mxu0 0.0
  %2468 = vmatprep.subr.mxu0 0.0
  %2469 = vmatpush1.msra.mxu0 0.0
  %2470 = vmatprep.subr.mxu0 0.0
  %2471 = vmatpush1.msra.mxu0 0.0
  %2472 = vmatprep.subr.mxu0 0.0
  %2473 = vmatpush1.msra.mxu0 0.0
  %2474 = vmatprep.subr.mxu0 0.0
  %2475 = vmatpush1.msra.mxu0 0.0
  %2476 = vmatprep.subr.mxu0 0.0
  %2477 = vmatpush1.msra.mxu0 0.0
  %2478 = vmatprep.subr.mxu0 0.0
  %2479 = vmatpush1.msra.mxu0 0.0
  %2480 = vmatprep.subr.mxu0 0.0
  %2481 = vmatpush1.msra.mxu0 0.0
  %2482 = vmatprep.subr.mxu0 0.0
  %2483 = vmatpush1.msra.mxu0 0.0
  %2484 = vmatprep.subr.mxu0 0.0
  %2485 = vmatpush1.msra.mxu0 0.0
  %2486 = vmatprep.subr.mxu0 0.0
  %2487 = vmatpush1.msra.mxu0 0.0
  %2488 = vmatprep.subr.mxu0 0.0
  %2489 = vmatpush1.msra.mxu0 0.0
  %2490 = vmatprep.subr.mxu0 0.0
  %2491 = vmatpush1.msra.mxu0 0.0
  %2492 = vmatprep.subr.mxu0 0.0
  %2493 = vmatpush1.msra.mxu0 0.0
  %2494 = vmatprep.subr.mxu0 0.0
  %2495 = vmatpush1.msra.mxu0 0.0
  %2496 = vmatprep.subr.mxu0 0.0
  %2497 = vmatpush1.msra.mxu0 0.0
  %2498 = vmatprep.subr.mxu0 0.0
  %2499 = vmatpush1.msra.mxu0 0.0
  %2500 = vmatprep.subr.mxu0 0.0
  %2501 = vmatpush1.msra.mxu0 0.0
  %2502 = vmatprep.subr.mxu0 0.0
  %2503 = vmatpush1.msra.mxu0 0.0
  %2504 = vmatprep.subr.mxu0 0.0
  %2505 = vmatpush1.msra.mxu0 0.0
  %2506 = vmatprep.mubr.f32.mxu0 0.0
  %2507 = vmatmul.mubr.f32.gmra.mrb[0].mxu0 %v2419
  %v2508 = vpop.f32.mrb[0].mxu0
  %v2509 = vadd.f32 %v2417, %v2508
  %v2510 = vpop.f32.mrb[0].mxu0
  %2511 = vmatprep.mubr.f32.mxu0 0.0
  %2512 = vmatmul.mubr.f32.gmra.mrb[0].mxu0 %v2422
  %v2513 = vpop.f32.mrb[0].mxu0
  %v2514 = vadd.f32 %v2417, %v2513
  %v2515 = vpop.f32.mrb[0].mxu0
  %2516 = vmatprep.mubr.f32.mxu0 0.0
  %2517 = vmatmul.mubr.f32.gmra.mrb[0].mxu0 %v2425
  %v2518 = vpop.f32.mrb[0].mxu0
  %v2519 = vadd.f32 %v2417, %v2518
  %v2520 = vpop.f32.mrb[0].mxu0
  %2521 = vmatprep.mubr.f32.mxu0 0.0
  %2522 = vmatmul.mubr.f32.gmra.mrb[0].mxu0 %v2428
  %v2523 = vpop.f32.mrb[0].mxu0
  %v2524 = vadd.f32 %v2417, %v2523
  %v2525 = vpop.f32.mrb[0].mxu0
  %2526 = vmatprep.mubr.f32.mxu0 0.0
  %2527 = vmatmul.mubr.f32.gmra.mrb[0].mxu0 %v2431
  %v2528 = vpop.f32.mrb[0].mxu0
  %v2529 = vadd.f32 %v2417, %v2528
  %v2530 = vpop.f32.mrb[0].mxu0
  %2531 = vmatprep.mubr.f32.mxu0 0.0
  %2532 = vmatmul.mubr.f32.gmra.mrb[0].mxu0 %v2434
  %v2533 = vpop.f32.mrb[0].mxu0
  %v2534 = vadd.f32 %v2417, %v2533
  %v2535 = vpop.f32.mrb[0].mxu0
  %2536 = vmatprep.mubr.f32.mxu0 0.0
  %2537 = vmatmul.mubr.f32.gmra.mrb[0].mxu0 %v2437
  %v2538 = vpop.f32.mrb[0].mxu0
  %v2539 = vadd.f32 %v2417, %v2538
  %v2540 = vpop.f32.mrb[0].mxu0
  %2541 = vmatprep.mubr.f32.mxu0 0.0
  %2542 = vmatmul.mubr.f32.gmra.mrb[0].mxu0 %v2440
  %v2543 = vpop.f32.mrb[0].mxu0
  %v2544 = vadd.f32 %v2417, %v2543
  %v2545 = vpop.f32.mrb[0].mxu0
  %2546 = vdwg.mxu0
  %v2547 = vld [vmem:[%s2] sm:$0xff]
  %v2548 = vld [vmem:[%s2 + $0x8] sm:$0xff]
  %v2549 = vld [vmem:[%s2 + $0x10] sm:$0xff]
  %v2550 = vld [vmem:[%s2 + $0x18] sm:$0xff]
  %v2551 = vld [vmem:[%s2 + $0x20] sm:$0xff]
  %v2552 = vld [vmem:[%s2 + $0x28] sm:$0xff]
  %v2553 = vld [vmem:[%s2 + $0x30] sm:$0xff]
  %v2554 = vld [vmem:[%s2 + $0x38] sm:$0xff]
  %vm2555 = vcmask 36864
  %v2556 = vsel %vm2555, %v2406, -inf
  %v2557 = vrot.slane %v2556, 4
  %v2558 = vmax.f32 %v2556, %v2557
  %v2559 = vrot.slane %v2558, 2
  %v2560 = vmax.f32 %v2558, %v2559
  %v2561 = vrot.slane %v2560, 1
  %v2562 = vmax.f32 %v2560, %v2561
  %v2563 = vsub.f32 %v2406, %v2562
  %v2564 = vmul.f32 %v2563, 1.442695
  %v2565 = vpow.pop %v2564
  %v2566 = vmul.f32 %v2547, %v2509
  %v2567 = vmul.f32 %v2548, %v2514
  %v2568 = vmul.f32 %v2549, %v2519
  %v2569 = vmul.f32 %v2550, %v2524
  %v2570 = vmul.f32 %v2551, %v2529
  %v2571 = vmul.f32 %v2552, %v2534
  %v2572 = vmul.f32 %v2553, %v2539
  %v2573 = vmul.f32 %v2554, %v2544
  %vm2574 = vcmask 39936
  %v2575 = vsel %vm2574, %v2566, 0.0
  %2576 = vadd.xlane.f32.xlu0 %v2575
  %v2577 = vpop.xlane.xlu0 %2576
  %v2578 = vsel %vm2574, %v2567, 0.0
  %2579 = vadd.xlane.f32.xlu0 %v2578
  %v2580 = vpop.xlane.xlu0 %2579
  %v2581 = vsel %vm2574, %v2568, 0.0
  %2582 = vadd.xlane.f32.xlu0 %v2581
  %v2583 = vpop.xlane.xlu0 %2582
  %v2584 = vsel %vm2574, %v2569, 0.0
  %2585 = vadd.xlane.f32.xlu0 %v2584
  %v2586 = vpop.xlane.xlu0 %2585
  %v2587 = vsel %vm2574, %v2570, 0.0
  %2588 = vadd.xlane.f32.xlu0 %v2587
  %v2589 = vpop.xlane.xlu0 %2588
  %v2590 = vsel %vm2574, %v2571, 0.0
  %2591 = vadd.xlane.f32.xlu0 %v2590
  %v2592 = vpop.xlane.xlu0 %2591
  %v2593 = vsel %vm2574, %v2572, 0.0
  %2594 = vadd.xlane.f32.xlu0 %v2593
  %v2595 = vpop.xlane.xlu0 %2594
  %v2596 = vsel %vm2574, %v2573, 0.0
  %2597 = vadd.xlane.f32.xlu0 %v2596
  %v2598 = vpop.xlane.xlu0 %2597
  %v2599 = vlaneseq
  %v2600 = vshrl.u32 %v2599, 7
  %v2601 = vsub.s32 0, %v2600
  %v2602 = vrot.slane %v2408, %v2601
  %v2603 = vmul.f32 %v2547, %v2602
  %v2604 = vmul.f32 %v2548, %v2602
  %v2605 = vmul.f32 %v2549, %v2602
  %v2606 = vmul.f32 %v2550, %v2602
  %v2607 = vmul.f32 %v2551, %v2602
  %v2608 = vmul.f32 %v2552, %v2602
  %v2609 = vmul.f32 %v2553, %v2602
  %v2610 = vmul.f32 %v2554, %v2602
  %v2611 = vsel %vm2574, %v2603, 0.0
  %2612 = vadd.xlane.f32.xlu0 %v2611
  %v2613 = vpop.xlane.xlu0 %2612
  %v2614 = vsel %vm2574, %v2604, 0.0
  %2615 = vadd.xlane.f32.xlu0 %v2614
  %v2616 = vpop.xlane.xlu0 %2615
  %v2617 = vsel %vm2574, %v2605, 0.0
  %2618 = vadd.xlane.f32.xlu0 %v2617
  %v2619 = vpop.xlane.xlu0 %2618
  %v2620 = vsel %vm2574, %v2606, 0.0
  %2621 = vadd.xlane.f32.xlu0 %v2620
  %v2622 = vpop.xlane.xlu0 %2621
  %v2623 = vsel %vm2574, %v2607, 0.0
  %2624 = vadd.xlane.f32.xlu0 %v2623
  %v2625 = vpop.xlane.xlu0 %2624
  %v2626 = vsel %vm2574, %v2608, 0.0
  %2627 = vadd.xlane.f32.xlu0 %v2626
  %v2628 = vpop.xlane.xlu0 %2627
  %v2629 = vsel %vm2574, %v2609, 0.0
  %2630 = vadd.xlane.f32.xlu0 %v2629
  %v2631 = vpop.xlane.xlu0 %2630
  %v2632 = vsel %vm2574, %v2610, 0.0
  %2633 = vadd.xlane.f32.xlu0 %v2632
  %v2634 = vpop.xlane.xlu0 %2633
  %v2636 = vsel %vm2574, %v2547, 0
  %v2639 = vsel %vm2574, %v2548, 0
  %v2642 = vsel %vm2574, %v2549, 0
  %v2645 = vsel %vm2574, %v2550, 0
  %v2648 = vsel %vm2574, %v2551, 0
  %v2651 = vsel %vm2574, %v2552, 0
  %v2654 = vsel %vm2574, %v2553, 0
  %vm2656 = vcmask 1044480
  %v2658 = vsel %vm2656, %v2406, 0
  %2660 = vmatprep.subr.mxu0 0.0
  %2661 = vmatpush1.msra.mxu0 %v2658
  %2662 = vmatprep.subr.mxu0 0.0
  %2663 = vmatpush1.msra.mxu0 0.0
  %2664 = vmatprep.subr.mxu0 0.0
  %2665 = vmatpush1.msra.mxu0 0.0
  %2666 = vmatprep.subr.mxu0 0.0
  %2667 = vmatpush1.msra.mxu0 0.0
  %2668 = vmatprep.subr.mxu0 0.0
  %2669 = vmatpush1.msra.mxu0 0.0
  %2670 = vmatprep.subr.mxu0 0.0
  %2671 = vmatpush1.msra.mxu0 0.0
  %2672 = vmatprep.subr.mxu0 0.0
  %2673 = vmatpush1.msra.mxu0 0.0
  %2674 = vmatprep.subr.mxu0 0.0
  %2675 = vmatpush1.msra.mxu0 0.0
  %2676 = vmatprep.subr.mxu0 0.0
  %2677 = vmatpush1.msra.mxu0 0.0
  %2678 = vmatprep.subr.mxu0 0.0
  %2679 = vmatpush1.msra.mxu0 0.0
  %2680 = vmatprep.subr.mxu0 0.0
  %2681 = vmatpush1.msra.mxu0 0.0
  %2682 = vmatprep.subr.mxu0 0.0
  %2683 = vmatpush1.msra.mxu0 0.0
  %2684 = vmatprep.subr.mxu0 0.0
  %2685 = vmatpush1.msra.mxu0 0.0
  %2686 = vmatprep.subr.mxu0 0.0
  %2687 = vmatpush1.msra.mxu0 0.0
  %2688 = vmatprep.subr.mxu0 0.0
  %2689 = vmatpush1.msra.mxu0 0.0
  %2690 = vmatprep.subr.mxu0 0.0
  %2691 = vmatpush1.msra.mxu0 0.0
  %2692 = vmatprep.subr.mxu0 0.0
  %2693 = vmatpush1.msra.mxu0 0.0
  %2694 = vmatprep.subr.mxu0 0.0
  %2695 = vmatpush1.msra.mxu0 0.0
  %2696 = vmatprep.subr.mxu0 0.0
  %2697 = vmatpush1.msra.mxu0 0.0
  %2698 = vmatprep.subr.mxu0 0.0
  %2699 = vmatpush1.msra.mxu0 0.0
  %2700 = vmatprep.subr.mxu0 0.0
  %2701 = vmatpush1.msra.mxu0 0.0
  %2702 = vmatprep.subr.mxu0 0.0
  %2703 = vmatpush1.msra.mxu0 0.0
  %2704 = vmatprep.subr.mxu0 0.0
  %2705 = vmatpush1.msra.mxu0 0.0
  %2706 = vmatprep.subr.mxu0 0.0
  %2707 = vmatpush1.msra.mxu0 0.0
  %2708 = vmatprep.subr.mxu0 0.0
  %2709 = vmatpush1.msra.mxu0 0.0
  %2710 = vmatprep.subr.mxu0 0.0
  %2711 = vmatpush1.msra.mxu0 0.0
  %2712 = vmatprep.subr.mxu0 0.0
  %2713 = vmatpush1.msra.mxu0 0.0
  %2714 = vmatprep.subr.mxu0 0.0
  %2715 = vmatpush1.msra.mxu0 0.0
  %2716 = vmatprep.subr.mxu0 0.0
  %2717 = vmatpush1.msra.mxu0 0.0
  %2718 = vmatprep.subr.mxu0 0.0
  %2719 = vmatpush1.msra.mxu0 0.0
  %2720 = vmatprep.subr.mxu0 0.0
  %2721 = vmatpush1.msra.mxu0 0.0
  %2722 = vmatprep.subr.mxu0 0.0
  %2723 = vmatpush1.msra.mxu0 0.0
  %2724 = vmatprep.mubr.f32.mxu0 0.0
  %2725 = vmatmul.mubr.f32.gmra.mrb[0].mxu0 %v2636
  %v2726 = vpop.f32.mrb[0].mxu0
  %v2727 = vadd.f32 0.0, %v2726
  %v2728 = vpop.f32.mrb[0].mxu0
  %2729 = vmatprep.mubr.f32.mxu0 0.0
  %2730 = vmatmul.mubr.f32.gmra.mrb[0].mxu0 %v2639
  %v2731 = vpop.f32.mrb[0].mxu0
  %v2732 = vadd.f32 0.0, %v2731
  %v2733 = vpop.f32.mrb[0].mxu0
  %2734 = vmatprep.mubr.f32.mxu0 0.0
  %2735 = vmatmul.mubr.f32.gmra.mrb[0].mxu0 %v2642
  %v2736 = vpop.f32.mrb[0].mxu0
  %v2737 = vadd.f32 0.0, %v2736
  %v2738 = vpop.f32.mrb[0].mxu0
  %2739 = vmatprep.mubr.f32.mxu0 0.0
  %2740 = vmatmul.mubr.f32.gmra.mrb[0].mxu0 %v2645
  %v2741 = vpop.f32.mrb[0].mxu0
  %v2742 = vadd.f32 0.0, %v2741
  %v2743 = vpop.f32.mrb[0].mxu0
  %2744 = vmatprep.mubr.f32.mxu0 0.0
  %2745 = vmatmul.mubr.f32.gmra.mrb[0].mxu0 %v2648
  %v2746 = vpop.f32.mrb[0].mxu0
  %v2747 = vadd.f32 0.0, %v2746
  %v2748 = vpop.f32.mrb[0].mxu0
  %2749 = vmatprep.mubr.f32.mxu0 0.0
  %2750 = vmatmul.mubr.f32.gmra.mrb[0].mxu0 %v2651
  %v2751 = vpop.f32.mrb[0].mxu0
  %v2752 = vadd.f32 0.0, %v2751
  %v2753 = vpop.f32.mrb[0].mxu0
  %2754 = vmatprep.mubr.f32.mxu0 0.0
  %2755 = vmatmul.mubr.f32.gmra.mrb[0].mxu0 %v2654
  %v2756 = vpop.f32.mrb[0].mxu0
  %v2757 = vadd.f32 0.0, %v2756
  %v2758 = vpop.f32.mrb[0].mxu0
  %2759 = vdwg.mxu0
  %v2760 = vmul.f32 %v2727, %v2548
  %v2761 = vmul.f32 %v2732, %v2549
  %v2762 = vmul.f32 %v2737, %v2550
  %v2763 = vmul.f32 %v2742, %v2551
  %v2764 = vmul.f32 %v2747, %v2552
  %v2765 = vmul.f32 %v2752, %v2553
  %v2766 = vmul.f32 %v2757, %v2554
  %v2767 = vsel %vm2574, %v2760, 0.0
  %2768 = vadd.xlane.f32.xlu0 %v2767
  %v2769 = vpop.xlane.xlu0 %2768
  %v2770 = vsel %vm2574, %v2761, 0.0
  %2771 = vadd.xlane.f32.xlu0 %v2770
  %v2772 = vpop.xlane.xlu0 %2771
  %v2773 = vsel %vm2574, %v2762, 0.0
  %2774 = vadd.xlane.f32.xlu0 %v2773
  %v2775 = vpop.xlane.xlu0 %2774
  %v2776 = vsel %vm2574, %v2763, 0.0
  %2777 = vadd.xlane.f32.xlu0 %v2776
  %v2778 = vpop.xlane.xlu0 %2777
  %v2779 = vsel %vm2574, %v2764, 0.0
  %2780 = vadd.xlane.f32.xlu0 %v2779
  %v2781 = vpop.xlane.xlu0 %2780
  %v2782 = vsel %vm2574, %v2765, 0.0
  %2783 = vadd.xlane.f32.xlu0 %v2782
  %v2784 = vpop.xlane.xlu0 %2783
  %v2785 = vsel %vm2574, %v2766, 0.0
  %2786 = vadd.xlane.f32.xlu0 %v2785
  %v2787 = vpop.xlane.xlu0 %2786
  %v2788 = vlaneseq
  %v2789 = vshrl.u32 %v2788, 7
  %v2790 = vsub.s32 0, %v2789
  %v2791 = vrot.slane %v2407, %v2790
  %v2792 = vmul.f32 %v2791, %v2547
  %v2793 = vsel %vm2574, %v2792, 0.0
  %2794 = vadd.xlane.f32.xlu0 %v2793
  %v2795 = vpop.xlane.xlu0 %2794
  %v2796 = vadd.f32 %v2795, %v2577
  %v2797 = vmul.f32 %v35, %v2613
  %v2798 = vadd.f32 %v2796, %v2797
  %v2799 = vadd.f32 %v2791, %v2509
  %v2800 = vadd.f32 %v2769, %v2580
  %v2801 = vmul.f32 %v36, %v2800
  %2803 = vrot.lane.b32.xlu0 %v2801, 1
  %v2804 = vpop.permute.xlu0 %2803
  %v2806 = vadd.f32 %v2798, %v2804
  %v2807 = vmul.f32 %v36, %v2616
  %v2808 = vadd.f32 %v2806, %v2807
  %v2809 = vsel %vm2574, %v2799, -inf
  %2810 = vmax.xlane.f32.xlu0 %v2809
  %v2811 = vpop.xlane.xlu0 %2810
  %v2812 = vsub.f32 %v2799, %v2811
  %v2813 = vmul.f32 %v2812, 1.442695
  %v2814 = vpow.pop %v2813
  %v2816 = vsel %vm2574, %v2814, 0
  %v2819 = vsel %vm2656, %v2565, 0
  %2821 = vmatprep.subr.mxu0 0.0
  %2822 = vmatpush1.msra.mxu0 %v2819
  %2823 = vmatprep.subr.mxu0 0.0
  %2824 = vmatpush1.msra.mxu0 0.0
  %2825 = vmatprep.subr.mxu0 0.0
  %2826 = vmatpush1.msra.mxu0 0.0
  %2827 = vmatprep.subr.mxu0 0.0
  %2828 = vmatpush1.msra.mxu0 0.0
  %2829 = vmatprep.subr.mxu0 0.0
  %2830 = vmatpush1.msra.mxu0 0.0
  %2831 = vmatprep.subr.mxu0 0.0
  %2832 = vmatpush1.msra.mxu0 0.0
  %2833 = vmatprep.subr.mxu0 0.0
  %2834 = vmatpush1.msra.mxu0 0.0
  %2835 = vmatprep.subr.mxu0 0.0
  %2836 = vmatpush1.msra.mxu0 0.0
  %2837 = vmatprep.subr.mxu0 0.0
  %2838 = vmatpush1.msra.mxu0 0.0
  %2839 = vmatprep.subr.mxu0 0.0
  %2840 = vmatpush1.msra.mxu0 0.0
  %2841 = vmatprep.subr.mxu0 0.0
  %2842 = vmatpush1.msra.mxu0 0.0
  %2843 = vmatprep.subr.mxu0 0.0
  %2844 = vmatpush1.msra.mxu0 0.0
  %2845 = vmatprep.subr.mxu0 0.0
  %2846 = vmatpush1.msra.mxu0 0.0
  %2847 = vmatprep.subr.mxu0 0.0
  %2848 = vmatpush1.msra.mxu0 0.0
  %2849 = vmatprep.subr.mxu0 0.0
  %2850 = vmatpush1.msra.mxu0 0.0
  %2851 = vmatprep.subr.mxu0 0.0
  %2852 = vmatpush1.msra.mxu0 0.0
  %2853 = vmatprep.subr.mxu0 0.0
  %2854 = vmatpush1.msra.mxu0 0.0
  %2855 = vmatprep.subr.mxu0 0.0
  %2856 = vmatpush1.msra.mxu0 0.0
  %2857 = vmatprep.subr.mxu0 0.0
  %2858 = vmatpush1.msra.mxu0 0.0
  %2859 = vmatprep.subr.mxu0 0.0
  %2860 = vmatpush1.msra.mxu0 0.0
  %2861 = vmatprep.subr.mxu0 0.0
  %2862 = vmatpush1.msra.mxu0 0.0
  %2863 = vmatprep.subr.mxu0 0.0
  %2864 = vmatpush1.msra.mxu0 0.0
  %2865 = vmatprep.subr.mxu0 0.0
  %2866 = vmatpush1.msra.mxu0 0.0
  %2867 = vmatprep.subr.mxu0 0.0
  %2868 = vmatpush1.msra.mxu0 0.0
  %2869 = vmatprep.subr.mxu0 0.0
  %2870 = vmatpush1.msra.mxu0 0.0
  %2871 = vmatprep.subr.mxu0 0.0
  %2872 = vmatpush1.msra.mxu0 0.0
  %2873 = vmatprep.subr.mxu0 0.0
  %2874 = vmatpush1.msra.mxu0 0.0
  %2875 = vmatprep.subr.mxu0 0.0
  %2876 = vmatpush1.msra.mxu0 0.0
  %2877 = vmatprep.subr.mxu0 0.0
  %2878 = vmatpush1.msra.mxu0 0.0
  %2879 = vmatprep.subr.mxu0 0.0
  %2880 = vmatpush1.msra.mxu0 0.0
  %2881 = vmatprep.subr.mxu0 0.0
  %2882 = vmatpush1.msra.mxu0 0.0
  %2883 = vmatprep.subr.mxu0 0.0
  %2884 = vmatpush1.msra.mxu0 0.0
  %2885 = vmatprep.mubr.f32.mxu0 0.0
  %2886 = vmatmul.mubr.f32.gmra.mrb[0].mxu0 %v2816
  %v2887 = vpop.f32.mrb[0].mxu0
  %v2888 = vadd.f32 0.0, %v2887
  %v2889 = vpop.f32.mrb[0].mxu0
  %2890 = vdwg.mxu0
  %v2891 = vadd.f32 %v2811, %v2562
  %v2892 = vlog2.pop %v2888
  %v2893 = vmul.f32 %v2892, 0.6931472
  %v2894 = vadd.f32 %v2891, %v2893
  %v2895 = vadd.f32 %v2894, %v2514
  %v2896 = vmul.f32 %v345, %v2895
  %v2897 = vsub.f32 1.0, %v36
  %2899 = vset.pattern.permute.xlu0 0
  %2900 = vperm.xlu0 %2899, %v2897
  %v2901 = vpop.permute.xlu0 %2900
  %v2903 = vmul.f32 %v2901, %v2799
  %v2904 = vadd.f32 %v2896, %v2903
  %v2905 = vadd.f32 %v2772, %v2583
  %v2906 = vmul.f32 %v37, %v2905
  %2908 = vrot.lane.b32.xlu0 %v2906, 1
  %v2909 = vpop.permute.xlu0 %2908
  %v2911 = vadd.f32 %v2808, %v2909
  %v2912 = vmul.f32 %v37, %v2619
  %v2913 = vadd.f32 %v2911, %v2912
  %v2914 = vsel %vm2574, %v2904, -inf
  %2915 = vmax.xlane.f32.xlu0 %v2914
  %v2916 = vpop.xlane.xlu0 %2915
  %v2917 = vsub.f32 %v2904, %v2916
  %v2918 = vmul.f32 %v2917, 1.442695
  %v2919 = vpow.pop %v2918
  %v2921 = vsel %vm2574, %v2919, 0
  %2923 = vmatprep.subr.mxu0 0.0
  %2924 = vmatpush1.msra.mxu0 %v2819
  %2925 = vmatprep.subr.mxu0 0.0
  %2926 = vmatpush1.msra.mxu0 0.0
  %2927 = vmatprep.subr.mxu0 0.0
  %2928 = vmatpush1.msra.mxu0 0.0
  %2929 = vmatprep.subr.mxu0 0.0
  %2930 = vmatpush1.msra.mxu0 0.0
  %2931 = vmatprep.subr.mxu0 0.0
  %2932 = vmatpush1.msra.mxu0 0.0
  %2933 = vmatprep.subr.mxu0 0.0
  %2934 = vmatpush1.msra.mxu0 0.0
  %2935 = vmatprep.subr.mxu0 0.0
  %2936 = vmatpush1.msra.mxu0 0.0
  %2937 = vmatprep.subr.mxu0 0.0
  %2938 = vmatpush1.msra.mxu0 0.0
  %2939 = vmatprep.subr.mxu0 0.0
  %2940 = vmatpush1.msra.mxu0 0.0
  %2941 = vmatprep.subr.mxu0 0.0
  %2942 = vmatpush1.msra.mxu0 0.0
  %2943 = vmatprep.subr.mxu0 0.0
  %2944 = vmatpush1.msra.mxu0 0.0
  %2945 = vmatprep.subr.mxu0 0.0
  %2946 = vmatpush1.msra.mxu0 0.0
  %2947 = vmatprep.subr.mxu0 0.0
  %2948 = vmatpush1.msra.mxu0 0.0
  %2949 = vmatprep.subr.mxu0 0.0
  %2950 = vmatpush1.msra.mxu0 0.0
  %2951 = vmatprep.subr.mxu0 0.0
  %2952 = vmatpush1.msra.mxu0 0.0
  %2953 = vmatprep.subr.mxu0 0.0
  %2954 = vmatpush1.msra.mxu0 0.0
  %2955 = vmatprep.subr.mxu0 0.0
  %2956 = vmatpush1.msra.mxu0 0.0
  %2957 = vmatprep.subr.mxu0 0.0
  %2958 = vmatpush1.msra.mxu0 0.0
  %2959 = vmatprep.subr.mxu0 0.0
  %2960 = vmatpush1.msra.mxu0 0.0
  %2961 = vmatprep.subr.mxu0 0.0
  %2962 = vmatpush1.msra.mxu0 0.0
  %2963 = vmatprep.subr.mxu0 0.0
  %2964 = vmatpush1.msra.mxu0 0.0
  %2965 = vmatprep.subr.mxu0 0.0
  %2966 = vmatpush1.msra.mxu0 0.0
  %2967 = vmatprep.subr.mxu0 0.0
  %2968 = vmatpush1.msra.mxu0 0.0
  %2969 = vmatprep.subr.mxu0 0.0
  %2970 = vmatpush1.msra.mxu0 0.0
  %2971 = vmatprep.subr.mxu0 0.0
  %2972 = vmatpush1.msra.mxu0 0.0
  %2973 = vmatprep.subr.mxu0 0.0
  %2974 = vmatpush1.msra.mxu0 0.0
  %2975 = vmatprep.subr.mxu0 0.0
  %2976 = vmatpush1.msra.mxu0 0.0
  %2977 = vmatprep.subr.mxu0 0.0
  %2978 = vmatpush1.msra.mxu0 0.0
  %2979 = vmatprep.subr.mxu0 0.0
  %2980 = vmatpush1.msra.mxu0 0.0
  %2981 = vmatprep.subr.mxu0 0.0
  %2982 = vmatpush1.msra.mxu0 0.0
  %2983 = vmatprep.subr.mxu0 0.0
  %2984 = vmatpush1.msra.mxu0 0.0
  %2985 = vmatprep.subr.mxu0 0.0
  %2986 = vmatpush1.msra.mxu0 0.0
  %2987 = vmatprep.mubr.f32.mxu0 0.0
  %2988 = vmatmul.mubr.f32.gmra.mrb[0].mxu0 %v2921
  %v2989 = vpop.f32.mrb[0].mxu0
  %v2990 = vadd.f32 0.0, %v2989
  %v2991 = vpop.f32.mrb[0].mxu0
  %2992 = vdwg.mxu0
  %v2993 = vadd.f32 %v2916, %v2562
  %v2994 = vlog2.pop %v2990
  %v2995 = vmul.f32 %v2994, 0.6931472
  %v2996 = vadd.f32 %v2993, %v2995
  %v2997 = vadd.f32 %v2996, %v2519
  %v2998 = vmul.f32 %v476, %v2997
  %v2999 = vsub.f32 1.0, %v37
  %3001 = vset.pattern.permute.xlu0 0
  %3002 = vperm.xlu0 %3001, %v2999
  %v3003 = vpop.permute.xlu0 %3002
  %v3005 = vmul.f32 %v3003, %v2904
  %v3006 = vadd.f32 %v2998, %v3005
  %v3007 = vadd.f32 %v2775, %v2586
  %v3008 = vmul.f32 %v38, %v3007
  %3010 = vrot.lane.b32.xlu0 %v3008, 1
  %v3011 = vpop.permute.xlu0 %3010
  %v3013 = vadd.f32 %v2913, %v3011
  %v3014 = vmul.f32 %v38, %v2622
  %v3015 = vadd.f32 %v3013, %v3014
  %v3016 = vsel %vm2574, %v3006, -inf
  %3017 = vmax.xlane.f32.xlu0 %v3016
  %v3018 = vpop.xlane.xlu0 %3017
  %v3019 = vsub.f32 %v3006, %v3018
  %v3020 = vmul.f32 %v3019, 1.442695
  %v3021 = vpow.pop %v3020
  %v3023 = vsel %vm2574, %v3021, 0
  %3025 = vmatprep.subr.mxu0 0.0
  %3026 = vmatpush1.msra.mxu0 %v2819
  %3027 = vmatprep.subr.mxu0 0.0
  %3028 = vmatpush1.msra.mxu0 0.0
  %3029 = vmatprep.subr.mxu0 0.0
  %3030 = vmatpush1.msra.mxu0 0.0
  %3031 = vmatprep.subr.mxu0 0.0
  %3032 = vmatpush1.msra.mxu0 0.0
  %3033 = vmatprep.subr.mxu0 0.0
  %3034 = vmatpush1.msra.mxu0 0.0
  %3035 = vmatprep.subr.mxu0 0.0
  %3036 = vmatpush1.msra.mxu0 0.0
  %3037 = vmatprep.subr.mxu0 0.0
  %3038 = vmatpush1.msra.mxu0 0.0
  %3039 = vmatprep.subr.mxu0 0.0
  %3040 = vmatpush1.msra.mxu0 0.0
  %3041 = vmatprep.subr.mxu0 0.0
  %3042 = vmatpush1.msra.mxu0 0.0
  %3043 = vmatprep.subr.mxu0 0.0
  %3044 = vmatpush1.msra.mxu0 0.0
  %3045 = vmatprep.subr.mxu0 0.0
  %3046 = vmatpush1.msra.mxu0 0.0
  %3047 = vmatprep.subr.mxu0 0.0
  %3048 = vmatpush1.msra.mxu0 0.0
  %3049 = vmatprep.subr.mxu0 0.0
  %3050 = vmatpush1.msra.mxu0 0.0
  %3051 = vmatprep.subr.mxu0 0.0
  %3052 = vmatpush1.msra.mxu0 0.0
  %3053 = vmatprep.subr.mxu0 0.0
  %3054 = vmatpush1.msra.mxu0 0.0
  %3055 = vmatprep.subr.mxu0 0.0
  %3056 = vmatpush1.msra.mxu0 0.0
  %3057 = vmatprep.subr.mxu0 0.0
  %3058 = vmatpush1.msra.mxu0 0.0
  %3059 = vmatprep.subr.mxu0 0.0
  %3060 = vmatpush1.msra.mxu0 0.0
  %3061 = vmatprep.subr.mxu0 0.0
  %3062 = vmatpush1.msra.mxu0 0.0
  %3063 = vmatprep.subr.mxu0 0.0
  %3064 = vmatpush1.msra.mxu0 0.0
  %3065 = vmatprep.subr.mxu0 0.0
  %3066 = vmatpush1.msra.mxu0 0.0
  %3067 = vmatprep.subr.mxu0 0.0
  %3068 = vmatpush1.msra.mxu0 0.0
  %3069 = vmatprep.subr.mxu0 0.0
  %3070 = vmatpush1.msra.mxu0 0.0
  %3071 = vmatprep.subr.mxu0 0.0
  %3072 = vmatpush1.msra.mxu0 0.0
  %3073 = vmatprep.subr.mxu0 0.0
  %3074 = vmatpush1.msra.mxu0 0.0
  %3075 = vmatprep.subr.mxu0 0.0
  %3076 = vmatpush1.msra.mxu0 0.0
  %3077 = vmatprep.subr.mxu0 0.0
  %3078 = vmatpush1.msra.mxu0 0.0
  %3079 = vmatprep.subr.mxu0 0.0
  %3080 = vmatpush1.msra.mxu0 0.0
  %3081 = vmatprep.subr.mxu0 0.0
  %3082 = vmatpush1.msra.mxu0 0.0
  %3083 = vmatprep.subr.mxu0 0.0
  %3084 = vmatpush1.msra.mxu0 0.0
  %3085 = vmatprep.subr.mxu0 0.0
  %3086 = vmatpush1.msra.mxu0 0.0
  %3087 = vmatprep.subr.mxu0 0.0
  %3088 = vmatpush1.msra.mxu0 0.0
  %3089 = vmatprep.mubr.f32.mxu0 0.0
  %3090 = vmatmul.mubr.f32.gmra.mrb[0].mxu0 %v3023
  %v3091 = vpop.f32.mrb[0].mxu0
  %v3092 = vadd.f32 0.0, %v3091
  %v3093 = vpop.f32.mrb[0].mxu0
  %3094 = vdwg.mxu0
  %v3095 = vadd.f32 %v3018, %v2562
  %v3096 = vlog2.pop %v3092
  %v3097 = vmul.f32 %v3096, 0.6931472
  %v3098 = vadd.f32 %v3095, %v3097
  %v3099 = vadd.f32 %v3098, %v2524
  %v3100 = vmul.f32 %v607, %v3099
  %v3101 = vsub.f32 1.0, %v38
  %3103 = vset.pattern.permute.xlu0 0
  %3104 = vperm.xlu0 %3103, %v3101
  %v3105 = vpop.permute.xlu0 %3104
  %v3107 = vmul.f32 %v3105, %v3006
  %v3108 = vadd.f32 %v3100, %v3107
  %v3109 = vadd.f32 %v2778, %v2589
  %v3110 = vmul.f32 %v39, %v3109
  %3112 = vrot.lane.b32.xlu0 %v3110, 1
  %v3113 = vpop.permute.xlu0 %3112
  %v3115 = vadd.f32 %v3015, %v3113
  %v3116 = vmul.f32 %v39, %v2625
  %v3117 = vadd.f32 %v3115, %v3116
  %v3118 = vsel %vm2574, %v3108, -inf
  %3119 = vmax.xlane.f32.xlu0 %v3118
  %v3120 = vpop.xlane.xlu0 %3119
  %v3121 = vsub.f32 %v3108, %v3120
  %v3122 = vmul.f32 %v3121, 1.442695
  %v3123 = vpow.pop %v3122
  %v3125 = vsel %vm2574, %v3123, 0
  %3127 = vmatprep.subr.mxu0 0.0
  %3128 = vmatpush1.msra.mxu0 %v2819
  %3129 = vmatprep.subr.mxu0 0.0
  %3130 = vmatpush1.msra.mxu0 0.0
  %3131 = vmatprep.subr.mxu0 0.0
  %3132 = vmatpush1.msra.mxu0 0.0
  %3133 = vmatprep.subr.mxu0 0.0
  %3134 = vmatpush1.msra.mxu0 0.0
  %3135 = vmatprep.subr.mxu0 0.0
  %3136 = vmatpush1.msra.mxu0 0.0
  %3137 = vmatprep.subr.mxu0 0.0
  %3138 = vmatpush1.msra.mxu0 0.0
  %3139 = vmatprep.subr.mxu0 0.0
  %3140 = vmatpush1.msra.mxu0 0.0
  %3141 = vmatprep.subr.mxu0 0.0
  %3142 = vmatpush1.msra.mxu0 0.0
  %3143 = vmatprep.subr.mxu0 0.0
  %3144 = vmatpush1.msra.mxu0 0.0
  %3145 = vmatprep.subr.mxu0 0.0
  %3146 = vmatpush1.msra.mxu0 0.0
  %3147 = vmatprep.subr.mxu0 0.0
  %3148 = vmatpush1.msra.mxu0 0.0
  %3149 = vmatprep.subr.mxu0 0.0
  %3150 = vmatpush1.msra.mxu0 0.0
  %3151 = vmatprep.subr.mxu0 0.0
  %3152 = vmatpush1.msra.mxu0 0.0
  %3153 = vmatprep.subr.mxu0 0.0
  %3154 = vmatpush1.msra.mxu0 0.0
  %3155 = vmatprep.subr.mxu0 0.0
  %3156 = vmatpush1.msra.mxu0 0.0
  %3157 = vmatprep.subr.mxu0 0.0
  %3158 = vmatpush1.msra.mxu0 0.0
  %3159 = vmatprep.subr.mxu0 0.0
  %3160 = vmatpush1.msra.mxu0 0.0
  %3161 = vmatprep.subr.mxu0 0.0
  %3162 = vmatpush1.msra.mxu0 0.0
  %3163 = vmatprep.subr.mxu0 0.0
  %3164 = vmatpush1.msra.mxu0 0.0
  %3165 = vmatprep.subr.mxu0 0.0
  %3166 = vmatpush1.msra.mxu0 0.0
  %3167 = vmatprep.subr.mxu0 0.0
  %3168 = vmatpush1.msra.mxu0 0.0
  %3169 = vmatprep.subr.mxu0 0.0
  %3170 = vmatpush1.msra.mxu0 0.0
  %3171 = vmatprep.subr.mxu0 0.0
  %3172 = vmatpush1.msra.mxu0 0.0
  %3173 = vmatprep.subr.mxu0 0.0
  %3174 = vmatpush1.msra.mxu0 0.0
  %3175 = vmatprep.subr.mxu0 0.0
  %3176 = vmatpush1.msra.mxu0 0.0
  %3177 = vmatprep.subr.mxu0 0.0
  %3178 = vmatpush1.msra.mxu0 0.0
  %3179 = vmatprep.subr.mxu0 0.0
  %3180 = vmatpush1.msra.mxu0 0.0
  %3181 = vmatprep.subr.mxu0 0.0
  %3182 = vmatpush1.msra.mxu0 0.0
  %3183 = vmatprep.subr.mxu0 0.0
  %3184 = vmatpush1.msra.mxu0 0.0
  %3185 = vmatprep.subr.mxu0 0.0
  %3186 = vmatpush1.msra.mxu0 0.0
  %3187 = vmatprep.subr.mxu0 0.0
  %3188 = vmatpush1.msra.mxu0 0.0
  %3189 = vmatprep.subr.mxu0 0.0
  %3190 = vmatpush1.msra.mxu0 0.0
  %3191 = vmatprep.mubr.f32.mxu0 0.0
  %3192 = vmatmul.mubr.f32.gmra.mrb[0].mxu0 %v3125
  %v3193 = vpop.f32.mrb[0].mxu0
  %v3194 = vadd.f32 0.0, %v3193
  %v3195 = vpop.f32.mrb[0].mxu0
  %3196 = vdwg.mxu0
  %v3197 = vadd.f32 %v3120, %v2562
  %v3198 = vlog2.pop %v3194
  %v3199 = vmul.f32 %v3198, 0.6931472
  %v3200 = vadd.f32 %v3197, %v3199
  %v3201 = vadd.f32 %v3200, %v2529
  %v3202 = vmul.f32 %v612, %v3201
  %v3203 = vsub.f32 1.0, %v39
  %3205 = vset.pattern.permute.xlu0 0
  %3206 = vperm.xlu0 %3205, %v3203
  %v3207 = vpop.permute.xlu0 %3206
  %v3209 = vmul.f32 %v3207, %v3108
  %v3210 = vadd.f32 %v3202, %v3209
  %v3211 = vadd.f32 %v2781, %v2592
  %v3212 = vmul.f32 %v40, %v3211
  %3214 = vrot.lane.b32.xlu0 %v3212, 1
  %v3215 = vpop.permute.xlu0 %3214
  %v3217 = vadd.f32 %v3117, %v3215
  %v3218 = vmul.f32 %v40, %v2628
  %v3219 = vadd.f32 %v3217, %v3218
  %v3220 = vsel %vm2574, %v3210, -inf
  %3221 = vmax.xlane.f32.xlu0 %v3220
  %v3222 = vpop.xlane.xlu0 %3221
  %v3223 = vsub.f32 %v3210, %v3222
  %v3224 = vmul.f32 %v3223, 1.442695
  %v3225 = vpow.pop %v3224
  %v3227 = vsel %vm2574, %v3225, 0
  %3229 = vmatprep.subr.mxu0 0.0
  %3230 = vmatpush1.msra.mxu0 %v2819
  %3231 = vmatprep.subr.mxu0 0.0
  %3232 = vmatpush1.msra.mxu0 0.0
  %3233 = vmatprep.subr.mxu0 0.0
  %3234 = vmatpush1.msra.mxu0 0.0
  %3235 = vmatprep.subr.mxu0 0.0
  %3236 = vmatpush1.msra.mxu0 0.0
  %3237 = vmatprep.subr.mxu0 0.0
  %3238 = vmatpush1.msra.mxu0 0.0
  %3239 = vmatprep.subr.mxu0 0.0
  %3240 = vmatpush1.msra.mxu0 0.0
  %3241 = vmatprep.subr.mxu0 0.0
  %3242 = vmatpush1.msra.mxu0 0.0
  %3243 = vmatprep.subr.mxu0 0.0
  %3244 = vmatpush1.msra.mxu0 0.0
  %3245 = vmatprep.subr.mxu0 0.0
  %3246 = vmatpush1.msra.mxu0 0.0
  %3247 = vmatprep.subr.mxu0 0.0
  %3248 = vmatpush1.msra.mxu0 0.0
  %3249 = vmatprep.subr.mxu0 0.0
  %3250 = vmatpush1.msra.mxu0 0.0
  %3251 = vmatprep.subr.mxu0 0.0
  %3252 = vmatpush1.msra.mxu0 0.0
  %3253 = vmatprep.subr.mxu0 0.0
  %3254 = vmatpush1.msra.mxu0 0.0
  %3255 = vmatprep.subr.mxu0 0.0
  %3256 = vmatpush1.msra.mxu0 0.0
  %3257 = vmatprep.subr.mxu0 0.0
  %3258 = vmatpush1.msra.mxu0 0.0
  %3259 = vmatprep.subr.mxu0 0.0
  %3260 = vmatpush1.msra.mxu0 0.0
  %3261 = vmatprep.subr.mxu0 0.0
  %3262 = vmatpush1.msra.mxu0 0.0
  %3263 = vmatprep.subr.mxu0 0.0
  %3264 = vmatpush1.msra.mxu0 0.0
  %3265 = vmatprep.subr.mxu0 0.0
  %3266 = vmatpush1.msra.mxu0 0.0
  %3267 = vmatprep.subr.mxu0 0.0
  %3268 = vmatpush1.msra.mxu0 0.0
  %3269 = vmatprep.subr.mxu0 0.0
  %3270 = vmatpush1.msra.mxu0 0.0
  %3271 = vmatprep.subr.mxu0 0.0
  %3272 = vmatpush1.msra.mxu0 0.0
  %3273 = vmatprep.subr.mxu0 0.0
  %3274 = vmatpush1.msra.mxu0 0.0
  %3275 = vmatprep.subr.mxu0 0.0
  %3276 = vmatpush1.msra.mxu0 0.0
  %3277 = vmatprep.subr.mxu0 0.0
  %3278 = vmatpush1.msra.mxu0 0.0
  %3279 = vmatprep.subr.mxu0 0.0
  %3280 = vmatpush1.msra.mxu0 0.0
  %3281 = vmatprep.subr.mxu0 0.0
  %3282 = vmatpush1.msra.mxu0 0.0
  %3283 = vmatprep.subr.mxu0 0.0
  %3284 = vmatpush1.msra.mxu0 0.0
  %3285 = vmatprep.subr.mxu0 0.0
  %3286 = vmatpush1.msra.mxu0 0.0
  %3287 = vmatprep.subr.mxu0 0.0
  %3288 = vmatpush1.msra.mxu0 0.0
  %3289 = vmatprep.subr.mxu0 0.0
  %3290 = vmatpush1.msra.mxu0 0.0
  %3291 = vmatprep.subr.mxu0 0.0
  %3292 = vmatpush1.msra.mxu0 0.0
  %3293 = vmatprep.mubr.f32.mxu0 0.0
  %3294 = vmatmul.mubr.f32.gmra.mrb[0].mxu0 %v3227
  %v3295 = vpop.f32.mrb[0].mxu0
  %v3296 = vadd.f32 0.0, %v3295
  %v3297 = vpop.f32.mrb[0].mxu0
  %3298 = vdwg.mxu0
  %v3299 = vadd.f32 %v3222, %v2562
  %v3300 = vlog2.pop %v3296
  %v3301 = vmul.f32 %v3300, 0.6931472
  %v3302 = vadd.f32 %v3299, %v3301
  %v3303 = vadd.f32 %v3302, %v2534
  %v3304 = vmul.f32 %v481, %v3303
  %v3305 = vsub.f32 1.0, %v40
  %3307 = vset.pattern.permute.xlu0 0
  %3308 = vperm.xlu0 %3307, %v3305
  %v3309 = vpop.permute.xlu0 %3308
  %v3311 = vmul.f32 %v3309, %v3210
  %v3312 = vadd.f32 %v3304, %v3311
  %v3313 = vadd.f32 %v2784, %v2595
  %v3314 = vmul.f32 %v41, %v3313
  %3316 = vrot.lane.b32.xlu0 %v3314, 1
  %v3317 = vpop.permute.xlu0 %3316
  %v3319 = vadd.f32 %v3219, %v3317
  %v3320 = vmul.f32 %v41, %v2631
  %v3321 = vadd.f32 %v3319, %v3320
  %v3322 = vsel %vm2574, %v3312, -inf
  %3323 = vmax.xlane.f32.xlu0 %v3322
  %v3324 = vpop.xlane.xlu0 %3323
  %v3325 = vsub.f32 %v3312, %v3324
  %v3326 = vmul.f32 %v3325, 1.442695
  %v3327 = vpow.pop %v3326
  %v3329 = vsel %vm2574, %v3327, 0
  %3331 = vmatprep.subr.mxu0 0.0
  %3332 = vmatpush1.msra.mxu0 %v2819
  %3333 = vmatprep.subr.mxu0 0.0
  %3334 = vmatpush1.msra.mxu0 0.0
  %3335 = vmatprep.subr.mxu0 0.0
  %3336 = vmatpush1.msra.mxu0 0.0
  %3337 = vmatprep.subr.mxu0 0.0
  %3338 = vmatpush1.msra.mxu0 0.0
  %3339 = vmatprep.subr.mxu0 0.0
  %3340 = vmatpush1.msra.mxu0 0.0
  %3341 = vmatprep.subr.mxu0 0.0
  %3342 = vmatpush1.msra.mxu0 0.0
  %3343 = vmatprep.subr.mxu0 0.0
  %3344 = vmatpush1.msra.mxu0 0.0
  %3345 = vmatprep.subr.mxu0 0.0
  %3346 = vmatpush1.msra.mxu0 0.0
  %3347 = vmatprep.subr.mxu0 0.0
  %3348 = vmatpush1.msra.mxu0 0.0
  %3349 = vmatprep.subr.mxu0 0.0
  %3350 = vmatpush1.msra.mxu0 0.0
  %3351 = vmatprep.subr.mxu0 0.0
  %3352 = vmatpush1.msra.mxu0 0.0
  %3353 = vmatprep.subr.mxu0 0.0
  %3354 = vmatpush1.msra.mxu0 0.0
  %3355 = vmatprep.subr.mxu0 0.0
  %3356 = vmatpush1.msra.mxu0 0.0
  %3357 = vmatprep.subr.mxu0 0.0
  %3358 = vmatpush1.msra.mxu0 0.0
  %3359 = vmatprep.subr.mxu0 0.0
  %3360 = vmatpush1.msra.mxu0 0.0
  %3361 = vmatprep.subr.mxu0 0.0
  %3362 = vmatpush1.msra.mxu0 0.0
  %3363 = vmatprep.subr.mxu0 0.0
  %3364 = vmatpush1.msra.mxu0 0.0
  %3365 = vmatprep.subr.mxu0 0.0
  %3366 = vmatpush1.msra.mxu0 0.0
  %3367 = vmatprep.subr.mxu0 0.0
  %3368 = vmatpush1.msra.mxu0 0.0
  %3369 = vmatprep.subr.mxu0 0.0
  %3370 = vmatpush1.msra.mxu0 0.0
  %3371 = vmatprep.subr.mxu0 0.0
  %3372 = vmatpush1.msra.mxu0 0.0
  %3373 = vmatprep.subr.mxu0 0.0
  %3374 = vmatpush1.msra.mxu0 0.0
  %3375 = vmatprep.subr.mxu0 0.0
  %3376 = vmatpush1.msra.mxu0 0.0
  %3377 = vmatprep.subr.mxu0 0.0
  %3378 = vmatpush1.msra.mxu0 0.0
  %3379 = vmatprep.subr.mxu0 0.0
  %3380 = vmatpush1.msra.mxu0 0.0
  %3381 = vmatprep.subr.mxu0 0.0
  %3382 = vmatpush1.msra.mxu0 0.0
  %3383 = vmatprep.subr.mxu0 0.0
  %3384 = vmatpush1.msra.mxu0 0.0
  %3385 = vmatprep.subr.mxu0 0.0
  %3386 = vmatpush1.msra.mxu0 0.0
  %3387 = vmatprep.subr.mxu0 0.0
  %3388 = vmatpush1.msra.mxu0 0.0
  %3389 = vmatprep.subr.mxu0 0.0
  %3390 = vmatpush1.msra.mxu0 0.0
  %3391 = vmatprep.subr.mxu0 0.0
  %3392 = vmatpush1.msra.mxu0 0.0
  %3393 = vmatprep.subr.mxu0 0.0
  %3394 = vmatpush1.msra.mxu0 0.0
  %3395 = vmatprep.mubr.f32.mxu0 0.0
  %3396 = vmatmul.mubr.f32.gmra.mrb[0].mxu0 %v3329
  %v3397 = vpop.f32.mrb[0].mxu0
  %v3398 = vadd.f32 0.0, %v3397
  %v3399 = vpop.f32.mrb[0].mxu0
  %3400 = vdwg.mxu0
  %v3401 = vadd.f32 %v3324, %v2562
  %v3402 = vlog2.pop %v3398
  %v3403 = vmul.f32 %v3402, 0.6931472
  %v3404 = vadd.f32 %v3401, %v3403
  %v3405 = vadd.f32 %v3404, %v2539
  %v3406 = vmul.f32 %v350, %v3405
  %v3407 = vsub.f32 1.0, %v41
  %3409 = vset.pattern.permute.xlu0 0
  %3410 = vperm.xlu0 %3409, %v3407
  %v3411 = vpop.permute.xlu0 %3410
  %v3413 = vmul.f32 %v3411, %v3312
  %v3414 = vadd.f32 %v3406, %v3413
  %v3415 = vadd.f32 %v2787, %v2598
  %v3416 = vmul.f32 %v42, %v3415
  %3418 = vrot.lane.b32.xlu0 %v3416, 1
  %v3419 = vpop.permute.xlu0 %3418
  %v3421 = vadd.f32 %v3321, %v3419
  %v3422 = vmul.f32 %v42, %v2634
  %v3423 = vadd.f32 %v3421, %v3422
  %v3424 = vsel %vm2574, %v3414, -inf
  %3425 = vmax.xlane.f32.xlu0 %v3424
  %v3426 = vpop.xlane.xlu0 %3425
  %v3427 = vsub.f32 %v3414, %v3426
  %v3428 = vmul.f32 %v3427, 1.442695
  %v3429 = vpow.pop %v3428
  %v3431 = vsel %vm2574, %v3429, 0
  %3433 = vmatprep.subr.mxu0 0.0
  %3434 = vmatpush1.msra.mxu0 %v2819
  %3435 = vmatprep.subr.mxu0 0.0
  %3436 = vmatpush1.msra.mxu0 0.0
  %3437 = vmatprep.subr.mxu0 0.0
  %3438 = vmatpush1.msra.mxu0 0.0
  %3439 = vmatprep.subr.mxu0 0.0
  %3440 = vmatpush1.msra.mxu0 0.0
  %3441 = vmatprep.subr.mxu0 0.0
  %3442 = vmatpush1.msra.mxu0 0.0
  %3443 = vmatprep.subr.mxu0 0.0
  %3444 = vmatpush1.msra.mxu0 0.0
  %3445 = vmatprep.subr.mxu0 0.0
  %3446 = vmatpush1.msra.mxu0 0.0
  %3447 = vmatprep.subr.mxu0 0.0
  %3448 = vmatpush1.msra.mxu0 0.0
  %3449 = vmatprep.subr.mxu0 0.0
  %3450 = vmatpush1.msra.mxu0 0.0
  %3451 = vmatprep.subr.mxu0 0.0
  %3452 = vmatpush1.msra.mxu0 0.0
  %3453 = vmatprep.subr.mxu0 0.0
  %3454 = vmatpush1.msra.mxu0 0.0
  %3455 = vmatprep.subr.mxu0 0.0
  %3456 = vmatpush1.msra.mxu0 0.0
  %3457 = vmatprep.subr.mxu0 0.0
  %3458 = vmatpush1.msra.mxu0 0.0
  %3459 = vmatprep.subr.mxu0 0.0
  %3460 = vmatpush1.msra.mxu0 0.0
  %3461 = vmatprep.subr.mxu0 0.0
  %3462 = vmatpush1.msra.mxu0 0.0
  %3463 = vmatprep.subr.mxu0 0.0
  %3464 = vmatpush1.msra.mxu0 0.0
  %3465 = vmatprep.subr.mxu0 0.0
  %3466 = vmatpush1.msra.mxu0 0.0
  %3467 = vmatprep.subr.mxu0 0.0
  %3468 = vmatpush1.msra.mxu0 0.0
  %3469 = vmatprep.subr.mxu0 0.0
  %3470 = vmatpush1.msra.mxu0 0.0
  %3471 = vmatprep.subr.mxu0 0.0
  %3472 = vmatpush1.msra.mxu0 0.0
  %3473 = vmatprep.subr.mxu0 0.0
  %3474 = vmatpush1.msra.mxu0 0.0
  %3475 = vmatprep.subr.mxu0 0.0
  %3476 = vmatpush1.msra.mxu0 0.0
  %3477 = vmatprep.subr.mxu0 0.0
  %3478 = vmatpush1.msra.mxu0 0.0
  %3479 = vmatprep.subr.mxu0 0.0
  %3480 = vmatpush1.msra.mxu0 0.0
  %3481 = vmatprep.subr.mxu0 0.0
  %3482 = vmatpush1.msra.mxu0 0.0
  %3483 = vmatprep.subr.mxu0 0.0
  %3484 = vmatpush1.msra.mxu0 0.0
  %3485 = vmatprep.subr.mxu0 0.0
  %3486 = vmatpush1.msra.mxu0 0.0
  %3487 = vmatprep.subr.mxu0 0.0
  %3488 = vmatpush1.msra.mxu0 0.0
  %3489 = vmatprep.subr.mxu0 0.0
  %3490 = vmatpush1.msra.mxu0 0.0
  %3491 = vmatprep.subr.mxu0 0.0
  %3492 = vmatpush1.msra.mxu0 0.0
  %3493 = vmatprep.subr.mxu0 0.0
  %3494 = vmatpush1.msra.mxu0 0.0
  %3495 = vmatprep.subr.mxu0 0.0
  %3496 = vmatpush1.msra.mxu0 0.0
  %3497 = vmatprep.mubr.f32.mxu0 0.0
  %3498 = vmatmul.mubr.f32.gmra.mrb[0].mxu0 %v3431
  %v3499 = vpop.f32.mrb[0].mxu0
  %v3500 = vadd.f32 0.0, %v3499
  %v3501 = vpop.f32.mrb[0].mxu0
  %3502 = vdwg.mxu0
  %v3503 = vadd.f32 %v3426, %v2562
  %v3504 = vlog2.pop %v3500
  %v3505 = vmul.f32 %v3504, 0.6931472
  %v3506 = vadd.f32 %v3503, %v3505
  %v3507 = vadd.f32 %v3506, %v2544
  %v3508 = vmul.f32 %v220, %v3507
  %v3509 = vsub.f32 1.0, %v42
  %3511 = vset.pattern.permute.xlu0 0
  %3512 = vperm.xlu0 %3511, %v3509
  %v3513 = vpop.permute.xlu0 %3512
  %v3515 = vmul.f32 %v3513, %v3414
  %v3516 = vadd.f32 %v3508, %v3515
  %v3517 = vadd.f32 %v3516, %v2602
  %v3518 = vsel %vm2574, %v3517, -inf
  %3519 = vmax.xlane.f32.xlu0 %v3518
  %v3520 = vpop.xlane.xlu0 %3519
  %v3521 = vsub.f32 %v3517, %v3520
  %v3522 = vmul.f32 %v3521, 1.442695
  %v3523 = vpow.pop %v3522
  %v3524 = vsel %vm2574, %v3523, 0.0
  %3525 = vadd.xlane.f32.xlu0 %v3524
  %v3526 = vpop.xlane.xlu0 %3525
  %v3527 = vlog2.pop %v3526
  %v3528 = vmul.f32 %v3527, 0.6931472
  %v3529 = vadd.f32 %v3520, %v3528
  %v3530 = vsub.f32 %v3529, %v3423
  %3532 = vrot.lane.b32.xlu0 %v3530, 127
  %v3533 = vpop.permute.xlu0 %3532
  %vm3535 = vcmask 7168
  %3536 = vst.msk [vmem:[%s10] sm:$0xff] %vm3535, %v3533
  // Predicated region
  $region42: #{bilstm_crf_forward.1} parent=0 // pred_check
    _
  $region43: #{bilstm_crf_forward.1} parent=0 // pred_check_branch
    %3538 = sbr.rel (0) target = $region45
  $region44: #{bilstm_crf_forward.1} parent=0 // pred_region
    _
  $region45: #{bilstm_crf_forward.1} parent=0 // pred_fallthru
    _
  // Predicated region
  $region46: #{bilstm_crf_forward.1} parent=0 // pred_check
    _
  $region47: #{bilstm_crf_forward.1} parent=0 // pred_check_branch
    %3540 = sbr.rel (0) target = $region49
  $region48: #{bilstm_crf_forward.1} parent=0 // pred_region
    _
  $region49: #{bilstm_crf_forward.1} parent=0 // pred_fallthru
    _

</llo_original>
